<compile_context>
chip_gen: v7x
topology: tpu7x:2x2x1
jax: 0.10.0
libtpu: 0.0.40
codegen_flags: <defaults>
</compile_context>

<pallas_src>
import jax
import jax.numpy as jnp
from jax.experimental import pallas as pl
from jax.experimental.pallas import tpu as pltpu  # noqa: F401

_IN = 6       # LSTM1 input features
_H1 = 64      # LSTM1 hidden size
_H2 = 32      # LSTM2 hidden size
_GP = 128     # per-gate padded lane width (one lane tile)


# ------------------------------ fused kernel ---------------------------------
def _fused_lstm_kernel(x_ref, wih1_ref, whh1_ref, b1_ref, w2_ref, b2_ref,
                       wfc_ref, bfc_ref, out_ref):
    """Entire model in one kernel.

    x_ref:    (T*B, F)       time-major flattened input rows (row = t*B + b), f32
    wih1_ref: (F,   4*GP)    bf16, gate g real block in columns [g*GP, g*GP+H1)
    whh1_ref: (GP,  4*GP)    bf16, rows >= H1 are zero
    b1_ref:   (1,   4*GP)    f32, b_ih1 + b_hh1 (padded)
    w2_ref:   (2*GP,4*GP)    bf16, fused [w_ih2 ; w_hh2]: rows [0,H1) act on h1,
                             rows [GP, GP+H2) act on h2, all other rows zero
    b2_ref:   (1,   4*GP)    f32, b_ih2 + b_hh2 (padded)
    wfc_ref:  (GP,  C)       bf16, rows >= H2 are zero
    bfc_ref:  (1,   C)       f32
    out_ref:  (B,   C)       f32 logits (B already padded to a multiple of 8)
    """
    B = out_ref.shape[0]
    T = x_ref.shape[0] // B
    GP = whh1_ref.shape[0]
    bf16 = jnp.bfloat16

    whh1 = whh1_ref[...]
    w2 = w2_ref[...]

    # Hoisted time-parallel input->gates projection for layer 1 (bias folded in).
    g1_all = (
        jnp.dot(x_ref[...].astype(bf16), wih1_ref[...],
                preferred_element_type=jnp.float32)
        + b1_ref[...]
    )  # (T*B, 4*GP) f32

    # Hoisted bias broadcast for layer 2 (broadcast_in_dim is not CSE'd by JAX).
    b2_b = jnp.broadcast_to(b2_ref[...], (B, 4 * GP))

    def cell(gates, c_prev):
        # PyTorch gate order [i, f, g, o]; each slice is lane-tile aligned.
        i_g = jax.nn.sigmoid(gates[:, 0 * GP:1 * GP])
        f_g = jax.nn.sigmoid(gates[:, 1 * GP:2 * GP])
        g_g = jnp.tanh(gates[:, 2 * GP:3 * GP])
        o_g = jax.nn.sigmoid(gates[:, 3 * GP:4 * GP])
        c_new = f_g * c_prev + i_g * g_g
        h_new = o_g * jnp.tanh(c_new)
        return h_new, c_new

    def layer2_step(h1_in, h2_in, c2_in):
        # Single fused K=256 dot: [h1 | h2] @ [w_ih2 ; w_hh2]  (+ hoisted bias).
        hcat = jnp.concatenate([h1_in.astype(bf16), h2_in.astype(bf16)], axis=-1)
        g2 = jnp.dot(hcat, w2, preferred_element_type=jnp.float32) + b2_b
        return cell(g2, c2_in)

    h1 = jnp.zeros((B, GP), jnp.float32)
    c1 = jnp.zeros((B, GP), jnp.float32)
    h2 = jnp.zeros((B, GP), jnp.float32)
    c2 = jnp.zeros((B, GP), jnp.float32)

    # Wavefront-skewed, fully unrolled recurrence: iteration t runs layer-1 at
    # step t and layer-2 at step t-1.  Both read h1_prev (layer-1 output at
    # t-1), so they are independent within the iteration.
    for t in range(T):
        h1_prev = h1
        # ---- layer 1, step t ----
        g1 = g1_all[t * B:(t + 1) * B, :] + jnp.dot(
            h1_prev.astype(bf16), whh1, preferred_element_type=jnp.float32)
        h1, c1 = cell(g1, c1)
        # dropout1: identity (inference)
        # ---- layer 2, step t-1 ----
        if t > 0:
            h2, c2 = layer2_step(h1_prev, h2, c2)
        # dropout2: identity (inference)

    # Layer-2 epilogue step for t = T-1.
    h2, c2 = layer2_step(h1, h2, c2)

    logits = jnp.dot(h2.astype(bf16), wfc_ref[...],
                     preferred_element_type=jnp.float32) + bfc_ref[...]
    out_ref[...] = logits.astype(out_ref.dtype)


# --------------------------- parameter preparation ----------------------------
def init_params(key, num_classes):
    """Synthetic PyTorch-style (uniform) parameters in PyTorch layout."""
    ks = jax.random.split(key, 10)

    def u(k, shape, bound):
        return jax.random.uniform(k, shape, jnp.float32, -bound, bound)

    s1 = 1.0 / (_H1 ** 0.5)
    s2 = 1.0 / (_H2 ** 0.5)
    return {
        "w_ih1": u(ks[0], (4 * _H1, _IN), s1), "w_hh1": u(ks[1], (4 * _H1, _H1), s1),
        "b_ih1": u(ks[2], (4 * _H1,), s1),     "b_hh1": u(ks[3], (4 * _H1,), s1),
        "w_ih2": u(ks[4], (4 * _H2, _H1), s2), "w_hh2": u(ks[5], (4 * _H2, _H2), s2),
        "b_ih2": u(ks[6], (4 * _H2,), s2),     "b_hh2": u(ks[7], (4 * _H2,), s2),
        "w_fc":  u(ks[8], (num_classes, _H2), s2), "b_fc": u(ks[9], (num_classes,), s2),
    }


def prepare_params(raw, num_classes):
    """One-time pack: transpose, combine biases, pad per-gate to 128 lanes,
    fuse layer-2's [w_ih2 ; w_hh2] into one (256, 512) weight, cast to bf16."""
    # Layer 1.
    wih1 = jnp.zeros((_IN, 4 * _GP), jnp.float32)
    whh1 = jnp.zeros((_GP, 4 * _GP), jnp.float32)
    b1 = jnp.zeros((1, 4 * _GP), jnp.float32)
    for g in range(4):
        r = slice(g * _H1, (g + 1) * _H1)
        c = slice(g * _GP, g * _GP + _H1)
        wih1 = wih1.at[:, c].set(raw["w_ih1"][r, :].T)
        whh1 = whh1.at[:_H1, c].set(raw["w_hh1"][r, :].T)
        b1 = b1.at[0, c].set(raw["b_ih1"][r] + raw["b_hh1"][r])
    # Layer 2 (fused [h1 ; h2] -> gates weight).
    w2 = jnp.zeros((2 * _GP, 4 * _GP), jnp.float32)
    b2 = jnp.zeros((1, 4 * _GP), jnp.float32)
    for g in range(4):
        r = slice(g * _H2, (g + 1) * _H2)
        c = slice(g * _GP, g * _GP + _H2)
        w2 = w2.at[:_H1, c].set(raw["w_ih2"][r, :].T)          # acts on h1 lanes
        w2 = w2.at[_GP:_GP + _H2, c].set(raw["w_hh2"][r, :].T)  # acts on h2 lanes
        b2 = b2.at[0, c].set(raw["b_ih2"][r] + raw["b_hh2"][r])
    # FC head.
    wfc = jnp.zeros((_GP, num_classes), jnp.float32).at[:_H2, :].set(raw["w_fc"].T)
    bfc = raw["b_fc"].reshape(1, num_classes).astype(jnp.float32)
    return {"wih1": wih1.astype(jnp.bfloat16), "whh1": whh1.astype(jnp.bfloat16),
            "b1": b1,
            "w2": w2.astype(jnp.bfloat16), "b2": b2,
            "wfc": wfc.astype(jnp.bfloat16), "bfc": bfc}


# --------------------------------- forward ------------------------------------
@jax.jit
def lstm_model_forward(x, params):
    """x: (B, T, 6) batch_first (same as the PyTorch module). Returns (B, C) f32 logits."""
    B, T, F = x.shape
    C = params["wfc"].shape[1]

    # Pad batch to a full 8-row sublane tile; padded rows are discarded at the end.
    BP = max(8, ((B + 7) // 8) * 8)
    if BP != B:
        x = jnp.pad(x, ((0, BP - B), (0, 0), (0, 0)))
    # Time-major row layout so row t*BP+b is the (t, b) sample; done once in XLA.
    x_flat = jnp.transpose(x, (1, 0, 2)).reshape(T * BP, F)

    flops = (2 * T * BP * F * 4 * _GP            # hoisted input projection
             + T * 2 * BP * _GP * 4 * _GP        # layer-1 recurrent dot
             + T * 2 * BP * (2 * _GP) * 4 * _GP  # fused layer-2 dot
             + 2 * BP * _GP * C)                 # fc head
    transcendentals = T * BP * 10 * _GP
    bytes_accessed = (int(x_flat.size) * 4
                      + sum(int(v.size) * v.dtype.itemsize for v in params.values())
                      + BP * C * 4)

    out = pl.pallas_call(
        _fused_lstm_kernel,
        out_shape=jax.ShapeDtypeStruct((BP, C), jnp.float32),
        cost_estimate=pl.CostEstimate(flops=flops,
                                      transcendentals=transcendentals,
                                      bytes_accessed=bytes_accessed),
    )(x_flat, params["wih1"], params["whh1"], params["b1"],
      params["w2"], params["b2"], params["wfc"], params["bfc"])
    return out[:B]


# ------------------------------ pure-jnp reference ----------------------------
def _reference_forward(x, raw):
    """Reference mirroring the kernel's numerics (bf16 MXU feeds, f32 accum)."""
    bf = jnp.bfloat16

    def mm(a, w):
        return jnp.dot(a.astype(bf), w.astype(bf), preferred_element_type=jnp.float32)

    def cell(x_t, h, c, w_ih, w_hh, b_ih, b_hh, H):
        g = mm(x_t, w_ih.T) + mm(h, w_hh.T) + (b_ih + b_hh)
        i = jax.nn.sigmoid(g[:, 0 * H:1 * H])
        f = jax.nn.sigmoid(g[:, 1 * H:2 * H])
        gg = jnp.tanh(g[:, 2 * H:3 * H])
        o = jax.nn.sigmoid(g[:, 3 * H:4 * H])
        c = f * c + i * gg
        h = o * jnp.tanh(c)
        return h, c

    B, T, _ = x.shape
    h1 = jnp.zeros((B, _H1), jnp.float32); c1 = jnp.zeros((B, _H1), jnp.float32)
    h2 = jnp.zeros((B, _H2), jnp.float32); c2 = jnp.zeros((B, _H2), jnp.float32)
    for t in range(T):
        h1, c1 = cell(x[:, t, :], h1, c1,
                      raw["w_ih1"], raw["w_hh1"], raw["b_ih1"], raw["b_hh1"], _H1)
        h2, c2 = cell(h1, h2, c2,
                      raw["w_ih2"], raw["w_hh2"], raw["b_ih2"], raw["b_hh2"], _H2)
    return mm(h2, raw["w_fc"].T) + raw["b_fc"]


if __name__ == "__main__":
    num_classes = 5
    B, T, F = 2, 8, _IN

    key = jax.random.PRNGKey(0)
    k_x, k_p = jax.random.split(key)
    x = jax.random.normal(k_x, (B, T, F), dtype=jnp.float32)
    raw = init_params(k_p, num_classes)
    params = prepare_params(raw, num_classes)

    out = lstm_model_forward(x, params)
    jax.block_until_ready(out)
    assert out.shape == (B, num_classes), out.shape
    assert bool(jnp.all(jnp.isfinite(out)))

    ref = _reference_forward(x, raw)
    assert bool(jnp.allclose(out, ref, atol=2e-2, rtol=2e-2)), (out, ref)
    print("KERNEL_OK")
</pallas_src>

<mosaic_0001>
module attributes {stable_mosaic.version = 11 : i64} {
  func.func @_fused_lstm_kernel(%arg0: memref<64x6xf32, #tpu.memory_space<vmem>>, %arg1: memref<6x512xbf16, #tpu.memory_space<vmem>>, %arg2: memref<128x512xbf16, #tpu.memory_space<vmem>>, %arg3: memref<1x512xf32, #tpu.memory_space<vmem>>, %arg4: memref<256x512xbf16, #tpu.memory_space<vmem>>, %arg5: memref<1x512xf32, #tpu.memory_space<vmem>>, %arg6: memref<128x5xbf16, #tpu.memory_space<vmem>>, %arg7: memref<1x5xf32, #tpu.memory_space<vmem>>, %arg8: memref<8x5xf32, #tpu.memory_space<vmem>>) attributes {dimension_semantics = [], scalar_prefetch = 0 : i64, scratch_operands = 0 : i64, tpu.core_type = #tpu.core_type<tc>} {
    %c0 = arith.constant 0 : index
    %c0_0 = arith.constant 0 : index
    %0 = vector.load %arg2[%c0, %c0_0] : memref<128x512xbf16, #tpu.memory_space<vmem>>, vector<128x512xbf16>
    %c0_1 = arith.constant 0 : index
    %c0_2 = arith.constant 0 : index
    %1 = vector.load %arg4[%c0_1, %c0_2] : memref<256x512xbf16, #tpu.memory_space<vmem>>, vector<256x512xbf16>
    %c0_3 = arith.constant 0 : index
    %c0_4 = arith.constant 0 : index
    %2 = vector.load %arg0[%c0_3, %c0_4] : memref<64x6xf32, #tpu.memory_space<vmem>>, vector<64x6xf32>
    %3 = arith.truncf %2 : vector<64x6xf32> to vector<64x6xbf16>
    %c0_5 = arith.constant 0 : index
    %c0_6 = arith.constant 0 : index
    %4 = vector.load %arg1[%c0_5, %c0_6] : memref<6x512xbf16, #tpu.memory_space<vmem>>, vector<6x512xbf16>
    %cst = arith.constant dense<0.000000e+00> : vector<64x512xf32>
    %5 = tpu.matmul %3, %4, %cst {dimension_numbers = #tpu.dot_dimension_numbers<[1], [0], [0], [1], [0, 0, 1, 1], [], []>} : vector<64x6xbf16>, vector<6x512xbf16>, vector<64x512xf32> -> vector<64x512xf32>
    %c0_7 = arith.constant 0 : index
    %c0_8 = arith.constant 0 : index
    %6 = vector.load %arg3[%c0_7, %c0_8] : memref<1x512xf32, #tpu.memory_space<vmem>>, vector<1x512xf32>
    %7 = vector.broadcast %6 : vector<1x512xf32> to vector<64x512xf32>
    %8 = arith.addf %5, %7 : vector<64x512xf32>
    %c0_9 = arith.constant 0 : index
    %c0_10 = arith.constant 0 : index
    %9 = vector.load %arg5[%c0_9, %c0_10] : memref<1x512xf32, #tpu.memory_space<vmem>>, vector<1x512xf32>
    %10 = vector.shape_cast %9 : vector<1x512xf32> to vector<1x512xf32>
    %11 = vector.broadcast %10 : vector<1x512xf32> to vector<8x512xf32>
    %cst_11 = arith.constant 0.000000e+00 : f32
    %12 = vector.broadcast %cst_11 : f32 to vector<8x128xf32>
    %cst_12 = arith.constant 0.000000e+00 : f32
    %13 = vector.broadcast %cst_12 : f32 to vector<8x128xf32>
    %cst_13 = arith.constant 0.000000e+00 : f32
    %14 = vector.broadcast %cst_13 : f32 to vector<8x128xf32>
    %cst_14 = arith.constant 0.000000e+00 : f32
    %15 = vector.broadcast %cst_14 : f32 to vector<8x128xf32>
    %16 = vector.extract_strided_slice %8 {offsets = [0, 0], sizes = [8, 512], strides = [1, 1]} : vector<64x512xf32> to vector<8x512xf32>
    %17 = arith.truncf %12 : vector<8x128xf32> to vector<8x128xbf16>
    %cst_15 = arith.constant dense<0.000000e+00> : vector<8x512xf32>
    %18 = tpu.matmul %17, %0, %cst_15 {dimension_numbers = #tpu.dot_dimension_numbers<[1], [0], [0], [1], [0, 0, 1, 1], [], []>} : vector<8x128xbf16>, vector<128x512xbf16>, vector<8x512xf32> -> vector<8x512xf32>
    %19 = arith.addf %16, %18 : vector<8x512xf32>
    %20 = vector.extract_strided_slice %19 {offsets = [0, 0], sizes = [8, 128], strides = [1, 1]} : vector<8x512xf32> to vector<8x128xf32>
    %21 = arith.negf %20 : vector<8x128xf32>
    %22 = math.exp %21 : vector<8x128xf32>
    %cst_16 = arith.constant 1.000000e+00 : f32
    %23 = vector.broadcast %cst_16 : f32 to vector<8x128xf32>
    %24 = arith.addf %23, %22 : vector<8x128xf32>
    %25 = arith.divf %23, %24 : vector<8x128xf32>
    %26 = vector.extract_strided_slice %19 {offsets = [0, 128], sizes = [8, 128], strides = [1, 1]} : vector<8x512xf32> to vector<8x128xf32>
    %27 = arith.negf %26 : vector<8x128xf32>
    %28 = math.exp %27 : vector<8x128xf32>
    %cst_17 = arith.constant 1.000000e+00 : f32
    %29 = vector.broadcast %cst_17 : f32 to vector<8x128xf32>
    %30 = arith.addf %29, %28 : vector<8x128xf32>
    %31 = arith.divf %29, %30 : vector<8x128xf32>
    %32 = vector.extract_strided_slice %19 {offsets = [0, 256], sizes = [8, 128], strides = [1, 1]} : vector<8x512xf32> to vector<8x128xf32>
    %33 = math.tanh %32 : vector<8x128xf32>
    %34 = vector.extract_strided_slice %19 {offsets = [0, 384], sizes = [8, 128], strides = [1, 1]} : vector<8x512xf32> to vector<8x128xf32>
    %35 = arith.negf %34 : vector<8x128xf32>
    %36 = math.exp %35 : vector<8x128xf32>
    %cst_18 = arith.constant 1.000000e+00 : f32
    %37 = vector.broadcast %cst_18 : f32 to vector<8x128xf32>
    %38 = arith.addf %37, %36 : vector<8x128xf32>
    %39 = arith.divf %37, %38 : vector<8x128xf32>
    %40 = arith.mulf %31, %13 : vector<8x128xf32>
    %41 = arith.mulf %25, %33 : vector<8x128xf32>
    %42 = arith.addf %40, %41 : vector<8x128xf32>
    %43 = math.tanh %42 : vector<8x128xf32>
    %44 = arith.mulf %39, %43 : vector<8x128xf32>
    %45 = vector.extract_strided_slice %8 {offsets = [8, 0], sizes = [8, 512], strides = [1, 1]} : vector<64x512xf32> to vector<8x512xf32>
    %46 = arith.truncf %44 : vector<8x128xf32> to vector<8x128xbf16>
    %cst_19 = arith.constant dense<0.000000e+00> : vector<8x512xf32>
    %47 = tpu.matmul %46, %0, %cst_19 {dimension_numbers = #tpu.dot_dimension_numbers<[1], [0], [0], [1], [0, 0, 1, 1], [], []>} : vector<8x128xbf16>, vector<128x512xbf16>, vector<8x512xf32> -> vector<8x512xf32>
    %48 = arith.addf %45, %47 : vector<8x512xf32>
    %49 = vector.extract_strided_slice %48 {offsets = [0, 0], sizes = [8, 128], strides = [1, 1]} : vector<8x512xf32> to vector<8x128xf32>
    %50 = arith.negf %49 : vector<8x128xf32>
    %51 = math.exp %50 : vector<8x128xf32>
    %cst_20 = arith.constant 1.000000e+00 : f32
    %52 = vector.broadcast %cst_20 : f32 to vector<8x128xf32>
    %53 = arith.addf %52, %51 : vector<8x128xf32>
    %54 = arith.divf %52, %53 : vector<8x128xf32>
    %55 = vector.extract_strided_slice %48 {offsets = [0, 128], sizes = [8, 128], strides = [1, 1]} : vector<8x512xf32> to vector<8x128xf32>
    %56 = arith.negf %55 : vector<8x128xf32>
    %57 = math.exp %56 : vector<8x128xf32>
    %cst_21 = arith.constant 1.000000e+00 : f32
    %58 = vector.broadcast %cst_21 : f32 to vector<8x128xf32>
    %59 = arith.addf %58, %57 : vector<8x128xf32>
    %60 = arith.divf %58, %59 : vector<8x128xf32>
    %61 = vector.extract_strided_slice %48 {offsets = [0, 256], sizes = [8, 128], strides = [1, 1]} : vector<8x512xf32> to vector<8x128xf32>
    %62 = math.tanh %61 : vector<8x128xf32>
    %63 = vector.extract_strided_slice %48 {offsets = [0, 384], sizes = [8, 128], strides = [1, 1]} : vector<8x512xf32> to vector<8x128xf32>
    %64 = arith.negf %63 : vector<8x128xf32>
    %65 = math.exp %64 : vector<8x128xf32>
    %cst_22 = arith.constant 1.000000e+00 : f32
    %66 = vector.broadcast %cst_22 : f32 to vector<8x128xf32>
    %67 = arith.addf %66, %65 : vector<8x128xf32>
    %68 = arith.divf %66, %67 : vector<8x128xf32>
    %69 = arith.mulf %60, %42 : vector<8x128xf32>
    %70 = arith.mulf %54, %62 : vector<8x128xf32>
    %71 = arith.addf %69, %70 : vector<8x128xf32>
    %72 = math.tanh %71 : vector<8x128xf32>
    %73 = arith.mulf %68, %72 : vector<8x128xf32>
    %74 = arith.truncf %44 : vector<8x128xf32> to vector<8x128xbf16>
    %75 = arith.truncf %14 : vector<8x128xf32> to vector<8x128xbf16>
    %76 = tpu.concatenate %74, %75 in 1 : vector<8x128xbf16>, vector<8x128xbf16> -> vector<8x256xbf16>
    %cst_23 = arith.constant dense<0.000000e+00> : vector<8x512xf32>
    %77 = tpu.matmul %76, %1, %cst_23 {dimension_numbers = #tpu.dot_dimension_numbers<[1], [0], [0], [1], [0, 0, 1, 1], [], []>} : vector<8x256xbf16>, vector<256x512xbf16>, vector<8x512xf32> -> vector<8x512xf32>
    %78 = arith.addf %77, %11 : vector<8x512xf32>
    %79 = vector.extract_strided_slice %78 {offsets = [0, 0], sizes = [8, 128], strides = [1, 1]} : vector<8x512xf32> to vector<8x128xf32>
    %80 = arith.negf %79 : vector<8x128xf32>
    %81 = math.exp %80 : vector<8x128xf32>
    %cst_24 = arith.constant 1.000000e+00 : f32
    %82 = vector.broadcast %cst_24 : f32 to vector<8x128xf32>
    %83 = arith.addf %82, %81 : vector<8x128xf32>
    %84 = arith.divf %82, %83 : vector<8x128xf32>
    %85 = vector.extract_strided_slice %78 {offsets = [0, 128], sizes = [8, 128], strides = [1, 1]} : vector<8x512xf32> to vector<8x128xf32>
    %86 = arith.negf %85 : vector<8x128xf32>
    %87 = math.exp %86 : vector<8x128xf32>
    %cst_25 = arith.constant 1.000000e+00 : f32
    %88 = vector.broadcast %cst_25 : f32 to vector<8x128xf32>
    %89 = arith.addf %88, %87 : vector<8x128xf32>
    %90 = arith.divf %88, %89 : vector<8x128xf32>
    %91 = vector.extract_strided_slice %78 {offsets = [0, 256], sizes = [8, 128], strides = [1, 1]} : vector<8x512xf32> to vector<8x128xf32>
    %92 = math.tanh %91 : vector<8x128xf32>
    %93 = vector.extract_strided_slice %78 {offsets = [0, 384], sizes = [8, 128], strides = [1, 1]} : vector<8x512xf32> to vector<8x128xf32>
    %94 = arith.negf %93 : vector<8x128xf32>
    %95 = math.exp %94 : vector<8x128xf32>
    %cst_26 = arith.constant 1.000000e+00 : f32
    %96 = vector.broadcast %cst_26 : f32 to vector<8x128xf32>
    %97 = arith.addf %96, %95 : vector<8x128xf32>
    %98 = arith.divf %96, %97 : vector<8x128xf32>
    %99 = arith.mulf %90, %15 : vector<8x128xf32>
    %100 = arith.mulf %84, %92 : vector<8x128xf32>
    %101 = arith.addf %99, %100 : vector<8x128xf32>
    %102 = math.tanh %101 : vector<8x128xf32>
    %103 = arith.mulf %98, %102 : vector<8x128xf32>
    %104 = vector.extract_strided_slice %8 {offsets = [16, 0], sizes = [8, 512], strides = [1, 1]} : vector<64x512xf32> to vector<8x512xf32>
    %105 = arith.truncf %73 : vector<8x128xf32> to vector<8x128xbf16>
    %cst_27 = arith.constant dense<0.000000e+00> : vector<8x512xf32>
    %106 = tpu.matmul %105, %0, %cst_27 {dimension_numbers = #tpu.dot_dimension_numbers<[1], [0], [0], [1], [0, 0, 1, 1], [], []>} : vector<8x128xbf16>, vector<128x512xbf16>, vector<8x512xf32> -> vector<8x512xf32>
    %107 = arith.addf %104, %106 : vector<8x512xf32>
    %108 = vector.extract_strided_slice %107 {offsets = [0, 0], sizes = [8, 128], strides = [1, 1]} : vector<8x512xf32> to vector<8x128xf32>
    %109 = arith.negf %108 : vector<8x128xf32>
    %110 = math.exp %109 : vector<8x128xf32>
    %cst_28 = arith.constant 1.000000e+00 : f32
    %111 = vector.broadcast %cst_28 : f32 to vector<8x128xf32>
    %112 = arith.addf %111, %110 : vector<8x128xf32>
    %113 = arith.divf %111, %112 : vector<8x128xf32>
    %114 = vector.extract_strided_slice %107 {offsets = [0, 128], sizes = [8, 128], strides = [1, 1]} : vector<8x512xf32> to vector<8x128xf32>
    %115 = arith.negf %114 : vector<8x128xf32>
    %116 = math.exp %115 : vector<8x128xf32>
    %cst_29 = arith.constant 1.000000e+00 : f32
    %117 = vector.broadcast %cst_29 : f32 to vector<8x128xf32>
    %118 = arith.addf %117, %116 : vector<8x128xf32>
    %119 = arith.divf %117, %118 : vector<8x128xf32>
    %120 = vector.extract_strided_slice %107 {offsets = [0, 256], sizes = [8, 128], strides = [1, 1]} : vector<8x512xf32> to vector<8x128xf32>
    %121 = math.tanh %120 : vector<8x128xf32>
    %122 = vector.extract_strided_slice %107 {offsets = [0, 384], sizes = [8, 128], strides = [1, 1]} : vector<8x512xf32> to vector<8x128xf32>
    %123 = arith.negf %122 : vector<8x128xf32>
    %124 = math.exp %123 : vector<8x128xf32>
    %cst_30 = arith.constant 1.000000e+00 : f32
    %125 = vector.broadcast %cst_30 : f32 to vector<8x128xf32>
    %126 = arith.addf %125, %124 : vector<8x128xf32>
    %127 = arith.divf %125, %126 : vector<8x128xf32>
    %128 = arith.mulf %119, %71 : vector<8x128xf32>
    %129 = arith.mulf %113, %121 : vector<8x128xf32>
    %130 = arith.addf %128, %129 : vector<8x128xf32>
    %131 = math.tanh %130 : vector<8x128xf32>
    %132 = arith.mulf %127, %131 : vector<8x128xf32>
    %133 = arith.truncf %73 : vector<8x128xf32> to vector<8x128xbf16>
    %134 = arith.truncf %103 : vector<8x128xf32> to vector<8x128xbf16>
    %135 = tpu.concatenate %133, %134 in 1 : vector<8x128xbf16>, vector<8x128xbf16> -> vector<8x256xbf16>
    %cst_31 = arith.constant dense<0.000000e+00> : vector<8x512xf32>
    %136 = tpu.matmul %135, %1, %cst_31 {dimension_numbers = #tpu.dot_dimension_numbers<[1], [0], [0], [1], [0, 0, 1, 1], [], []>} : vector<8x256xbf16>, vector<256x512xbf16>, vector<8x512xf32> -> vector<8x512xf32>
    %137 = arith.addf %136, %11 : vector<8x512xf32>
    %138 = vector.extract_strided_slice %137 {offsets = [0, 0], sizes = [8, 128], strides = [1, 1]} : vector<8x512xf32> to vector<8x128xf32>
    %139 = arith.negf %138 : vector<8x128xf32>
    %140 = math.exp %139 : vector<8x128xf32>
    %cst_32 = arith.constant 1.000000e+00 : f32
    %141 = vector.broadcast %cst_32 : f32 to vector<8x128xf32>
    %142 = arith.addf %141, %140 : vector<8x128xf32>
    %143 = arith.divf %141, %142 : vector<8x128xf32>
    %144 = vector.extract_strided_slice %137 {offsets = [0, 128], sizes = [8, 128], strides = [1, 1]} : vector<8x512xf32> to vector<8x128xf32>
    %145 = arith.negf %144 : vector<8x128xf32>
    %146 = math.exp %145 : vector<8x128xf32>
    %cst_33 = arith.constant 1.000000e+00 : f32
    %147 = vector.broadcast %cst_33 : f32 to vector<8x128xf32>
    %148 = arith.addf %147, %146 : vector<8x128xf32>
    %149 = arith.divf %147, %148 : vector<8x128xf32>
    %150 = vector.extract_strided_slice %137 {offsets = [0, 256], sizes = [8, 128], strides = [1, 1]} : vector<8x512xf32> to vector<8x128xf32>
    %151 = math.tanh %150 : vector<8x128xf32>
    %152 = vector.extract_strided_slice %137 {offsets = [0, 384], sizes = [8, 128], strides = [1, 1]} : vector<8x512xf32> to vector<8x128xf32>
    %153 = arith.negf %152 : vector<8x128xf32>
    %154 = math.exp %153 : vector<8x128xf32>
    %cst_34 = arith.constant 1.000000e+00 : f32
    %155 = vector.broadcast %cst_34 : f32 to vector<8x128xf32>
    %156 = arith.addf %155, %154 : vector<8x128xf32>
    %157 = arith.divf %155, %156 : vector<8x128xf32>
    %158 = arith.mulf %149, %101 : vector<8x128xf32>
    %159 = arith.mulf %143, %151 : vector<8x128xf32>
    %160 = arith.addf %158, %159 : vector<8x128xf32>
    %161 = math.tanh %160 : vector<8x128xf32>
    %162 = arith.mulf %157, %161 : vector<8x128xf32>
    %163 = vector.extract_strided_slice %8 {offsets = [24, 0], sizes = [8, 512], strides = [1, 1]} : vector<64x512xf32> to vector<8x512xf32>
    %164 = arith.truncf %132 : vector<8x128xf32> to vector<8x128xbf16>
    %cst_35 = arith.constant dense<0.000000e+00> : vector<8x512xf32>
    %165 = tpu.matmul %164, %0, %cst_35 {dimension_numbers = #tpu.dot_dimension_numbers<[1], [0], [0], [1], [0, 0, 1, 1], [], []>} : vector<8x128xbf16>, vector<128x512xbf16>, vector<8x512xf32> -> vector<8x512xf32>
    %166 = arith.addf %163, %165 : vector<8x512xf32>
    %167 = vector.extract_strided_slice %166 {offsets = [0, 0], sizes = [8, 128], strides = [1, 1]} : vector<8x512xf32> to vector<8x128xf32>
    %168 = arith.negf %167 : vector<8x128xf32>
    %169 = math.exp %168 : vector<8x128xf32>
    %cst_36 = arith.constant 1.000000e+00 : f32
    %170 = vector.broadcast %cst_36 : f32 to vector<8x128xf32>
    %171 = arith.addf %170, %169 : vector<8x128xf32>
    %172 = arith.divf %170, %171 : vector<8x128xf32>
    %173 = vector.extract_strided_slice %166 {offsets = [0, 128], sizes = [8, 128], strides = [1, 1]} : vector<8x512xf32> to vector<8x128xf32>
    %174 = arith.negf %173 : vector<8x128xf32>
    %175 = math.exp %174 : vector<8x128xf32>
    %cst_37 = arith.constant 1.000000e+00 : f32
    %176 = vector.broadcast %cst_37 : f32 to vector<8x128xf32>
    %177 = arith.addf %176, %175 : vector<8x128xf32>
    %178 = arith.divf %176, %177 : vector<8x128xf32>
    %179 = vector.extract_strided_slice %166 {offsets = [0, 256], sizes = [8, 128], strides = [1, 1]} : vector<8x512xf32> to vector<8x128xf32>
    %180 = math.tanh %179 : vector<8x128xf32>
    %181 = vector.extract_strided_slice %166 {offsets = [0, 384], sizes = [8, 128], strides = [1, 1]} : vector<8x512xf32> to vector<8x128xf32>
    %182 = arith.negf %181 : vector<8x128xf32>
    %183 = math.exp %182 : vector<8x128xf32>
    %cst_38 = arith.constant 1.000000e+00 : f32
    %184 = vector.broadcast %cst_38 : f32 to vector<8x128xf32>
    %185 = arith.addf %184, %183 : vector<8x128xf32>
    %186 = arith.divf %184, %185 : vector<8x128xf32>
    %187 = arith.mulf %178, %130 : vector<8x128xf32>
    %188 = arith.mulf %172, %180 : vector<8x128xf32>
    %189 = arith.addf %187, %188 : vector<8x128xf32>
    %190 = math.tanh %189 : vector<8x128xf32>
    %191 = arith.mulf %186, %190 : vector<8x128xf32>
    %192 = arith.truncf %132 : vector<8x128xf32> to vector<8x128xbf16>
    %193 = arith.truncf %162 : vector<8x128xf32> to vector<8x128xbf16>
    %194 = tpu.concatenate %192, %193 in 1 : vector<8x128xbf16>, vector<8x128xbf16> -> vector<8x256xbf16>
    %cst_39 = arith.constant dense<0.000000e+00> : vector<8x512xf32>
    %195 = tpu.matmul %194, %1, %cst_39 {dimension_numbers = #tpu.dot_dimension_numbers<[1], [0], [0], [1], [0, 0, 1, 1], [], []>} : vector<8x256xbf16>, vector<256x512xbf16>, vector<8x512xf32> -> vector<8x512xf32>
    %196 = arith.addf %195, %11 : vector<8x512xf32>
    %197 = vector.extract_strided_slice %196 {offsets = [0, 0], sizes = [8, 128], strides = [1, 1]} : vector<8x512xf32> to vector<8x128xf32>
    %198 = arith.negf %197 : vector<8x128xf32>
    %199 = math.exp %198 : vector<8x128xf32>
    %cst_40 = arith.constant 1.000000e+00 : f32
    %200 = vector.broadcast %cst_40 : f32 to vector<8x128xf32>
    %201 = arith.addf %200, %199 : vector<8x128xf32>
    %202 = arith.divf %200, %201 : vector<8x128xf32>
    %203 = vector.extract_strided_slice %196 {offsets = [0, 128], sizes = [8, 128], strides = [1, 1]} : vector<8x512xf32> to vector<8x128xf32>
    %204 = arith.negf %203 : vector<8x128xf32>
    %205 = math.exp %204 : vector<8x128xf32>
    %cst_41 = arith.constant 1.000000e+00 : f32
    %206 = vector.broadcast %cst_41 : f32 to vector<8x128xf32>
    %207 = arith.addf %206, %205 : vector<8x128xf32>
    %208 = arith.divf %206, %207 : vector<8x128xf32>
    %209 = vector.extract_strided_slice %196 {offsets = [0, 256], sizes = [8, 128], strides = [1, 1]} : vector<8x512xf32> to vector<8x128xf32>
    %210 = math.tanh %209 : vector<8x128xf32>
    %211 = vector.extract_strided_slice %196 {offsets = [0, 384], sizes = [8, 128], strides = [1, 1]} : vector<8x512xf32> to vector<8x128xf32>
    %212 = arith.negf %211 : vector<8x128xf32>
    %213 = math.exp %212 : vector<8x128xf32>
    %cst_42 = arith.constant 1.000000e+00 : f32
    %214 = vector.broadcast %cst_42 : f32 to vector<8x128xf32>
    %215 = arith.addf %214, %213 : vector<8x128xf32>
    %216 = arith.divf %214, %215 : vector<8x128xf32>
    %217 = arith.mulf %208, %160 : vector<8x128xf32>
    %218 = arith.mulf %202, %210 : vector<8x128xf32>
    %219 = arith.addf %217, %218 : vector<8x128xf32>
    %220 = math.tanh %219 : vector<8x128xf32>
    %221 = arith.mulf %216, %220 : vector<8x128xf32>
    %222 = vector.extract_strided_slice %8 {offsets = [32, 0], sizes = [8, 512], strides = [1, 1]} : vector<64x512xf32> to vector<8x512xf32>
    %223 = arith.truncf %191 : vector<8x128xf32> to vector<8x128xbf16>
    %cst_43 = arith.constant dense<0.000000e+00> : vector<8x512xf32>
    %224 = tpu.matmul %223, %0, %cst_43 {dimension_numbers = #tpu.dot_dimension_numbers<[1], [0], [0], [1], [0, 0, 1, 1], [], []>} : vector<8x128xbf16>, vector<128x512xbf16>, vector<8x512xf32> -> vector<8x512xf32>
    %225 = arith.addf %222, %224 : vector<8x512xf32>
    %226 = vector.extract_strided_slice %225 {offsets = [0, 0], sizes = [8, 128], strides = [1, 1]} : vector<8x512xf32> to vector<8x128xf32>
    %227 = arith.negf %226 : vector<8x128xf32>
    %228 = math.exp %227 : vector<8x128xf32>
    %cst_44 = arith.constant 1.000000e+00 : f32
    %229 = vector.broadcast %cst_44 : f32 to vector<8x128xf32>
    %230 = arith.addf %229, %228 : vector<8x128xf32>
    %231 = arith.divf %229, %230 : vector<8x128xf32>
    %232 = vector.extract_strided_slice %225 {offsets = [0, 128], sizes = [8, 128], strides = [1, 1]} : vector<8x512xf32> to vector<8x128xf32>
    %233 = arith.negf %232 : vector<8x128xf32>
    %234 = math.exp %233 : vector<8x128xf32>
    %cst_45 = arith.constant 1.000000e+00 : f32
    %235 = vector.broadcast %cst_45 : f32 to vector<8x128xf32>
    %236 = arith.addf %235, %234 : vector<8x128xf32>
    %237 = arith.divf %235, %236 : vector<8x128xf32>
    %238 = vector.extract_strided_slice %225 {offsets = [0, 256], sizes = [8, 128], strides = [1, 1]} : vector<8x512xf32> to vector<8x128xf32>
    %239 = math.tanh %238 : vector<8x128xf32>
    %240 = vector.extract_strided_slice %225 {offsets = [0, 384], sizes = [8, 128], strides = [1, 1]} : vector<8x512xf32> to vector<8x128xf32>
    %241 = arith.negf %240 : vector<8x128xf32>
    %242 = math.exp %241 : vector<8x128xf32>
    %cst_46 = arith.constant 1.000000e+00 : f32
    %243 = vector.broadcast %cst_46 : f32 to vector<8x128xf32>
    %244 = arith.addf %243, %242 : vector<8x128xf32>
    %245 = arith.divf %243, %244 : vector<8x128xf32>
    %246 = arith.mulf %237, %189 : vector<8x128xf32>
    %247 = arith.mulf %231, %239 : vector<8x128xf32>
    %248 = arith.addf %246, %247 : vector<8x128xf32>
    %249 = math.tanh %248 : vector<8x128xf32>
    %250 = arith.mulf %245, %249 : vector<8x128xf32>
    %251 = arith.truncf %191 : vector<8x128xf32> to vector<8x128xbf16>
    %252 = arith.truncf %221 : vector<8x128xf32> to vector<8x128xbf16>
    %253 = tpu.concatenate %251, %252 in 1 : vector<8x128xbf16>, vector<8x128xbf16> -> vector<8x256xbf16>
    %cst_47 = arith.constant dense<0.000000e+00> : vector<8x512xf32>
    %254 = tpu.matmul %253, %1, %cst_47 {dimension_numbers = #tpu.dot_dimension_numbers<[1], [0], [0], [1], [0, 0, 1, 1], [], []>} : vector<8x256xbf16>, vector<256x512xbf16>, vector<8x512xf32> -> vector<8x512xf32>
    %255 = arith.addf %254, %11 : vector<8x512xf32>
    %256 = vector.extract_strided_slice %255 {offsets = [0, 0], sizes = [8, 128], strides = [1, 1]} : vector<8x512xf32> to vector<8x128xf32>
    %257 = arith.negf %256 : vector<8x128xf32>
    %258 = math.exp %257 : vector<8x128xf32>
    %cst_48 = arith.constant 1.000000e+00 : f32
    %259 = vector.broadcast %cst_48 : f32 to vector<8x128xf32>
    %260 = arith.addf %259, %258 : vector<8x128xf32>
    %261 = arith.divf %259, %260 : vector<8x128xf32>
    %262 = vector.extract_strided_slice %255 {offsets = [0, 128], sizes = [8, 128], strides = [1, 1]} : vector<8x512xf32> to vector<8x128xf32>
    %263 = arith.negf %262 : vector<8x128xf32>
    %264 = math.exp %263 : vector<8x128xf32>
    %cst_49 = arith.constant 1.000000e+00 : f32
    %265 = vector.broadcast %cst_49 : f32 to vector<8x128xf32>
    %266 = arith.addf %265, %264 : vector<8x128xf32>
    %267 = arith.divf %265, %266 : vector<8x128xf32>
    %268 = vector.extract_strided_slice %255 {offsets = [0, 256], sizes = [8, 128], strides = [1, 1]} : vector<8x512xf32> to vector<8x128xf32>
    %269 = math.tanh %268 : vector<8x128xf32>
    %270 = vector.extract_strided_slice %255 {offsets = [0, 384], sizes = [8, 128], strides = [1, 1]} : vector<8x512xf32> to vector<8x128xf32>
    %271 = arith.negf %270 : vector<8x128xf32>
    %272 = math.exp %271 : vector<8x128xf32>
    %cst_50 = arith.constant 1.000000e+00 : f32
    %273 = vector.broadcast %cst_50 : f32 to vector<8x128xf32>
    %274 = arith.addf %273, %272 : vector<8x128xf32>
    %275 = arith.divf %273, %274 : vector<8x128xf32>
    %276 = arith.mulf %267, %219 : vector<8x128xf32>
    %277 = arith.mulf %261, %269 : vector<8x128xf32>
    %278 = arith.addf %276, %277 : vector<8x128xf32>
    %279 = math.tanh %278 : vector<8x128xf32>
    %280 = arith.mulf %275, %279 : vector<8x128xf32>
    %281 = vector.extract_strided_slice %8 {offsets = [40, 0], sizes = [8, 512], strides = [1, 1]} : vector<64x512xf32> to vector<8x512xf32>
    %282 = arith.truncf %250 : vector<8x128xf32> to vector<8x128xbf16>
    %cst_51 = arith.constant dense<0.000000e+00> : vector<8x512xf32>
    %283 = tpu.matmul %282, %0, %cst_51 {dimension_numbers = #tpu.dot_dimension_numbers<[1], [0], [0], [1], [0, 0, 1, 1], [], []>} : vector<8x128xbf16>, vector<128x512xbf16>, vector<8x512xf32> -> vector<8x512xf32>
    %284 = arith.addf %281, %283 : vector<8x512xf32>
    %285 = vector.extract_strided_slice %284 {offsets = [0, 0], sizes = [8, 128], strides = [1, 1]} : vector<8x512xf32> to vector<8x128xf32>
    %286 = arith.negf %285 : vector<8x128xf32>
    %287 = math.exp %286 : vector<8x128xf32>
    %cst_52 = arith.constant 1.000000e+00 : f32
    %288 = vector.broadcast %cst_52 : f32 to vector<8x128xf32>
    %289 = arith.addf %288, %287 : vector<8x128xf32>
    %290 = arith.divf %288, %289 : vector<8x128xf32>
    %291 = vector.extract_strided_slice %284 {offsets = [0, 128], sizes = [8, 128], strides = [1, 1]} : vector<8x512xf32> to vector<8x128xf32>
    %292 = arith.negf %291 : vector<8x128xf32>
    %293 = math.exp %292 : vector<8x128xf32>
    %cst_53 = arith.constant 1.000000e+00 : f32
    %294 = vector.broadcast %cst_53 : f32 to vector<8x128xf32>
    %295 = arith.addf %294, %293 : vector<8x128xf32>
    %296 = arith.divf %294, %295 : vector<8x128xf32>
    %297 = vector.extract_strided_slice %284 {offsets = [0, 256], sizes = [8, 128], strides = [1, 1]} : vector<8x512xf32> to vector<8x128xf32>
    %298 = math.tanh %297 : vector<8x128xf32>
    %299 = vector.extract_strided_slice %284 {offsets = [0, 384], sizes = [8, 128], strides = [1, 1]} : vector<8x512xf32> to vector<8x128xf32>
    %300 = arith.negf %299 : vector<8x128xf32>
    %301 = math.exp %300 : vector<8x128xf32>
    %cst_54 = arith.constant 1.000000e+00 : f32
    %302 = vector.broadcast %cst_54 : f32 to vector<8x128xf32>
    %303 = arith.addf %302, %301 : vector<8x128xf32>
    %304 = arith.divf %302, %303 : vector<8x128xf32>
    %305 = arith.mulf %296, %248 : vector<8x128xf32>
    %306 = arith.mulf %290, %298 : vector<8x128xf32>
    %307 = arith.addf %305, %306 : vector<8x128xf32>
    %308 = math.tanh %307 : vector<8x128xf32>
    %309 = arith.mulf %304, %308 : vector<8x128xf32>
    %310 = arith.truncf %250 : vector<8x128xf32> to vector<8x128xbf16>
    %311 = arith.truncf %280 : vector<8x128xf32> to vector<8x128xbf16>
    %312 = tpu.concatenate %310, %311 in 1 : vector<8x128xbf16>, vector<8x128xbf16> -> vector<8x256xbf16>
    %cst_55 = arith.constant dense<0.000000e+00> : vector<8x512xf32>
    %313 = tpu.matmul %312, %1, %cst_55 {dimension_numbers = #tpu.dot_dimension_numbers<[1], [0], [0], [1], [0, 0, 1, 1], [], []>} : vector<8x256xbf16>, vector<256x512xbf16>, vector<8x512xf32> -> vector<8x512xf32>
    %314 = arith.addf %313, %11 : vector<8x512xf32>
    %315 = vector.extract_strided_slice %314 {offsets = [0, 0], sizes = [8, 128], strides = [1, 1]} : vector<8x512xf32> to vector<8x128xf32>
    %316 = arith.negf %315 : vector<8x128xf32>
    %317 = math.exp %316 : vector<8x128xf32>
    %cst_56 = arith.constant 1.000000e+00 : f32
    %318 = vector.broadcast %cst_56 : f32 to vector<8x128xf32>
    %319 = arith.addf %318, %317 : vector<8x128xf32>
    %320 = arith.divf %318, %319 : vector<8x128xf32>
    %321 = vector.extract_strided_slice %314 {offsets = [0, 128], sizes = [8, 128], strides = [1, 1]} : vector<8x512xf32> to vector<8x128xf32>
    %322 = arith.negf %321 : vector<8x128xf32>
    %323 = math.exp %322 : vector<8x128xf32>
    %cst_57 = arith.constant 1.000000e+00 : f32
    %324 = vector.broadcast %cst_57 : f32 to vector<8x128xf32>
    %325 = arith.addf %324, %323 : vector<8x128xf32>
    %326 = arith.divf %324, %325 : vector<8x128xf32>
    %327 = vector.extract_strided_slice %314 {offsets = [0, 256], sizes = [8, 128], strides = [1, 1]} : vector<8x512xf32> to vector<8x128xf32>
    %328 = math.tanh %327 : vector<8x128xf32>
    %329 = vector.extract_strided_slice %314 {offsets = [0, 384], sizes = [8, 128], strides = [1, 1]} : vector<8x512xf32> to vector<8x128xf32>
    %330 = arith.negf %329 : vector<8x128xf32>
    %331 = math.exp %330 : vector<8x128xf32>
    %cst_58 = arith.constant 1.000000e+00 : f32
    %332 = vector.broadcast %cst_58 : f32 to vector<8x128xf32>
    %333 = arith.addf %332, %331 : vector<8x128xf32>
    %334 = arith.divf %332, %333 : vector<8x128xf32>
    %335 = arith.mulf %326, %278 : vector<8x128xf32>
    %336 = arith.mulf %320, %328 : vector<8x128xf32>
    %337 = arith.addf %335, %336 : vector<8x128xf32>
    %338 = math.tanh %337 : vector<8x128xf32>
    %339 = arith.mulf %334, %338 : vector<8x128xf32>
    %340 = vector.extract_strided_slice %8 {offsets = [48, 0], sizes = [8, 512], strides = [1, 1]} : vector<64x512xf32> to vector<8x512xf32>
    %341 = arith.truncf %309 : vector<8x128xf32> to vector<8x128xbf16>
    %cst_59 = arith.constant dense<0.000000e+00> : vector<8x512xf32>
    %342 = tpu.matmul %341, %0, %cst_59 {dimension_numbers = #tpu.dot_dimension_numbers<[1], [0], [0], [1], [0, 0, 1, 1], [], []>} : vector<8x128xbf16>, vector<128x512xbf16>, vector<8x512xf32> -> vector<8x512xf32>
    %343 = arith.addf %340, %342 : vector<8x512xf32>
    %344 = vector.extract_strided_slice %343 {offsets = [0, 0], sizes = [8, 128], strides = [1, 1]} : vector<8x512xf32> to vector<8x128xf32>
    %345 = arith.negf %344 : vector<8x128xf32>
    %346 = math.exp %345 : vector<8x128xf32>
    %cst_60 = arith.constant 1.000000e+00 : f32
    %347 = vector.broadcast %cst_60 : f32 to vector<8x128xf32>
    %348 = arith.addf %347, %346 : vector<8x128xf32>
    %349 = arith.divf %347, %348 : vector<8x128xf32>
    %350 = vector.extract_strided_slice %343 {offsets = [0, 128], sizes = [8, 128], strides = [1, 1]} : vector<8x512xf32> to vector<8x128xf32>
    %351 = arith.negf %350 : vector<8x128xf32>
    %352 = math.exp %351 : vector<8x128xf32>
    %cst_61 = arith.constant 1.000000e+00 : f32
    %353 = vector.broadcast %cst_61 : f32 to vector<8x128xf32>
    %354 = arith.addf %353, %352 : vector<8x128xf32>
    %355 = arith.divf %353, %354 : vector<8x128xf32>
    %356 = vector.extract_strided_slice %343 {offsets = [0, 256], sizes = [8, 128], strides = [1, 1]} : vector<8x512xf32> to vector<8x128xf32>
    %357 = math.tanh %356 : vector<8x128xf32>
    %358 = vector.extract_strided_slice %343 {offsets = [0, 384], sizes = [8, 128], strides = [1, 1]} : vector<8x512xf32> to vector<8x128xf32>
    %359 = arith.negf %358 : vector<8x128xf32>
    %360 = math.exp %359 : vector<8x128xf32>
    %cst_62 = arith.constant 1.000000e+00 : f32
    %361 = vector.broadcast %cst_62 : f32 to vector<8x128xf32>
    %362 = arith.addf %361, %360 : vector<8x128xf32>
    %363 = arith.divf %361, %362 : vector<8x128xf32>
    %364 = arith.mulf %355, %307 : vector<8x128xf32>
    %365 = arith.mulf %349, %357 : vector<8x128xf32>
    %366 = arith.addf %364, %365 : vector<8x128xf32>
    %367 = math.tanh %366 : vector<8x128xf32>
    %368 = arith.mulf %363, %367 : vector<8x128xf32>
    %369 = arith.truncf %309 : vector<8x128xf32> to vector<8x128xbf16>
    %370 = arith.truncf %339 : vector<8x128xf32> to vector<8x128xbf16>
    %371 = tpu.concatenate %369, %370 in 1 : vector<8x128xbf16>, vector<8x128xbf16> -> vector<8x256xbf16>
    %cst_63 = arith.constant dense<0.000000e+00> : vector<8x512xf32>
    %372 = tpu.matmul %371, %1, %cst_63 {dimension_numbers = #tpu.dot_dimension_numbers<[1], [0], [0], [1], [0, 0, 1, 1], [], []>} : vector<8x256xbf16>, vector<256x512xbf16>, vector<8x512xf32> -> vector<8x512xf32>
    %373 = arith.addf %372, %11 : vector<8x512xf32>
    %374 = vector.extract_strided_slice %373 {offsets = [0, 0], sizes = [8, 128], strides = [1, 1]} : vector<8x512xf32> to vector<8x128xf32>
    %375 = arith.negf %374 : vector<8x128xf32>
    %376 = math.exp %375 : vector<8x128xf32>
    %cst_64 = arith.constant 1.000000e+00 : f32
    %377 = vector.broadcast %cst_64 : f32 to vector<8x128xf32>
    %378 = arith.addf %377, %376 : vector<8x128xf32>
    %379 = arith.divf %377, %378 : vector<8x128xf32>
    %380 = vector.extract_strided_slice %373 {offsets = [0, 128], sizes = [8, 128], strides = [1, 1]} : vector<8x512xf32> to vector<8x128xf32>
    %381 = arith.negf %380 : vector<8x128xf32>
    %382 = math.exp %381 : vector<8x128xf32>
    %cst_65 = arith.constant 1.000000e+00 : f32
    %383 = vector.broadcast %cst_65 : f32 to vector<8x128xf32>
    %384 = arith.addf %383, %382 : vector<8x128xf32>
    %385 = arith.divf %383, %384 : vector<8x128xf32>
    %386 = vector.extract_strided_slice %373 {offsets = [0, 256], sizes = [8, 128], strides = [1, 1]} : vector<8x512xf32> to vector<8x128xf32>
    %387 = math.tanh %386 : vector<8x128xf32>
    %388 = vector.extract_strided_slice %373 {offsets = [0, 384], sizes = [8, 128], strides = [1, 1]} : vector<8x512xf32> to vector<8x128xf32>
    %389 = arith.negf %388 : vector<8x128xf32>
    %390 = math.exp %389 : vector<8x128xf32>
    %cst_66 = arith.constant 1.000000e+00 : f32
    %391 = vector.broadcast %cst_66 : f32 to vector<8x128xf32>
    %392 = arith.addf %391, %390 : vector<8x128xf32>
    %393 = arith.divf %391, %392 : vector<8x128xf32>
    %394 = arith.mulf %385, %337 : vector<8x128xf32>
    %395 = arith.mulf %379, %387 : vector<8x128xf32>
    %396 = arith.addf %394, %395 : vector<8x128xf32>
    %397 = math.tanh %396 : vector<8x128xf32>
    %398 = arith.mulf %393, %397 : vector<8x128xf32>
    %399 = vector.extract_strided_slice %8 {offsets = [56, 0], sizes = [8, 512], strides = [1, 1]} : vector<64x512xf32> to vector<8x512xf32>
    %400 = arith.truncf %368 : vector<8x128xf32> to vector<8x128xbf16>
    %cst_67 = arith.constant dense<0.000000e+00> : vector<8x512xf32>
    %401 = tpu.matmul %400, %0, %cst_67 {dimension_numbers = #tpu.dot_dimension_numbers<[1], [0], [0], [1], [0, 0, 1, 1], [], []>} : vector<8x128xbf16>, vector<128x512xbf16>, vector<8x512xf32> -> vector<8x512xf32>
    %402 = arith.addf %399, %401 : vector<8x512xf32>
    %403 = vector.extract_strided_slice %402 {offsets = [0, 0], sizes = [8, 128], strides = [1, 1]} : vector<8x512xf32> to vector<8x128xf32>
    %404 = arith.negf %403 : vector<8x128xf32>
    %405 = math.exp %404 : vector<8x128xf32>
    %cst_68 = arith.constant 1.000000e+00 : f32
    %406 = vector.broadcast %cst_68 : f32 to vector<8x128xf32>
    %407 = arith.addf %406, %405 : vector<8x128xf32>
    %408 = arith.divf %406, %407 : vector<8x128xf32>
    %409 = vector.extract_strided_slice %402 {offsets = [0, 128], sizes = [8, 128], strides = [1, 1]} : vector<8x512xf32> to vector<8x128xf32>
    %410 = arith.negf %409 : vector<8x128xf32>
    %411 = math.exp %410 : vector<8x128xf32>
    %cst_69 = arith.constant 1.000000e+00 : f32
    %412 = vector.broadcast %cst_69 : f32 to vector<8x128xf32>
    %413 = arith.addf %412, %411 : vector<8x128xf32>
    %414 = arith.divf %412, %413 : vector<8x128xf32>
    %415 = vector.extract_strided_slice %402 {offsets = [0, 256], sizes = [8, 128], strides = [1, 1]} : vector<8x512xf32> to vector<8x128xf32>
    %416 = math.tanh %415 : vector<8x128xf32>
    %417 = vector.extract_strided_slice %402 {offsets = [0, 384], sizes = [8, 128], strides = [1, 1]} : vector<8x512xf32> to vector<8x128xf32>
    %418 = arith.negf %417 : vector<8x128xf32>
    %419 = math.exp %418 : vector<8x128xf32>
    %cst_70 = arith.constant 1.000000e+00 : f32
    %420 = vector.broadcast %cst_70 : f32 to vector<8x128xf32>
    %421 = arith.addf %420, %419 : vector<8x128xf32>
    %422 = arith.divf %420, %421 : vector<8x128xf32>
    %423 = arith.mulf %414, %366 : vector<8x128xf32>
    %424 = arith.mulf %408, %416 : vector<8x128xf32>
    %425 = arith.addf %423, %424 : vector<8x128xf32>
    %426 = math.tanh %425 : vector<8x128xf32>
    %427 = arith.mulf %422, %426 : vector<8x128xf32>
    %428 = arith.truncf %368 : vector<8x128xf32> to vector<8x128xbf16>
    %429 = arith.truncf %398 : vector<8x128xf32> to vector<8x128xbf16>
    %430 = tpu.concatenate %428, %429 in 1 : vector<8x128xbf16>, vector<8x128xbf16> -> vector<8x256xbf16>
    %cst_71 = arith.constant dense<0.000000e+00> : vector<8x512xf32>
    %431 = tpu.matmul %430, %1, %cst_71 {dimension_numbers = #tpu.dot_dimension_numbers<[1], [0], [0], [1], [0, 0, 1, 1], [], []>} : vector<8x256xbf16>, vector<256x512xbf16>, vector<8x512xf32> -> vector<8x512xf32>
    %432 = arith.addf %431, %11 : vector<8x512xf32>
    %433 = vector.extract_strided_slice %432 {offsets = [0, 0], sizes = [8, 128], strides = [1, 1]} : vector<8x512xf32> to vector<8x128xf32>
    %434 = arith.negf %433 : vector<8x128xf32>
    %435 = math.exp %434 : vector<8x128xf32>
    %cst_72 = arith.constant 1.000000e+00 : f32
    %436 = vector.broadcast %cst_72 : f32 to vector<8x128xf32>
    %437 = arith.addf %436, %435 : vector<8x128xf32>
    %438 = arith.divf %436, %437 : vector<8x128xf32>
    %439 = vector.extract_strided_slice %432 {offsets = [0, 128], sizes = [8, 128], strides = [1, 1]} : vector<8x512xf32> to vector<8x128xf32>
    %440 = arith.negf %439 : vector<8x128xf32>
    %441 = math.exp %440 : vector<8x128xf32>
    %cst_73 = arith.constant 1.000000e+00 : f32
    %442 = vector.broadcast %cst_73 : f32 to vector<8x128xf32>
    %443 = arith.addf %442, %441 : vector<8x128xf32>
    %444 = arith.divf %442, %443 : vector<8x128xf32>
    %445 = vector.extract_strided_slice %432 {offsets = [0, 256], sizes = [8, 128], strides = [1, 1]} : vector<8x512xf32> to vector<8x128xf32>
    %446 = math.tanh %445 : vector<8x128xf32>
    %447 = vector.extract_strided_slice %432 {offsets = [0, 384], sizes = [8, 128], strides = [1, 1]} : vector<8x512xf32> to vector<8x128xf32>
    %448 = arith.negf %447 : vector<8x128xf32>
    %449 = math.exp %448 : vector<8x128xf32>
    %cst_74 = arith.constant 1.000000e+00 : f32
    %450 = vector.broadcast %cst_74 : f32 to vector<8x128xf32>
    %451 = arith.addf %450, %449 : vector<8x128xf32>
    %452 = arith.divf %450, %451 : vector<8x128xf32>
    %453 = arith.mulf %444, %396 : vector<8x128xf32>
    %454 = arith.mulf %438, %446 : vector<8x128xf32>
    %455 = arith.addf %453, %454 : vector<8x128xf32>
    %456 = math.tanh %455 : vector<8x128xf32>
    %457 = arith.mulf %452, %456 : vector<8x128xf32>
    %458 = arith.truncf %427 : vector<8x128xf32> to vector<8x128xbf16>
    %459 = arith.truncf %457 : vector<8x128xf32> to vector<8x128xbf16>
    %460 = tpu.concatenate %458, %459 in 1 : vector<8x128xbf16>, vector<8x128xbf16> -> vector<8x256xbf16>
    %cst_75 = arith.constant dense<0.000000e+00> : vector<8x512xf32>
    %461 = tpu.matmul %460, %1, %cst_75 {dimension_numbers = #tpu.dot_dimension_numbers<[1], [0], [0], [1], [0, 0, 1, 1], [], []>} : vector<8x256xbf16>, vector<256x512xbf16>, vector<8x512xf32> -> vector<8x512xf32>
    %462 = arith.addf %461, %11 : vector<8x512xf32>
    %463 = vector.extract_strided_slice %462 {offsets = [0, 0], sizes = [8, 128], strides = [1, 1]} : vector<8x512xf32> to vector<8x128xf32>
    %464 = arith.negf %463 : vector<8x128xf32>
    %465 = math.exp %464 : vector<8x128xf32>
    %cst_76 = arith.constant 1.000000e+00 : f32
    %466 = vector.broadcast %cst_76 : f32 to vector<8x128xf32>
    %467 = arith.addf %466, %465 : vector<8x128xf32>
    %468 = arith.divf %466, %467 : vector<8x128xf32>
    %469 = vector.extract_strided_slice %462 {offsets = [0, 128], sizes = [8, 128], strides = [1, 1]} : vector<8x512xf32> to vector<8x128xf32>
    %470 = arith.negf %469 : vector<8x128xf32>
    %471 = math.exp %470 : vector<8x128xf32>
    %cst_77 = arith.constant 1.000000e+00 : f32
    %472 = vector.broadcast %cst_77 : f32 to vector<8x128xf32>
    %473 = arith.addf %472, %471 : vector<8x128xf32>
    %474 = arith.divf %472, %473 : vector<8x128xf32>
    %475 = vector.extract_strided_slice %462 {offsets = [0, 256], sizes = [8, 128], strides = [1, 1]} : vector<8x512xf32> to vector<8x128xf32>
    %476 = math.tanh %475 : vector<8x128xf32>
    %477 = vector.extract_strided_slice %462 {offsets = [0, 384], sizes = [8, 128], strides = [1, 1]} : vector<8x512xf32> to vector<8x128xf32>
    %478 = arith.negf %477 : vector<8x128xf32>
    %479 = math.exp %478 : vector<8x128xf32>
    %cst_78 = arith.constant 1.000000e+00 : f32
    %480 = vector.broadcast %cst_78 : f32 to vector<8x128xf32>
    %481 = arith.addf %480, %479 : vector<8x128xf32>
    %482 = arith.divf %480, %481 : vector<8x128xf32>
    %483 = arith.mulf %474, %455 : vector<8x128xf32>
    %484 = arith.mulf %468, %476 : vector<8x128xf32>
    %485 = arith.addf %483, %484 : vector<8x128xf32>
    %486 = math.tanh %485 : vector<8x128xf32>
    %487 = arith.mulf %482, %486 : vector<8x128xf32>
    %488 = arith.truncf %487 : vector<8x128xf32> to vector<8x128xbf16>
    %c0_79 = arith.constant 0 : index
    %c0_80 = arith.constant 0 : index
    %489 = vector.load %arg6[%c0_79, %c0_80] : memref<128x5xbf16, #tpu.memory_space<vmem>>, vector<128x5xbf16>
    %cst_81 = arith.constant dense<0.000000e+00> : vector<8x5xf32>
    %490 = tpu.matmul %488, %489, %cst_81 {dimension_numbers = #tpu.dot_dimension_numbers<[1], [0], [0], [1], [0, 0, 1, 1], [], []>} : vector<8x128xbf16>, vector<128x5xbf16>, vector<8x5xf32> -> vector<8x5xf32>
    %c0_82 = arith.constant 0 : index
    %c0_83 = arith.constant 0 : index
    %491 = vector.load %arg7[%c0_82, %c0_83] : memref<1x5xf32, #tpu.memory_space<vmem>>, vector<1x5xf32>
    %492 = vector.broadcast %491 : vector<1x5xf32> to vector<8x5xf32>
    %493 = arith.addf %490, %492 : vector<8x5xf32>
    %c0_84 = arith.constant 0 : index
    %c0_85 = arith.constant 0 : index
    %494 = vector.load %arg8[%c0_84, %c0_85] : memref<8x5xf32, #tpu.memory_space<vmem>>, vector<8x5xf32>
    tpu.vector_store %arg8[%c0_84, %c0_85], %493 {strides = array<i32>} : memref<8x5xf32, #tpu.memory_space<vmem>>, vector<8x5xf32>,
    return
  }
}

</mosaic_0001>

<llo_original>
// kernel: lstm_model_forward.1
$region0: #{lstm_model_forward.1}
  #allocation0 [shape = 'u32[]', space=smem, size = 0x4, offset = 0x4, fixed_abs, tag = 'smem constant byte address 0x4 - core index']
  #allocation1 [shape = 'u32[144,128]{1,0:T(1,128)}', space=vmem, size = 0x12000, scoped, tag = 'internal scratch']
  %s0 = inlined_call_operand.vmem [shape: f32[64,6], index: 0, kind: input, shape index: {}]
  %s1 = inlined_call_operand.hbm [shape: bf16[6,512], index: 1, kind: input, shape index: {}]
  %s2 = inlined_call_operand.vmem [shape: bf16[128,512], index: 2, kind: input, shape index: {}]
  %s3 = inlined_call_operand.vmem [shape: f32[1,512], index: 3, kind: input, shape index: {}]
  %s4 = inlined_call_operand.hbm [shape: bf16[256,512], index: 4, kind: input, shape index: {}]
  %s5 = inlined_call_operand.vmem [shape: f32[1,512], index: 5, kind: input, shape index: {}]
  %s6 = inlined_call_operand.vmem [shape: bf16[128,5], index: 6, kind: input, shape index: {}]
  %s7 = inlined_call_operand.vmem [shape: f32[1,5], index: 7, kind: input, shape index: {}]
  %s8 = inlined_call_operand.vmem [shape: f32[8,5], index: 8, kind: output, shape index: {}]
  %s9 = sld [smem:[#allocation0]]
  $region50: #{lstm_model_forward.1} parent=0
    _
  %s11 = ssub.s32 1, %s9
  %s12 = scalar_select 0, %s11, %s9
  $region1: #{lstm_model_forward.1} parent=0
    #allocation2 [shape = 'u8[8192]{0}', space=vmem, size = 0x2000, scoped, tag = 'input window, operand 1, single buffered']
    #allocation3 [shape = 's32[1]{0}', space=sflag, size = 0x4, scoped, tag = 'scoped memory for lstm_model_forward.1']
    #allocation4 [shape = 'u8[262144]{0}', space=vmem, size = 0x40000, scoped, tag = 'input window, operand 4, single buffered']
    #allocation5 [shape = 's32[1]{0}', space=sflag, size = 0x4, scoped, tag = 'scoped memory for lstm_model_forward.1']
    %13 = vsyncpa [#allocation3], 0
    %14 = vsyncpa [#allocation5], 0
    // Predicated region
    $region2: #{lstm_model_forward.1} parent=1 // pred_check
      _
    $region3: #{lstm_model_forward.1} parent=1 // pred_check_branch
      %16 = sbr.rel (0) target = $region5
    $region4: #{lstm_model_forward.1} parent=1 // pred_region
      _
    $region5: #{lstm_model_forward.1} parent=1 // pred_fallthru
      _
    // Predicated region
    $region6: #{lstm_model_forward.1} parent=1 // pred_check
      _
    $region7: #{lstm_model_forward.1} parent=1 // pred_check_branch
      %18 = sbr.rel (0) target = $region9
    $region8: #{lstm_model_forward.1} parent=1 // pred_region
      %s20 = ssub.s32 256, 256
      %21 = vsyncadd [#allocation3], %s20
      %s23 = sshll.u32 [#allocation2], 4
      %s24 = int_to_ptr.vmem [resolvable:$true] %s23
      %26 = dma.hbm_to_vmem [thread:$0]  %s1, 256, %s24, [#allocation3]
    $region9: #{lstm_model_forward.1} parent=1 // pred_fallthru
      _
    // Predicated region
    $region10: #{lstm_model_forward.1} parent=1 // pred_check
      _
    $region11: #{lstm_model_forward.1} parent=1 // pred_check_branch
      %28 = sbr.rel (0) target = $region13
    $region12: #{lstm_model_forward.1} parent=1 // pred_region
      _
    $region13: #{lstm_model_forward.1} parent=1 // pred_fallthru
      _
    // Predicated region
    $region14: #{lstm_model_forward.1} parent=1 // pred_check
      _
    $region15: #{lstm_model_forward.1} parent=1 // pred_check_branch
      %30 = sbr.rel (0) target = $region17
    $region16: #{lstm_model_forward.1} parent=1 // pred_region
      _
    $region17: #{lstm_model_forward.1} parent=1 // pred_fallthru
      _
    // Predicated region
    $region18: #{lstm_model_forward.1} parent=1 // pred_check
      _
    $region19: #{lstm_model_forward.1} parent=1 // pred_check_branch
      %32 = sbr.rel (0) target = $region21
    $region20: #{lstm_model_forward.1} parent=1 // pred_region
      %s34 = ssub.s32 8192, 8192
      %35 = vsyncadd [#allocation5], %s34
      %s36 = sshll.u32 [#allocation4], 4
      %s37 = int_to_ptr.vmem [resolvable:$true] %s36
      %42 = dma.hbm_to_vmem [thread:$0]  %s4, 8192, %s37, [#allocation5], 256, 256, 16
    $region21: #{lstm_model_forward.1} parent=1 // pred_fallthru
      _
    // Predicated region
    $region22: #{lstm_model_forward.1} parent=1 // pred_check
      _
    $region23: #{lstm_model_forward.1} parent=1 // pred_check_branch
      %44 = sbr.rel (0) target = $region25
    $region24: #{lstm_model_forward.1} parent=1 // pred_region
      _
    $region25: #{lstm_model_forward.1} parent=1 // pred_fallthru
      _
    // Predicated region
    $region26: #{lstm_model_forward.1} parent=1 // pred_check
      _
    $region27: #{lstm_model_forward.1} parent=1 // pred_check_branch
      %46 = sbr.rel (0) target = $region29
    $region28: #{lstm_model_forward.1} parent=1 // pred_region
      _
    $region29: #{lstm_model_forward.1} parent=1 // pred_fallthru
      _
    // Predicated region
    $region30: #{lstm_model_forward.1} parent=1 // pred_check
      _
    $region31: #{lstm_model_forward.1} parent=1 // pred_check_branch
      %48 = sbr.rel (0) target = $region33
    $region32: #{lstm_model_forward.1} parent=1 // pred_region
      _
    $region33: #{lstm_model_forward.1} parent=1 // pred_fallthru
      _
    // Predicated region
    $region34: #{lstm_model_forward.1} parent=1 // pred_check
      _
    $region35: #{lstm_model_forward.1} parent=1 // pred_check_branch
      %50 = sbr.rel (0) target = $region37
    $region36: #{lstm_model_forward.1} parent=1 // pred_region
      %51 = dma.done [#allocation3], 256
    $region37: #{lstm_model_forward.1} parent=1 // pred_fallthru
      _
    // Predicated region
    $region38: #{lstm_model_forward.1} parent=1 // pred_check
      _
    $region39: #{lstm_model_forward.1} parent=1 // pred_check_branch
      %53 = sbr.rel (0) target = $region41
    $region40: #{lstm_model_forward.1} parent=1 // pred_region
      %54 = dma.done [#allocation5], 8192
    $region41: #{lstm_model_forward.1} parent=1 // pred_fallthru
      _
    %v56 = vld [vmem:[%s2] sm:$0xff]
    %v57 = vld [vmem:[%s2 + $0x8] sm:$0xff]
    %v58 = vld [vmem:[%s2 + $0x10] sm:$0xff]
    %v59 = vld [vmem:[%s2 + $0x18] sm:$0xff]
    %v60 = vld [vmem:[%s2 + $0x20] sm:$0xff]
    %v61 = vld [vmem:[%s2 + $0x28] sm:$0xff]
    %v62 = vld [vmem:[%s2 + $0x30] sm:$0xff]
    %v63 = vld [vmem:[%s2 + $0x38] sm:$0xff]
    %v64 = vld [vmem:[%s2 + $0x40] sm:$0xff]
    %v65 = vld [vmem:[%s2 + $0x48] sm:$0xff]
    %v66 = vld [vmem:[%s2 + $0x50] sm:$0xff]
    %v67 = vld [vmem:[%s2 + $0x58] sm:$0xff]
    %v68 = vld [vmem:[%s2 + $0x60] sm:$0xff]
    %v69 = vld [vmem:[%s2 + $0x68] sm:$0xff]
    %v70 = vld [vmem:[%s2 + $0x70] sm:$0xff]
    %v71 = vld [vmem:[%s2 + $0x78] sm:$0xff]
    %v72 = vld [vmem:[%s2 + $0x80] sm:$0xff]
    %v73 = vld [vmem:[%s2 + $0x88] sm:$0xff]
    %v74 = vld [vmem:[%s2 + $0x90] sm:$0xff]
    %v75 = vld [vmem:[%s2 + $0x98] sm:$0xff]
    %v76 = vld [vmem:[%s2 + $0xa0] sm:$0xff]
    %v77 = vld [vmem:[%s2 + $0xa8] sm:$0xff]
    %v78 = vld [vmem:[%s2 + $0xb0] sm:$0xff]
    %v79 = vld [vmem:[%s2 + $0xb8] sm:$0xff]
    %v80 = vld [vmem:[%s2 + $0xc0] sm:$0xff]
    %v81 = vld [vmem:[%s2 + $0xc8] sm:$0xff]
    %v82 = vld [vmem:[%s2 + $0xd0] sm:$0xff]
    %v83 = vld [vmem:[%s2 + $0xd8] sm:$0xff]
    %v84 = vld [vmem:[%s2 + $0xe0] sm:$0xff]
    %v85 = vld [vmem:[%s2 + $0xe8] sm:$0xff]
    %v86 = vld [vmem:[%s2 + $0xf0] sm:$0xff]
    %v87 = vld [vmem:[%s2 + $0xf8] sm:$0xff]
    %v88 = vld [vmem:[#allocation4] sm:$0xff]
    %v89 = vld [vmem:[#allocation4 + $0x8] sm:$0xff]
    %v90 = vld [vmem:[#allocation4 + $0x10] sm:$0xff]
    %v91 = vld [vmem:[#allocation4 + $0x18] sm:$0xff]
    %v92 = vld [vmem:[#allocation4 + $0x20] sm:$0xff]
    %v93 = vld [vmem:[#allocation4 + $0x28] sm:$0xff]
    %v94 = vld [vmem:[#allocation4 + $0x30] sm:$0xff]
    %v95 = vld [vmem:[#allocation4 + $0x38] sm:$0xff]
    %v96 = vld [vmem:[#allocation4 + $0x40] sm:$0xff]
    %v97 = vld [vmem:[#allocation4 + $0x48] sm:$0xff]
    %v98 = vld [vmem:[#allocation4 + $0x50] sm:$0xff]
    %v99 = vld [vmem:[#allocation4 + $0x58] sm:$0xff]
    %v100 = vld [vmem:[#allocation4 + $0x60] sm:$0xff]
    %v101 = vld [vmem:[#allocation4 + $0x68] sm:$0xff]
    %v102 = vld [vmem:[#allocation4 + $0x70] sm:$0xff]
    %v103 = vld [vmem:[#allocation4 + $0x78] sm:$0xff]
    %v104 = vld [vmem:[#allocation4 + $0x80] sm:$0xff]
    %v105 = vld [vmem:[#allocation4 + $0x88] sm:$0xff]
    %v106 = vld [vmem:[#allocation4 + $0x90] sm:$0xff]
    %v107 = vld [vmem:[#allocation4 + $0x98] sm:$0xff]
    %v108 = vld [vmem:[#allocation4 + $0xa0] sm:$0xff]
    %v109 = vld [vmem:[#allocation4 + $0xa8] sm:$0xff]
    %v110 = vld [vmem:[#allocation4 + $0xb0] sm:$0xff]
    %v111 = vld [vmem:[#allocation4 + $0xb8] sm:$0xff]
    %v112 = vld [vmem:[#allocation4 + $0xc0] sm:$0xff]
    %v113 = vld [vmem:[#allocation4 + $0xc8] sm:$0xff]
    %v114 = vld [vmem:[#allocation4 + $0xd0] sm:$0xff]
    %v115 = vld [vmem:[#allocation4 + $0xd8] sm:$0xff]
    %v116 = vld [vmem:[#allocation4 + $0xe0] sm:$0xff]
    %v117 = vld [vmem:[#allocation4 + $0xe8] sm:$0xff]
    %v118 = vld [vmem:[#allocation4 + $0xf0] sm:$0xff]
    %v119 = vld [vmem:[#allocation4 + $0xf8] sm:$0xff]
    %v120 = vld [vmem:[#allocation4 + $0x100] sm:$0xff]
    %v121 = vld [vmem:[#allocation4 + $0x108] sm:$0xff]
    %v122 = vld [vmem:[#allocation4 + $0x110] sm:$0xff]
    %v123 = vld [vmem:[#allocation4 + $0x118] sm:$0xff]
    %v124 = vld [vmem:[#allocation4 + $0x120] sm:$0xff]
    %v125 = vld [vmem:[#allocation4 + $0x128] sm:$0xff]
    %v126 = vld [vmem:[#allocation4 + $0x130] sm:$0xff]
    %v127 = vld [vmem:[#allocation4 + $0x138] sm:$0xff]
    %v128 = vld [vmem:[#allocation4 + $0x140] sm:$0xff]
    %v129 = vld [vmem:[#allocation4 + $0x148] sm:$0xff]
    %v130 = vld [vmem:[#allocation4 + $0x150] sm:$0xff]
    %v131 = vld [vmem:[#allocation4 + $0x158] sm:$0xff]
    %v132 = vld [vmem:[#allocation4 + $0x160] sm:$0xff]
    %v133 = vld [vmem:[#allocation4 + $0x168] sm:$0xff]
    %v134 = vld [vmem:[#allocation4 + $0x170] sm:$0xff]
    %v135 = vld [vmem:[#allocation4 + $0x178] sm:$0xff]
    %v136 = vld [vmem:[#allocation4 + $0x180] sm:$0xff]
    %v137 = vld [vmem:[#allocation4 + $0x188] sm:$0xff]
    %v138 = vld [vmem:[#allocation4 + $0x190] sm:$0xff]
    %v139 = vld [vmem:[#allocation4 + $0x198] sm:$0xff]
    %v140 = vld [vmem:[#allocation4 + $0x1a0] sm:$0xff]
    %v141 = vld [vmem:[#allocation4 + $0x1a8] sm:$0xff]
    %v142 = vld [vmem:[#allocation4 + $0x1b0] sm:$0xff]
    %v143 = vld [vmem:[#allocation4 + $0x1b8] sm:$0xff]
    %v144 = vld [vmem:[#allocation4 + $0x1c0] sm:$0xff]
    %v145 = vld [vmem:[#allocation4 + $0x1c8] sm:$0xff]
    %v146 = vld [vmem:[#allocation4 + $0x1d0] sm:$0xff]
    %v147 = vld [vmem:[#allocation4 + $0x1d8] sm:$0xff]
    %v148 = vld [vmem:[#allocation4 + $0x1e0] sm:$0xff]
    %v149 = vld [vmem:[#allocation4 + $0x1e8] sm:$0xff]
    %v150 = vld [vmem:[#allocation4 + $0x1f0] sm:$0xff]
    %v151 = vld [vmem:[#allocation4 + $0x1f8] sm:$0xff]
    %v152 = vld [vmem:[%s0] sm:$0xff]
    %v153 = vld [vmem:[%s0 + $0x8] sm:$0xff]
    %v154 = vld [vmem:[%s0 + $0x10] sm:$0xff]
    %v155 = vld [vmem:[%s0 + $0x18] sm:$0xff]
    %v156 = vld [vmem:[%s0 + $0x20] sm:$0xff]
    %v157 = vld [vmem:[%s0 + $0x28] sm:$0xff]
    %v158 = vld [vmem:[%s0 + $0x30] sm:$0xff]
    %v159 = vld [vmem:[%s0 + $0x38] sm:$0xff]
    %v160 = vpack.c.bf16 %v153, %v152
    %v161 = vpack.c.bf16 %v155, %v154
    %v162 = vpack.c.bf16 %v157, %v156
    %v163 = vpack.c.bf16 %v159, %v158
    %v164 = vld [vmem:[#allocation2] sm:$0x77]
    %v165 = vld [vmem:[#allocation2 + $0x8] sm:$0x77]
    %v166 = vld [vmem:[%s3] sm:$0xf]
    %v168 = vlaneseq
    %v169 = vshrl.u32 %v168, 7
    %v170 = vsub.s32 0, %v169
    %v171 = vrot.slane %v166, %v170
    %v172 = vlaneseq
    %v173 = vshrl.u32 %v172, 7
    %v174 = vsub.s32 1, %v173
    %v175 = vrot.slane %v166, %v174
    %v176 = vlaneseq
    %v177 = vshrl.u32 %v176, 7
    %v178 = vsub.s32 2, %v177
    %v179 = vrot.slane %v166, %v178
    %v180 = vlaneseq
    %v181 = vshrl.u32 %v180, 7
    %v182 = vsub.s32 3, %v181
    %v183 = vrot.slane %v166, %v182
    %v190 = vunpack.c.l.b16 %v164
    %v191 = vunpack.c.h.b16 %v164
    %v192 = vunpack.c.l.b16 %v165
    %v193 = vunpack.c.h.b16 %v165
    %v194 = vpack.c.b16 %v190, %v190
    %v195 = vpack.c.b16 %v191, %v191
    %v196 = vpack.c.b16 %v192, %v192
    %v197 = vpack.c.b16 %v193, %v193
    %vm198 = vcmask 48128
    %v200 = vsel %vm198, %v160, 0
    %v203 = vsel %vm198, %v161, 0
    %v206 = vsel %vm198, %v162, 0
    %v209 = vsel %vm198, %v163, 0
    %vm211 = vcmask 1042432
    %v213 = vsel %vm211, %v194, 0
    %v216 = vsel %vm211, %v195, 0
    %v219 = vsel %vm211, %v196, 0
    %v222 = vsel %vm211, %v197, 0
    %224 = vmatprep.subr.bf16.mxu0 %v216
    %225 = vmatpush1.bf16.msra.mxu0 %v213
    %226 = vmatprep.subr.bf16.mxu0 0
    %227 = vmatpush1.bf16.msra.mxu0 0
    %228 = vmatprep.subr.bf16.mxu0 0
    %229 = vmatpush1.bf16.msra.mxu0 0
    %230 = vmatprep.subr.bf16.mxu0 0
    %231 = vmatpush1.bf16.msra.mxu0 0
    %232 = vmatprep.subr.bf16.mxu0 0
    %233 = vmatpush1.bf16.msra.mxu0 0
    %234 = vmatprep.subr.bf16.mxu0 0
    %235 = vmatpush1.bf16.msra.mxu0 0
    %236 = vmatprep.subr.bf16.mxu0 0
    %237 = vmatpush1.bf16.msra.mxu0 0
    %238 = vmatprep.subr.bf16.mxu0 0
    %239 = vmatpush1.bf16.msra.mxu0 0
    %240 = vmatprep.subr.bf16.mxu0 0
    %241 = vmatpush1.bf16.msra.mxu0 0
    %242 = vmatprep.subr.bf16.mxu0 0
    %243 = vmatpush1.bf16.msra.mxu0 0
    %244 = vmatprep.subr.bf16.mxu0 0
    %245 = vmatpush1.bf16.msra.mxu0 0
    %246 = vmatprep.subr.bf16.mxu0 0
    %247 = vmatpush1.bf16.msra.mxu0 0
    %248 = vmatprep.subr.bf16.mxu0 0
    %249 = vmatpush1.bf16.msra.mxu0 0
    %250 = vmatprep.subr.bf16.mxu0 0
    %251 = vmatpush1.bf16.msra.mxu0 0
    %252 = vmatprep.subr.bf16.mxu0 0
    %253 = vmatpush1.bf16.msra.mxu0 0
    %254 = vmatprep.subr.bf16.mxu0 0
    %255 = vmatpush1.bf16.msra.mxu0 0
    %256 = vmatprep.mubr.bf16.mxu0 0
    %257 = vmatmul.mubr.bf16.gmra.mrb[0].mxu0 %v200
    %v258 = vpop.f32.mrb[0].mxu0
    %v259 = vadd.f32 %v171, %v258
    %v260 = vpop.f32.mrb[0].mxu0
    %v261 = vadd.f32 %v175, %v260
    %v262 = vpop.f32.mrb[0].mxu0
    %v263 = vadd.f32 %v171, %v262
    %v264 = vpop.f32.mrb[0].mxu0
    %v265 = vadd.f32 %v175, %v264
    %266 = vmatprep.mubr.bf16.mxu0 0
    %267 = vmatmul.mubr.bf16.gmra.mrb[0].mxu0 %v203
    %v268 = vpop.f32.mrb[0].mxu0
    %v269 = vadd.f32 %v171, %v268
    %v270 = vpop.f32.mrb[0].mxu0
    %v271 = vadd.f32 %v175, %v270
    %v272 = vpop.f32.mrb[0].mxu0
    %v273 = vadd.f32 %v171, %v272
    %v274 = vpop.f32.mrb[0].mxu0
    %v275 = vadd.f32 %v175, %v274
    %276 = vmatprep.mubr.bf16.mxu0 0
    %277 = vmatmul.mubr.bf16.gmra.mrb[0].mxu0 %v206
    %v278 = vpop.f32.mrb[0].mxu0
    %v279 = vadd.f32 %v171, %v278
    %v280 = vpop.f32.mrb[0].mxu0
    %v281 = vadd.f32 %v175, %v280
    %v282 = vpop.f32.mrb[0].mxu0
    %v283 = vadd.f32 %v171, %v282
    %v284 = vpop.f32.mrb[0].mxu0
    %v285 = vadd.f32 %v175, %v284
    %286 = vmatprep.mubr.bf16.mxu0 0
    %287 = vmatmul.mubr.bf16.gmra.mrb[0].mxu0 %v209
    %v288 = vpop.f32.mrb[0].mxu0
    %v289 = vadd.f32 %v171, %v288
    %v290 = vpop.f32.mrb[0].mxu0
    %v291 = vadd.f32 %v175, %v290
    %v292 = vpop.f32.mrb[0].mxu0
    %v293 = vadd.f32 %v171, %v292
    %v294 = vpop.f32.mrb[0].mxu0
    %v295 = vadd.f32 %v175, %v294
    %296 = vdwg.mxu0
    %297 = vmatprep.subr.bf16.mxu0 %v222
    %298 = vmatpush1.bf16.msra.mxu0 %v219
    %299 = vmatprep.subr.bf16.mxu0 0
    %300 = vmatpush1.bf16.msra.mxu0 0
    %301 = vmatprep.subr.bf16.mxu0 0
    %302 = vmatpush1.bf16.msra.mxu0 0
    %303 = vmatprep.subr.bf16.mxu0 0
    %304 = vmatpush1.bf16.msra.mxu0 0
    %305 = vmatprep.subr.bf16.mxu0 0
    %306 = vmatpush1.bf16.msra.mxu0 0
    %307 = vmatprep.subr.bf16.mxu0 0
    %308 = vmatpush1.bf16.msra.mxu0 0
    %309 = vmatprep.subr.bf16.mxu0 0
    %310 = vmatpush1.bf16.msra.mxu0 0
    %311 = vmatprep.subr.bf16.mxu0 0
    %312 = vmatpush1.bf16.msra.mxu0 0
    %313 = vmatprep.subr.bf16.mxu0 0
    %314 = vmatpush1.bf16.msra.mxu0 0
    %315 = vmatprep.subr.bf16.mxu0 0
    %316 = vmatpush1.bf16.msra.mxu0 0
    %317 = vmatprep.subr.bf16.mxu0 0
    %318 = vmatpush1.bf16.msra.mxu0 0
    %319 = vmatprep.subr.bf16.mxu0 0
    %320 = vmatpush1.bf16.msra.mxu0 0
    %321 = vmatprep.subr.bf16.mxu0 0
    %322 = vmatpush1.bf16.msra.mxu0 0
    %323 = vmatprep.subr.bf16.mxu0 0
    %324 = vmatpush1.bf16.msra.mxu0 0
    %325 = vmatprep.subr.bf16.mxu0 0
    %326 = vmatpush1.bf16.msra.mxu0 0
    %327 = vmatprep.subr.bf16.mxu0 0
    %328 = vmatpush1.bf16.msra.mxu0 0
    %329 = vmatprep.mubr.bf16.mxu0 0
    %330 = vmatmul.mubr.bf16.gmra.mrb[0].mxu0 %v200
    %v331 = vpop.f32.mrb[0].mxu0
    %v332 = vadd.f32 %v179, %v331
    %v333 = vpop.f32.mrb[0].mxu0
    %v334 = vadd.f32 %v183, %v333
    %v335 = vpop.f32.mrb[0].mxu0
    %v336 = vadd.f32 %v179, %v335
    %v337 = vpop.f32.mrb[0].mxu0
    %v338 = vadd.f32 %v183, %v337
    %339 = vmatprep.mubr.bf16.mxu0 0
    %340 = vmatmul.mubr.bf16.gmra.mrb[0].mxu0 %v203
    %v341 = vpop.f32.mrb[0].mxu0
    %v342 = vadd.f32 %v179, %v341
    %v343 = vpop.f32.mrb[0].mxu0
    %v344 = vadd.f32 %v183, %v343
    %v345 = vpop.f32.mrb[0].mxu0
    %v346 = vadd.f32 %v179, %v345
    %v347 = vpop.f32.mrb[0].mxu0
    %v348 = vadd.f32 %v183, %v347
    %349 = vmatprep.mubr.bf16.mxu0 0
    %350 = vmatmul.mubr.bf16.gmra.mrb[0].mxu0 %v206
    %v351 = vpop.f32.mrb[0].mxu0
    %v352 = vadd.f32 %v179, %v351
    %v353 = vpop.f32.mrb[0].mxu0
    %v354 = vadd.f32 %v183, %v353
    %v355 = vpop.f32.mrb[0].mxu0
    %v356 = vadd.f32 %v179, %v355
    %v357 = vpop.f32.mrb[0].mxu0
    %v358 = vadd.f32 %v183, %v357
    %359 = vmatprep.mubr.bf16.mxu0 0
    %360 = vmatmul.mubr.bf16.gmra.mrb[0].mxu0 %v209
    %v361 = vpop.f32.mrb[0].mxu0
    %v362 = vadd.f32 %v179, %v361
    %v363 = vpop.f32.mrb[0].mxu0
    %v364 = vadd.f32 %v183, %v363
    %v365 = vpop.f32.mrb[0].mxu0
    %v366 = vadd.f32 %v179, %v365
    %v367 = vpop.f32.mrb[0].mxu0
    %v368 = vadd.f32 %v183, %v367
    %369 = vdwg.mxu0
    %v370 = vld [vmem:[%s5] sm:$0xf]
    %v372 = vlaneseq
    %v373 = vshrl.u32 %v372, 7
    %v374 = vsub.s32 0, %v373
    %v375 = vrot.slane %v370, %v374
    %v376 = vlaneseq
    %v377 = vshrl.u32 %v376, 7
    %v378 = vsub.s32 1, %v377
    %v379 = vrot.slane %v370, %v378
    %v380 = vlaneseq
    %v381 = vshrl.u32 %v380, 7
    %v382 = vsub.s32 2, %v381
    %v383 = vrot.slane %v370, %v382
    %v384 = vlaneseq
    %v385 = vshrl.u32 %v384, 7
    %v386 = vsub.s32 3, %v385
    %v387 = vrot.slane %v370, %v386
    %v424 = vunpack.c.l.b16 %v56
    %v425 = vunpack.c.h.b16 %v56
    %v426 = vunpack.c.l.b16 %v57
    %v427 = vunpack.c.h.b16 %v57
    %v428 = vunpack.c.l.b16 %v58
    %v429 = vunpack.c.h.b16 %v58
    %v430 = vunpack.c.l.b16 %v59
    %v431 = vunpack.c.h.b16 %v59
    %v432 = vunpack.c.l.b16 %v60
    %v433 = vunpack.c.h.b16 %v60
    %v434 = vunpack.c.l.b16 %v61
    %v435 = vunpack.c.h.b16 %v61
    %v436 = vunpack.c.l.b16 %v62
    %v437 = vunpack.c.h.b16 %v62
    %v438 = vunpack.c.l.b16 %v63
    %v439 = vunpack.c.h.b16 %v63
    %v440 = vunpack.c.l.b16 %v64
    %v441 = vunpack.c.h.b16 %v64
    %v442 = vunpack.c.l.b16 %v65
    %v443 = vunpack.c.h.b16 %v65
    %v444 = vunpack.c.l.b16 %v66
    %v445 = vunpack.c.h.b16 %v66
    %v446 = vunpack.c.l.b16 %v67
    %v447 = vunpack.c.h.b16 %v67
    %v448 = vunpack.c.l.b16 %v68
    %v449 = vunpack.c.h.b16 %v68
    %v450 = vunpack.c.l.b16 %v69
    %v451 = vunpack.c.h.b16 %v69
    %v452 = vunpack.c.l.b16 %v70
    %v453 = vunpack.c.h.b16 %v70
    %v454 = vunpack.c.l.b16 %v71
    %v455 = vunpack.c.h.b16 %v71
    %v456 = vunpack.c.l.b16 %v72
    %v457 = vunpack.c.h.b16 %v72
    %v458 = vunpack.c.l.b16 %v73
    %v459 = vunpack.c.h.b16 %v73
    %v460 = vunpack.c.l.b16 %v74
    %v461 = vunpack.c.h.b16 %v74
    %v462 = vunpack.c.l.b16 %v75
    %v463 = vunpack.c.h.b16 %v75
    %v464 = vunpack.c.l.b16 %v76
    %v465 = vunpack.c.h.b16 %v76
    %v466 = vunpack.c.l.b16 %v77
    %v467 = vunpack.c.h.b16 %v77
    %v468 = vunpack.c.l.b16 %v78
    %v469 = vunpack.c.h.b16 %v78
    %v470 = vunpack.c.l.b16 %v79
    %v471 = vunpack.c.h.b16 %v79
    %v472 = vunpack.c.l.b16 %v80
    %v473 = vunpack.c.h.b16 %v80
    %v474 = vunpack.c.l.b16 %v81
    %v475 = vunpack.c.h.b16 %v81
    %v476 = vunpack.c.l.b16 %v82
    %v477 = vunpack.c.h.b16 %v82
    %v478 = vunpack.c.l.b16 %v83
    %v479 = vunpack.c.h.b16 %v83
    %v480 = vunpack.c.l.b16 %v84
    %v481 = vunpack.c.h.b16 %v84
    %v482 = vunpack.c.l.b16 %v85
    %v483 = vunpack.c.h.b16 %v85
    %v484 = vunpack.c.l.b16 %v86
    %v485 = vunpack.c.h.b16 %v86
    %v486 = vunpack.c.l.b16 %v87
    %v487 = vunpack.c.h.b16 %v87
    %v488 = vpack.c.b16 %v428, %v424
    %v489 = vpack.c.b16 %v429, %v425
    %v490 = vpack.c.b16 %v430, %v426
    %v491 = vpack.c.b16 %v431, %v427
    %v492 = vpack.c.b16 %v436, %v432
    %v493 = vpack.c.b16 %v437, %v433
    %v494 = vpack.c.b16 %v438, %v434
    %v495 = vpack.c.b16 %v439, %v435
    %v496 = vpack.c.b16 %v444, %v440
    %v497 = vpack.c.b16 %v445, %v441
    %v498 = vpack.c.b16 %v446, %v442
    %v499 = vpack.c.b16 %v447, %v443
    %v500 = vpack.c.b16 %v452, %v448
    %v501 = vpack.c.b16 %v453, %v449
    %v502 = vpack.c.b16 %v454, %v450
    %v503 = vpack.c.b16 %v455, %v451
    %v504 = vpack.c.b16 %v460, %v456
    %v505 = vpack.c.b16 %v461, %v457
    %v506 = vpack.c.b16 %v462, %v458
    %v507 = vpack.c.b16 %v463, %v459
    %v508 = vpack.c.b16 %v468, %v464
    %v509 = vpack.c.b16 %v469, %v465
    %v510 = vpack.c.b16 %v470, %v466
    %v511 = vpack.c.b16 %v471, %v467
    %v512 = vpack.c.b16 %v476, %v472
    %v513 = vpack.c.b16 %v477, %v473
    %v514 = vpack.c.b16 %v478, %v474
    %v515 = vpack.c.b16 %v479, %v475
    %v516 = vpack.c.b16 %v484, %v480
    %v517 = vpack.c.b16 %v485, %v481
    %v518 = vpack.c.b16 %v486, %v482
    %v519 = vpack.c.b16 %v487, %v483
    %552 = vmatprep.subr.bf16.mxu0 %v489
    %553 = vmatpush1.bf16.msra.mxu0 %v488
    %554 = vmatprep.subr.bf16.mxu0 %v493
    %555 = vmatpush1.bf16.msra.mxu0 %v492
    %556 = vmatprep.subr.bf16.mxu0 %v497
    %557 = vmatpush1.bf16.msra.mxu0 %v496
    %558 = vmatprep.subr.bf16.mxu0 %v501
    %559 = vmatpush1.bf16.msra.mxu0 %v500
    %560 = vmatprep.subr.bf16.mxu0 %v505
    %561 = vmatpush1.bf16.msra.mxu0 %v504
    %562 = vmatprep.subr.bf16.mxu0 %v509
    %563 = vmatpush1.bf16.msra.mxu0 %v508
    %564 = vmatprep.subr.bf16.mxu0 %v513
    %565 = vmatpush1.bf16.msra.mxu0 %v512
    %566 = vmatprep.subr.bf16.mxu0 %v517
    %567 = vmatpush1.bf16.msra.mxu0 %v516
    %568 = vmatprep.subr.bf16.mxu0 0
    %569 = vmatpush1.bf16.msra.mxu0 0
    %570 = vmatprep.subr.bf16.mxu0 0
    %571 = vmatpush1.bf16.msra.mxu0 0
    %572 = vmatprep.subr.bf16.mxu0 0
    %573 = vmatpush1.bf16.msra.mxu0 0
    %574 = vmatprep.subr.bf16.mxu0 0
    %575 = vmatpush1.bf16.msra.mxu0 0
    %576 = vmatprep.subr.bf16.mxu0 0
    %577 = vmatpush1.bf16.msra.mxu0 0
    %578 = vmatprep.subr.bf16.mxu0 0
    %579 = vmatpush1.bf16.msra.mxu0 0
    %580 = vmatprep.subr.bf16.mxu0 0
    %581 = vmatpush1.bf16.msra.mxu0 0
    %582 = vmatprep.subr.bf16.mxu0 0
    %583 = vmatpush1.bf16.msra.mxu0 0
    %584 = vmatprep.mubr.bf16.mxu0 0
    %585 = vmatmul.mubr.bf16.gmra.mrb[0].mxu0 0
    %v586 = vpop.f32.mrb[0].mxu0
    %v587 = vadd.f32 0.0, %v586
    %v588 = vpop.f32.mrb[0].mxu0
    %v589 = vadd.f32 0.0, %v588
    %v590 = vpop.f32.mrb[0].mxu0
    %v591 = vpop.f32.mrb[0].mxu0
    %592 = vdwg.mxu0
    %593 = vmatprep.subr.bf16.mxu0 %v491
    %594 = vmatpush1.bf16.msra.mxu0 %v490
    %595 = vmatprep.subr.bf16.mxu0 %v495
    %596 = vmatpush1.bf16.msra.mxu0 %v494
    %597 = vmatprep.subr.bf16.mxu0 %v499
    %598 = vmatpush1.bf16.msra.mxu0 %v498
    %599 = vmatprep.subr.bf16.mxu0 %v503
    %600 = vmatpush1.bf16.msra.mxu0 %v502
    %601 = vmatprep.subr.bf16.mxu0 %v507
    %602 = vmatpush1.bf16.msra.mxu0 %v506
    %603 = vmatprep.subr.bf16.mxu0 %v511
    %604 = vmatpush1.bf16.msra.mxu0 %v510
    %605 = vmatprep.subr.bf16.mxu0 %v515
    %606 = vmatpush1.bf16.msra.mxu0 %v514
    %607 = vmatprep.subr.bf16.mxu0 %v519
    %608 = vmatpush1.bf16.msra.mxu0 %v518
    %609 = vmatprep.subr.bf16.mxu0 0
    %610 = vmatpush1.bf16.msra.mxu0 0
    %611 = vmatprep.subr.bf16.mxu0 0
    %612 = vmatpush1.bf16.msra.mxu0 0
    %613 = vmatprep.subr.bf16.mxu0 0
    %614 = vmatpush1.bf16.msra.mxu0 0
    %615 = vmatprep.subr.bf16.mxu0 0
    %616 = vmatpush1.bf16.msra.mxu0 0
    %617 = vmatprep.subr.bf16.mxu0 0
    %618 = vmatpush1.bf16.msra.mxu0 0
    %619 = vmatprep.subr.bf16.mxu0 0
    %620 = vmatpush1.bf16.msra.mxu0 0
    %621 = vmatprep.subr.bf16.mxu0 0
    %622 = vmatpush1.bf16.msra.mxu0 0
    %623 = vmatprep.subr.bf16.mxu0 0
    %624 = vmatpush1.bf16.msra.mxu0 0
    %625 = vmatprep.mubr.bf16.mxu0 0
    %626 = vmatmul.mubr.bf16.gmra.mrb[0].mxu0 0
    %v627 = vpop.f32.mrb[0].mxu0
    %v628 = vadd.f32 0.0, %v627
    %v629 = vpop.f32.mrb[0].mxu0
    %v630 = vadd.f32 0.0, %v629
    %v631 = vpop.f32.mrb[0].mxu0
    %v632 = vpop.f32.mrb[0].mxu0
    %633 = vdwg.mxu0
    %v634 = vadd.f32 %v259, %v587
    %v635 = vadd.f32 %v261, %v589
    %v636 = vadd.f32 %v332, %v628
    %v637 = vadd.f32 %v334, %v630
    %v638 = vxor.u32 %v634, 2147483648
    %v639 = vmul.f32 %v638, 1.442695
    %v640 = vpow.pop %v639
    %v641 = vadd.f32 %v640, 1.0
    %v642 = vrcp.pop %v641
    %v643 = vmul.f32 1.0, %v642
    %v644 = vxor.u32 %v635, 2147483648
    %v645 = vmul.f32 %v644, 1.442695
    %v646 = vpow.pop %v645
    %v647 = vadd.f32 %v646, 1.0
    %v648 = vrcp.pop %v647
    %v649 = vmul.f32 1.0, %v648
    %v650 = vtanh.pop %v636
    %v651 = vxor.u32 %v637, 2147483648
    %v652 = vmul.f32 %v651, 1.442695
    %v653 = vpow.pop %v652
    %v654 = vadd.f32 %v653, 1.0
    %v655 = vrcp.pop %v654
    %v656 = vmul.f32 1.0, %v655
    %v657 = vmul.f32 %v649, 0.0
    %v658 = vmul.f32 %v643, %v650
    %v659 = vadd.f32 %v657, %v658
    %v660 = vtanh.pop %v659
    %v661 = vmul.f32 %v656, %v660
    %v662 = vpack.c.bf16 %v661, %v661
    %663 = vmatprep.subr.bf16.mxu0 %v489
    %664 = vmatpush1.bf16.msra.mxu0 %v488
    %665 = vmatprep.subr.bf16.mxu0 %v493
    %666 = vmatpush1.bf16.msra.mxu0 %v492
    %667 = vmatprep.subr.bf16.mxu0 %v497
    %668 = vmatpush1.bf16.msra.mxu0 %v496
    %669 = vmatprep.subr.bf16.mxu0 %v501
    %670 = vmatpush1.bf16.msra.mxu0 %v500
    %671 = vmatprep.subr.bf16.mxu0 %v505
    %672 = vmatpush1.bf16.msra.mxu0 %v504
    %673 = vmatprep.subr.bf16.mxu0 %v509
    %674 = vmatpush1.bf16.msra.mxu0 %v508
    %675 = vmatprep.subr.bf16.mxu0 %v513
    %676 = vmatpush1.bf16.msra.mxu0 %v512
    %677 = vmatprep.subr.bf16.mxu0 %v517
    %678 = vmatpush1.bf16.msra.mxu0 %v516
    %679 = vmatprep.subr.bf16.mxu0 0
    %680 = vmatpush1.bf16.msra.mxu0 0
    %681 = vmatprep.subr.bf16.mxu0 0
    %682 = vmatpush1.bf16.msra.mxu0 0
    %683 = vmatprep.subr.bf16.mxu0 0
    %684 = vmatpush1.bf16.msra.mxu0 0
    %685 = vmatprep.subr.bf16.mxu0 0
    %686 = vmatpush1.bf16.msra.mxu0 0
    %687 = vmatprep.subr.bf16.mxu0 0
    %688 = vmatpush1.bf16.msra.mxu0 0
    %689 = vmatprep.subr.bf16.mxu0 0
    %690 = vmatpush1.bf16.msra.mxu0 0
    %691 = vmatprep.subr.bf16.mxu0 0
    %692 = vmatpush1.bf16.msra.mxu0 0
    %693 = vmatprep.subr.bf16.mxu0 0
    %694 = vmatpush1.bf16.msra.mxu0 0
    %695 = vmatprep.mubr.bf16.mxu0 0
    %696 = vmatmul.mubr.bf16.gmra.mrb[0].mxu0 %v662
    %v697 = vpop.f32.mrb[0].mxu0
    %v698 = vadd.f32 0.0, %v697
    %v699 = vpop.f32.mrb[0].mxu0
    %v700 = vadd.f32 0.0, %v699
    %v701 = vpop.f32.mrb[0].mxu0
    %v702 = vpop.f32.mrb[0].mxu0
    %703 = vdwg.mxu0
    %704 = vmatprep.subr.bf16.mxu0 %v491
    %705 = vmatpush1.bf16.msra.mxu0 %v490
    %706 = vmatprep.subr.bf16.mxu0 %v495
    %707 = vmatpush1.bf16.msra.mxu0 %v494
    %708 = vmatprep.subr.bf16.mxu0 %v499
    %709 = vmatpush1.bf16.msra.mxu0 %v498
    %710 = vmatprep.subr.bf16.mxu0 %v503
    %711 = vmatpush1.bf16.msra.mxu0 %v502
    %712 = vmatprep.subr.bf16.mxu0 %v507
    %713 = vmatpush1.bf16.msra.mxu0 %v506
    %714 = vmatprep.subr.bf16.mxu0 %v511
    %715 = vmatpush1.bf16.msra.mxu0 %v510
    %716 = vmatprep.subr.bf16.mxu0 %v515
    %717 = vmatpush1.bf16.msra.mxu0 %v514
    %718 = vmatprep.subr.bf16.mxu0 %v519
    %719 = vmatpush1.bf16.msra.mxu0 %v518
    %720 = vmatprep.subr.bf16.mxu0 0
    %721 = vmatpush1.bf16.msra.mxu0 0
    %722 = vmatprep.subr.bf16.mxu0 0
    %723 = vmatpush1.bf16.msra.mxu0 0
    %724 = vmatprep.subr.bf16.mxu0 0
    %725 = vmatpush1.bf16.msra.mxu0 0
    %726 = vmatprep.subr.bf16.mxu0 0
    %727 = vmatpush1.bf16.msra.mxu0 0
    %728 = vmatprep.subr.bf16.mxu0 0
    %729 = vmatpush1.bf16.msra.mxu0 0
    %730 = vmatprep.subr.bf16.mxu0 0
    %731 = vmatpush1.bf16.msra.mxu0 0
    %732 = vmatprep.subr.bf16.mxu0 0
    %733 = vmatpush1.bf16.msra.mxu0 0
    %734 = vmatprep.subr.bf16.mxu0 0
    %735 = vmatpush1.bf16.msra.mxu0 0
    %736 = vmatprep.mubr.bf16.mxu0 0
    %737 = vmatmul.mubr.bf16.gmra.mrb[0].mxu0 %v662
    %v738 = vpop.f32.mrb[0].mxu0
    %v739 = vadd.f32 0.0, %v738
    %v740 = vpop.f32.mrb[0].mxu0
    %v741 = vadd.f32 0.0, %v740
    %v742 = vpop.f32.mrb[0].mxu0
    %v743 = vpop.f32.mrb[0].mxu0
    %744 = vdwg.mxu0
    %v745 = vadd.f32 %v263, %v698
    %v746 = vadd.f32 %v265, %v700
    %v747 = vadd.f32 %v336, %v739
    %v748 = vadd.f32 %v338, %v741
    %v749 = vxor.u32 %v745, 2147483648
    %v750 = vmul.f32 %v749, 1.442695
    %v751 = vpow.pop %v750
    %v752 = vadd.f32 %v751, 1.0
    %v753 = vrcp.pop %v752
    %v754 = vmul.f32 1.0, %v753
    %v755 = vxor.u32 %v746, 2147483648
    %v756 = vmul.f32 %v755, 1.442695
    %v757 = vpow.pop %v756
    %v758 = vadd.f32 %v757, 1.0
    %v759 = vrcp.pop %v758
    %v760 = vmul.f32 1.0, %v759
    %v761 = vtanh.pop %v747
    %v762 = vxor.u32 %v748, 2147483648
    %v763 = vmul.f32 %v762, 1.442695
    %v764 = vpow.pop %v763
    %v765 = vadd.f32 %v764, 1.0
    %v766 = vrcp.pop %v765
    %v767 = vmul.f32 1.0, %v766
    %v768 = vmul.f32 %v760, %v659
    %v769 = vmul.f32 %v754, %v761
    %v770 = vadd.f32 %v768, %v769
    %v771 = vtanh.pop %v770
    %v772 = vmul.f32 %v767, %v771
    %v837 = vunpack.c.l.b16 %v88
    %v838 = vunpack.c.h.b16 %v88
    %v839 = vunpack.c.l.b16 %v89
    %v840 = vunpack.c.h.b16 %v89
    %v841 = vunpack.c.l.b16 %v90
    %v842 = vunpack.c.h.b16 %v90
    %v843 = vunpack.c.l.b16 %v91
    %v844 = vunpack.c.h.b16 %v91
    %v845 = vunpack.c.l.b16 %v92
    %v846 = vunpack.c.h.b16 %v92
    %v847 = vunpack.c.l.b16 %v93
    %v848 = vunpack.c.h.b16 %v93
    %v849 = vunpack.c.l.b16 %v94
    %v850 = vunpack.c.h.b16 %v94
    %v851 = vunpack.c.l.b16 %v95
    %v852 = vunpack.c.h.b16 %v95
    %v853 = vunpack.c.l.b16 %v96
    %v854 = vunpack.c.h.b16 %v96
    %v855 = vunpack.c.l.b16 %v97
    %v856 = vunpack.c.h.b16 %v97
    %v857 = vunpack.c.l.b16 %v98
    %v858 = vunpack.c.h.b16 %v98
    %v859 = vunpack.c.l.b16 %v99
    %v860 = vunpack.c.h.b16 %v99
    %v861 = vunpack.c.l.b16 %v100
    %v862 = vunpack.c.h.b16 %v100
    %v863 = vunpack.c.l.b16 %v101
    %v864 = vunpack.c.h.b16 %v101
    %v865 = vunpack.c.l.b16 %v102
    %v866 = vunpack.c.h.b16 %v102
    %v867 = vunpack.c.l.b16 %v103
    %v868 = vunpack.c.h.b16 %v103
    %v869 = vunpack.c.l.b16 %v104
    %v870 = vunpack.c.h.b16 %v104
    %v871 = vunpack.c.l.b16 %v105
    %v872 = vunpack.c.h.b16 %v105
    %v873 = vunpack.c.l.b16 %v106
    %v874 = vunpack.c.h.b16 %v106
    %v875 = vunpack.c.l.b16 %v107
    %v876 = vunpack.c.h.b16 %v107
    %v877 = vunpack.c.l.b16 %v108
    %v878 = vunpack.c.h.b16 %v108
    %v879 = vunpack.c.l.b16 %v109
    %v880 = vunpack.c.h.b16 %v109
    %v881 = vunpack.c.l.b16 %v110
    %v882 = vunpack.c.h.b16 %v110
    %v883 = vunpack.c.l.b16 %v111
    %v884 = vunpack.c.h.b16 %v111
    %v885 = vunpack.c.l.b16 %v112
    %v886 = vunpack.c.h.b16 %v112
    %v887 = vunpack.c.l.b16 %v113
    %v888 = vunpack.c.h.b16 %v113
    %v889 = vunpack.c.l.b16 %v114
    %v890 = vunpack.c.h.b16 %v114
    %v891 = vunpack.c.l.b16 %v115
    %v892 = vunpack.c.h.b16 %v115
    %v893 = vunpack.c.l.b16 %v116
    %v894 = vunpack.c.h.b16 %v116
    %v895 = vunpack.c.l.b16 %v117
    %v896 = vunpack.c.h.b16 %v117
    %v897 = vunpack.c.l.b16 %v118
    %v898 = vunpack.c.h.b16 %v118
    %v899 = vunpack.c.l.b16 %v119
    %v900 = vunpack.c.h.b16 %v119
    %v901 = vunpack.c.l.b16 %v120
    %v902 = vunpack.c.h.b16 %v120
    %v903 = vunpack.c.l.b16 %v121
    %v904 = vunpack.c.h.b16 %v121
    %v905 = vunpack.c.l.b16 %v122
    %v906 = vunpack.c.h.b16 %v122
    %v907 = vunpack.c.l.b16 %v123
    %v908 = vunpack.c.h.b16 %v123
    %v909 = vunpack.c.l.b16 %v124
    %v910 = vunpack.c.h.b16 %v124
    %v911 = vunpack.c.l.b16 %v125
    %v912 = vunpack.c.h.b16 %v125
    %v913 = vunpack.c.l.b16 %v126
    %v914 = vunpack.c.h.b16 %v126
    %v915 = vunpack.c.l.b16 %v127
    %v916 = vunpack.c.h.b16 %v127
    %v917 = vunpack.c.l.b16 %v128
    %v918 = vunpack.c.h.b16 %v128
    %v919 = vunpack.c.l.b16 %v129
    %v920 = vunpack.c.h.b16 %v129
    %v921 = vunpack.c.l.b16 %v130
    %v922 = vunpack.c.h.b16 %v130
    %v923 = vunpack.c.l.b16 %v131
    %v924 = vunpack.c.h.b16 %v131
    %v925 = vunpack.c.l.b16 %v132
    %v926 = vunpack.c.h.b16 %v132
    %v927 = vunpack.c.l.b16 %v133
    %v928 = vunpack.c.h.b16 %v133
    %v929 = vunpack.c.l.b16 %v134
    %v930 = vunpack.c.h.b16 %v134
    %v931 = vunpack.c.l.b16 %v135
    %v932 = vunpack.c.h.b16 %v135
    %v933 = vunpack.c.l.b16 %v136
    %v934 = vunpack.c.h.b16 %v136
    %v935 = vunpack.c.l.b16 %v137
    %v936 = vunpack.c.h.b16 %v137
    %v937 = vunpack.c.l.b16 %v138
    %v938 = vunpack.c.h.b16 %v138
    %v939 = vunpack.c.l.b16 %v139
    %v940 = vunpack.c.h.b16 %v139
    %v941 = vunpack.c.l.b16 %v140
    %v942 = vunpack.c.h.b16 %v140
    %v943 = vunpack.c.l.b16 %v141
    %v944 = vunpack.c.h.b16 %v141
    %v945 = vunpack.c.l.b16 %v142
    %v946 = vunpack.c.h.b16 %v142
    %v947 = vunpack.c.l.b16 %v143
    %v948 = vunpack.c.h.b16 %v143
    %v949 = vunpack.c.l.b16 %v144
    %v950 = vunpack.c.h.b16 %v144
    %v951 = vunpack.c.l.b16 %v145
    %v952 = vunpack.c.h.b16 %v145
    %v953 = vunpack.c.l.b16 %v146
    %v954 = vunpack.c.h.b16 %v146
    %v955 = vunpack.c.l.b16 %v147
    %v956 = vunpack.c.h.b16 %v147
    %v957 = vunpack.c.l.b16 %v148
    %v958 = vunpack.c.h.b16 %v148
    %v959 = vunpack.c.l.b16 %v149
    %v960 = vunpack.c.h.b16 %v149
    %v961 = vunpack.c.l.b16 %v150
    %v962 = vunpack.c.h.b16 %v150
    %v963 = vunpack.c.l.b16 %v151
    %v964 = vunpack.c.h.b16 %v151
    %v965 = vpack.c.b16 %v841, %v837
    %v966 = vpack.c.b16 %v842, %v838
    %v967 = vpack.c.b16 %v843, %v839
    %v968 = vpack.c.b16 %v844, %v840
    %v969 = vpack.c.b16 %v849, %v845
    %v970 = vpack.c.b16 %v850, %v846
    %v971 = vpack.c.b16 %v851, %v847
    %v972 = vpack.c.b16 %v852, %v848
    %v973 = vpack.c.b16 %v857, %v853
    %v974 = vpack.c.b16 %v858, %v854
    %v975 = vpack.c.b16 %v859, %v855
    %v976 = vpack.c.b16 %v860, %v856
    %v977 = vpack.c.b16 %v865, %v861
    %v978 = vpack.c.b16 %v866, %v862
    %v979 = vpack.c.b16 %v867, %v863
    %v980 = vpack.c.b16 %v868, %v864
    %v981 = vpack.c.b16 %v873, %v869
    %v982 = vpack.c.b16 %v874, %v870
    %v983 = vpack.c.b16 %v875, %v871
    %v984 = vpack.c.b16 %v876, %v872
    %v985 = vpack.c.b16 %v881, %v877
    %v986 = vpack.c.b16 %v882, %v878
    %v987 = vpack.c.b16 %v883, %v879
    %v988 = vpack.c.b16 %v884, %v880
    %v989 = vpack.c.b16 %v889, %v885
    %v990 = vpack.c.b16 %v890, %v886
    %v991 = vpack.c.b16 %v891, %v887
    %v992 = vpack.c.b16 %v892, %v888
    %v993 = vpack.c.b16 %v897, %v893
    %v994 = vpack.c.b16 %v898, %v894
    %v995 = vpack.c.b16 %v899, %v895
    %v996 = vpack.c.b16 %v900, %v896
    %v997 = vpack.c.b16 %v905, %v901
    %v998 = vpack.c.b16 %v906, %v902
    %v999 = vpack.c.b16 %v907, %v903
    %v1000 = vpack.c.b16 %v908, %v904
    %v1001 = vpack.c.b16 %v913, %v909
    %v1002 = vpack.c.b16 %v914, %v910
    %v1003 = vpack.c.b16 %v915, %v911
    %v1004 = vpack.c.b16 %v916, %v912
    %v1005 = vpack.c.b16 %v921, %v917
    %v1006 = vpack.c.b16 %v922, %v918
    %v1007 = vpack.c.b16 %v923, %v919
    %v1008 = vpack.c.b16 %v924, %v920
    %v1009 = vpack.c.b16 %v929, %v925
    %v1010 = vpack.c.b16 %v930, %v926
    %v1011 = vpack.c.b16 %v931, %v927
    %v1012 = vpack.c.b16 %v932, %v928
    %v1013 = vpack.c.b16 %v937, %v933
    %v1014 = vpack.c.b16 %v938, %v934
    %v1015 = vpack.c.b16 %v939, %v935
    %v1016 = vpack.c.b16 %v940, %v936
    %v1017 = vpack.c.b16 %v945, %v941
    %v1018 = vpack.c.b16 %v946, %v942
    %v1019 = vpack.c.b16 %v947, %v943
    %v1020 = vpack.c.b16 %v948, %v944
    %v1021 = vpack.c.b16 %v953, %v949
    %v1022 = vpack.c.b16 %v954, %v950
    %v1023 = vpack.c.b16 %v955, %v951
    %v1024 = vpack.c.b16 %v956, %v952
    %v1025 = vpack.c.b16 %v961, %v957
    %v1026 = vpack.c.b16 %v962, %v958
    %v1027 = vpack.c.b16 %v963, %v959
    %v1028 = vpack.c.b16 %v964, %v960
    %1093 = vmatprep.subr.bf16.mxu0 %v966
    %1094 = vmatpush1.bf16.msra.mxu0 %v965
    %1095 = vmatprep.subr.bf16.mxu0 %v970
    %1096 = vmatpush1.bf16.msra.mxu0 %v969
    %1097 = vmatprep.subr.bf16.mxu0 %v974
    %1098 = vmatpush1.bf16.msra.mxu0 %v973
    %1099 = vmatprep.subr.bf16.mxu0 %v978
    %1100 = vmatpush1.bf16.msra.mxu0 %v977
    %1101 = vmatprep.subr.bf16.mxu0 %v982
    %1102 = vmatpush1.bf16.msra.mxu0 %v981
    %1103 = vmatprep.subr.bf16.mxu0 %v986
    %1104 = vmatpush1.bf16.msra.mxu0 %v985
    %1105 = vmatprep.subr.bf16.mxu0 %v990
    %1106 = vmatpush1.bf16.msra.mxu0 %v989
    %1107 = vmatprep.subr.bf16.mxu0 %v994
    %1108 = vmatpush1.bf16.msra.mxu0 %v993
    %1109 = vmatprep.subr.bf16.mxu0 %v998
    %1110 = vmatpush1.bf16.msra.mxu0 %v997
    %1111 = vmatprep.subr.bf16.mxu0 %v1002
    %1112 = vmatpush1.bf16.msra.mxu0 %v1001
    %1113 = vmatprep.subr.bf16.mxu0 %v1006
    %1114 = vmatpush1.bf16.msra.mxu0 %v1005
    %1115 = vmatprep.subr.bf16.mxu0 %v1010
    %1116 = vmatpush1.bf16.msra.mxu0 %v1009
    %1117 = vmatprep.subr.bf16.mxu0 %v1014
    %1118 = vmatpush1.bf16.msra.mxu0 %v1013
    %1119 = vmatprep.subr.bf16.mxu0 %v1018
    %1120 = vmatpush1.bf16.msra.mxu0 %v1017
    %1121 = vmatprep.subr.bf16.mxu0 %v1022
    %1122 = vmatpush1.bf16.msra.mxu0 %v1021
    %1123 = vmatprep.subr.bf16.mxu0 %v1026
    %1124 = vmatpush1.bf16.msra.mxu0 %v1025
    %1125 = vmatprep.mubr.bf16.mxu0 0
    %1126 = vmatmul.mubr.bf16.gmra.mrb[0].mxu0 %v662
    %v1127 = vpop.f32.mrb[0].mxu0
    %v1128 = vadd.f32 %v375, %v1127
    %v1129 = vpop.f32.mrb[0].mxu0
    %v1130 = vadd.f32 %v379, %v1129
    %v1131 = vpop.f32.mrb[0].mxu0
    %v1132 = vpop.f32.mrb[0].mxu0
    %1133 = vdwg.mxu0
    %1134 = vmatprep.subr.bf16.mxu0 %v968
    %1135 = vmatpush1.bf16.msra.mxu0 %v967
    %1136 = vmatprep.subr.bf16.mxu0 %v972
    %1137 = vmatpush1.bf16.msra.mxu0 %v971
    %1138 = vmatprep.subr.bf16.mxu0 %v976
    %1139 = vmatpush1.bf16.msra.mxu0 %v975
    %1140 = vmatprep.subr.bf16.mxu0 %v980
    %1141 = vmatpush1.bf16.msra.mxu0 %v979
    %1142 = vmatprep.subr.bf16.mxu0 %v984
    %1143 = vmatpush1.bf16.msra.mxu0 %v983
    %1144 = vmatprep.subr.bf16.mxu0 %v988
    %1145 = vmatpush1.bf16.msra.mxu0 %v987
    %1146 = vmatprep.subr.bf16.mxu0 %v992
    %1147 = vmatpush1.bf16.msra.mxu0 %v991
    %1148 = vmatprep.subr.bf16.mxu0 %v996
    %1149 = vmatpush1.bf16.msra.mxu0 %v995
    %1150 = vmatprep.subr.bf16.mxu0 %v1000
    %1151 = vmatpush1.bf16.msra.mxu0 %v999
    %1152 = vmatprep.subr.bf16.mxu0 %v1004
    %1153 = vmatpush1.bf16.msra.mxu0 %v1003
    %1154 = vmatprep.subr.bf16.mxu0 %v1008
    %1155 = vmatpush1.bf16.msra.mxu0 %v1007
    %1156 = vmatprep.subr.bf16.mxu0 %v1012
    %1157 = vmatpush1.bf16.msra.mxu0 %v1011
    %1158 = vmatprep.subr.bf16.mxu0 %v1016
    %1159 = vmatpush1.bf16.msra.mxu0 %v1015
    %1160 = vmatprep.subr.bf16.mxu0 %v1020
    %1161 = vmatpush1.bf16.msra.mxu0 %v1019
    %1162 = vmatprep.subr.bf16.mxu0 %v1024
    %1163 = vmatpush1.bf16.msra.mxu0 %v1023
    %1164 = vmatprep.subr.bf16.mxu0 %v1028
    %1165 = vmatpush1.bf16.msra.mxu0 %v1027
    %1166 = vmatprep.mubr.bf16.mxu0 0
    %1167 = vmatmul.mubr.bf16.gmra.mrb[0].mxu0 %v662
    %v1168 = vpop.f32.mrb[0].mxu0
    %v1169 = vadd.f32 %v383, %v1168
    %v1170 = vpop.f32.mrb[0].mxu0
    %v1171 = vadd.f32 %v387, %v1170
    %v1172 = vpop.f32.mrb[0].mxu0
    %v1173 = vpop.f32.mrb[0].mxu0
    %1174 = vdwg.mxu0
    %v1175 = vxor.u32 %v1128, 2147483648
    %v1176 = vmul.f32 %v1175, 1.442695
    %v1177 = vpow.pop %v1176
    %v1178 = vadd.f32 %v1177, 1.0
    %v1179 = vrcp.pop %v1178
    %v1180 = vmul.f32 1.0, %v1179
    %v1181 = vxor.u32 %v1130, 2147483648
    %v1182 = vmul.f32 %v1181, 1.442695
    %v1183 = vpow.pop %v1182
    %v1184 = vadd.f32 %v1183, 1.0
    %v1185 = vrcp.pop %v1184
    %v1186 = vmul.f32 1.0, %v1185
    %v1187 = vtanh.pop %v1169
    %v1188 = vxor.u32 %v1171, 2147483648
    %v1189 = vmul.f32 %v1188, 1.442695
    %v1190 = vpow.pop %v1189
    %v1191 = vadd.f32 %v1190, 1.0
    %v1192 = vrcp.pop %v1191
    %v1193 = vmul.f32 1.0, %v1192
    %v1194 = vmul.f32 %v1186, 0.0
    %v1195 = vmul.f32 %v1180, %v1187
    %v1196 = vadd.f32 %v1194, %v1195
    %v1197 = vtanh.pop %v1196
    %v1198 = vmul.f32 %v1193, %v1197
    %v1199 = vpack.c.bf16 %v772, %v772
    %1200 = vmatprep.subr.bf16.mxu0 %v489
    %1201 = vmatpush1.bf16.msra.mxu0 %v488
    %1202 = vmatprep.subr.bf16.mxu0 %v493
    %1203 = vmatpush1.bf16.msra.mxu0 %v492
    %1204 = vmatprep.subr.bf16.mxu0 %v497
    %1205 = vmatpush1.bf16.msra.mxu0 %v496
    %1206 = vmatprep.subr.bf16.mxu0 %v501
    %1207 = vmatpush1.bf16.msra.mxu0 %v500
    %1208 = vmatprep.subr.bf16.mxu0 %v505
    %1209 = vmatpush1.bf16.msra.mxu0 %v504
    %1210 = vmatprep.subr.bf16.mxu0 %v509
    %1211 = vmatpush1.bf16.msra.mxu0 %v508
    %1212 = vmatprep.subr.bf16.mxu0 %v513
    %1213 = vmatpush1.bf16.msra.mxu0 %v512
    %1214 = vmatprep.subr.bf16.mxu0 %v517
    %1215 = vmatpush1.bf16.msra.mxu0 %v516
    %1216 = vmatprep.subr.bf16.mxu0 0
    %1217 = vmatpush1.bf16.msra.mxu0 0
    %1218 = vmatprep.subr.bf16.mxu0 0
    %1219 = vmatpush1.bf16.msra.mxu0 0
    %1220 = vmatprep.subr.bf16.mxu0 0
    %1221 = vmatpush1.bf16.msra.mxu0 0
    %1222 = vmatprep.subr.bf16.mxu0 0
    %1223 = vmatpush1.bf16.msra.mxu0 0
    %1224 = vmatprep.subr.bf16.mxu0 0
    %1225 = vmatpush1.bf16.msra.mxu0 0
    %1226 = vmatprep.subr.bf16.mxu0 0
    %1227 = vmatpush1.bf16.msra.mxu0 0
    %1228 = vmatprep.subr.bf16.mxu0 0
    %1229 = vmatpush1.bf16.msra.mxu0 0
    %1230 = vmatprep.subr.bf16.mxu0 0
    %1231 = vmatpush1.bf16.msra.mxu0 0
    %1232 = vmatprep.mubr.bf16.mxu0 0
    %1233 = vmatmul.mubr.bf16.gmra.mrb[0].mxu0 %v1199
    %v1234 = vpop.f32.mrb[0].mxu0
    %v1235 = vadd.f32 0.0, %v1234
    %v1236 = vpop.f32.mrb[0].mxu0
    %v1237 = vadd.f32 0.0, %v1236
    %v1238 = vpop.f32.mrb[0].mxu0
    %v1239 = vpop.f32.mrb[0].mxu0
    %1240 = vdwg.mxu0
    %1241 = vmatprep.subr.bf16.mxu0 %v491
    %1242 = vmatpush1.bf16.msra.mxu0 %v490
    %1243 = vmatprep.subr.bf16.mxu0 %v495
    %1244 = vmatpush1.bf16.msra.mxu0 %v494
    %1245 = vmatprep.subr.bf16.mxu0 %v499
    %1246 = vmatpush1.bf16.msra.mxu0 %v498
    %1247 = vmatprep.subr.bf16.mxu0 %v503
    %1248 = vmatpush1.bf16.msra.mxu0 %v502
    %1249 = vmatprep.subr.bf16.mxu0 %v507
    %1250 = vmatpush1.bf16.msra.mxu0 %v506
    %1251 = vmatprep.subr.bf16.mxu0 %v511
    %1252 = vmatpush1.bf16.msra.mxu0 %v510
    %1253 = vmatprep.subr.bf16.mxu0 %v515
    %1254 = vmatpush1.bf16.msra.mxu0 %v514
    %1255 = vmatprep.subr.bf16.mxu0 %v519
    %1256 = vmatpush1.bf16.msra.mxu0 %v518
    %1257 = vmatprep.subr.bf16.mxu0 0
    %1258 = vmatpush1.bf16.msra.mxu0 0
    %1259 = vmatprep.subr.bf16.mxu0 0
    %1260 = vmatpush1.bf16.msra.mxu0 0
    %1261 = vmatprep.subr.bf16.mxu0 0
    %1262 = vmatpush1.bf16.msra.mxu0 0
    %1263 = vmatprep.subr.bf16.mxu0 0
    %1264 = vmatpush1.bf16.msra.mxu0 0
    %1265 = vmatprep.subr.bf16.mxu0 0
    %1266 = vmatpush1.bf16.msra.mxu0 0
    %1267 = vmatprep.subr.bf16.mxu0 0
    %1268 = vmatpush1.bf16.msra.mxu0 0
    %1269 = vmatprep.subr.bf16.mxu0 0
    %1270 = vmatpush1.bf16.msra.mxu0 0
    %1271 = vmatprep.subr.bf16.mxu0 0
    %1272 = vmatpush1.bf16.msra.mxu0 0
    %1273 = vmatprep.mubr.bf16.mxu0 0
    %1274 = vmatmul.mubr.bf16.gmra.mrb[0].mxu0 %v1199
    %v1275 = vpop.f32.mrb[0].mxu0
    %v1276 = vadd.f32 0.0, %v1275
    %v1277 = vpop.f32.mrb[0].mxu0
    %v1278 = vadd.f32 0.0, %v1277
    %v1279 = vpop.f32.mrb[0].mxu0
    %v1280 = vpop.f32.mrb[0].mxu0
    %1281 = vdwg.mxu0
    %v1282 = vadd.f32 %v269, %v1235
    %v1283 = vadd.f32 %v271, %v1237
    %v1284 = vadd.f32 %v342, %v1276
    %v1285 = vadd.f32 %v344, %v1278
    %v1286 = vxor.u32 %v1282, 2147483648
    %v1287 = vmul.f32 %v1286, 1.442695
    %v1288 = vpow.pop %v1287
    %v1289 = vadd.f32 %v1288, 1.0
    %v1290 = vrcp.pop %v1289
    %v1291 = vmul.f32 1.0, %v1290
    %v1292 = vxor.u32 %v1283, 2147483648
    %v1293 = vmul.f32 %v1292, 1.442695
    %v1294 = vpow.pop %v1293
    %v1295 = vadd.f32 %v1294, 1.0
    %v1296 = vrcp.pop %v1295
    %v1297 = vmul.f32 1.0, %v1296
    %v1298 = vtanh.pop %v1284
    %v1299 = vxor.u32 %v1285, 2147483648
    %v1300 = vmul.f32 %v1299, 1.442695
    %v1301 = vpow.pop %v1300
    %v1302 = vadd.f32 %v1301, 1.0
    %v1303 = vrcp.pop %v1302
    %v1304 = vmul.f32 1.0, %v1303
    %v1305 = vmul.f32 %v1297, %v770
    %v1306 = vmul.f32 %v1291, %v1298
    %v1307 = vadd.f32 %v1305, %v1306
    %v1308 = vtanh.pop %v1307
    %v1309 = vmul.f32 %v1304, %v1308
    %v1310 = vpack.c.bf16 %v1198, %v1198
    %1311 = vmatprep.subr.bf16.mxu0 %v966
    %1312 = vmatpush1.bf16.msra.mxu0 %v965
    %1313 = vmatprep.subr.bf16.mxu0 %v970
    %1314 = vmatpush1.bf16.msra.mxu0 %v969
    %1315 = vmatprep.subr.bf16.mxu0 %v974
    %1316 = vmatpush1.bf16.msra.mxu0 %v973
    %1317 = vmatprep.subr.bf16.mxu0 %v978
    %1318 = vmatpush1.bf16.msra.mxu0 %v977
    %1319 = vmatprep.subr.bf16.mxu0 %v982
    %1320 = vmatpush1.bf16.msra.mxu0 %v981
    %1321 = vmatprep.subr.bf16.mxu0 %v986
    %1322 = vmatpush1.bf16.msra.mxu0 %v985
    %1323 = vmatprep.subr.bf16.mxu0 %v990
    %1324 = vmatpush1.bf16.msra.mxu0 %v989
    %1325 = vmatprep.subr.bf16.mxu0 %v994
    %1326 = vmatpush1.bf16.msra.mxu0 %v993
    %1327 = vmatprep.subr.bf16.mxu0 %v998
    %1328 = vmatpush1.bf16.msra.mxu0 %v997
    %1329 = vmatprep.subr.bf16.mxu0 %v1002
    %1330 = vmatpush1.bf16.msra.mxu0 %v1001
    %1331 = vmatprep.subr.bf16.mxu0 %v1006
    %1332 = vmatpush1.bf16.msra.mxu0 %v1005
    %1333 = vmatprep.subr.bf16.mxu0 %v1010
    %1334 = vmatpush1.bf16.msra.mxu0 %v1009
    %1335 = vmatprep.subr.bf16.mxu0 %v1014
    %1336 = vmatpush1.bf16.msra.mxu0 %v1013
    %1337 = vmatprep.subr.bf16.mxu0 %v1018
    %1338 = vmatpush1.bf16.msra.mxu0 %v1017
    %1339 = vmatprep.subr.bf16.mxu0 %v1022
    %1340 = vmatpush1.bf16.msra.mxu0 %v1021
    %1341 = vmatprep.subr.bf16.mxu0 %v1026
    %1342 = vmatpush1.bf16.msra.mxu0 %v1025
    %1343 = vmatprep.mubr.bf16.mxu0 %v1310
    %1344 = vmatmul.mubr.bf16.gmra.mrb[0].mxu0 %v1199
    %v1345 = vpop.f32.mrb[0].mxu0
    %v1346 = vadd.f32 %v375, %v1345
    %v1347 = vpop.f32.mrb[0].mxu0
    %v1348 = vadd.f32 %v379, %v1347
    %v1349 = vpop.f32.mrb[0].mxu0
    %v1350 = vpop.f32.mrb[0].mxu0
    %1351 = vdwg.mxu0
    %1352 = vmatprep.subr.bf16.mxu0 %v968
    %1353 = vmatpush1.bf16.msra.mxu0 %v967
    %1354 = vmatprep.subr.bf16.mxu0 %v972
    %1355 = vmatpush1.bf16.msra.mxu0 %v971
    %1356 = vmatprep.subr.bf16.mxu0 %v976
    %1357 = vmatpush1.bf16.msra.mxu0 %v975
    %1358 = vmatprep.subr.bf16.mxu0 %v980
    %1359 = vmatpush1.bf16.msra.mxu0 %v979
    %1360 = vmatprep.subr.bf16.mxu0 %v984
    %1361 = vmatpush1.bf16.msra.mxu0 %v983
    %1362 = vmatprep.subr.bf16.mxu0 %v988
    %1363 = vmatpush1.bf16.msra.mxu0 %v987
    %1364 = vmatprep.subr.bf16.mxu0 %v992
    %1365 = vmatpush1.bf16.msra.mxu0 %v991
    %1366 = vmatprep.subr.bf16.mxu0 %v996
    %1367 = vmatpush1.bf16.msra.mxu0 %v995
    %1368 = vmatprep.subr.bf16.mxu0 %v1000
    %1369 = vmatpush1.bf16.msra.mxu0 %v999
    %1370 = vmatprep.subr.bf16.mxu0 %v1004
    %1371 = vmatpush1.bf16.msra.mxu0 %v1003
    %1372 = vmatprep.subr.bf16.mxu0 %v1008
    %1373 = vmatpush1.bf16.msra.mxu0 %v1007
    %1374 = vmatprep.subr.bf16.mxu0 %v1012
    %1375 = vmatpush1.bf16.msra.mxu0 %v1011
    %1376 = vmatprep.subr.bf16.mxu0 %v1016
    %1377 = vmatpush1.bf16.msra.mxu0 %v1015
    %1378 = vmatprep.subr.bf16.mxu0 %v1020
    %1379 = vmatpush1.bf16.msra.mxu0 %v1019
    %1380 = vmatprep.subr.bf16.mxu0 %v1024
    %1381 = vmatpush1.bf16.msra.mxu0 %v1023
    %1382 = vmatprep.subr.bf16.mxu0 %v1028
    %1383 = vmatpush1.bf16.msra.mxu0 %v1027
    %1384 = vmatprep.mubr.bf16.mxu0 %v1310
    %1385 = vmatmul.mubr.bf16.gmra.mrb[0].mxu0 %v1199
    %v1386 = vpop.f32.mrb[0].mxu0
    %v1387 = vadd.f32 %v383, %v1386
    %v1388 = vpop.f32.mrb[0].mxu0
    %v1389 = vadd.f32 %v387, %v1388
    %v1390 = vpop.f32.mrb[0].mxu0
    %v1391 = vpop.f32.mrb[0].mxu0
    %1392 = vdwg.mxu0
    %v1393 = vxor.u32 %v1346, 2147483648
    %v1394 = vmul.f32 %v1393, 1.442695
    %v1395 = vpow.pop %v1394
    %v1396 = vadd.f32 %v1395, 1.0
    %v1397 = vrcp.pop %v1396
    %v1398 = vmul.f32 1.0, %v1397
    %v1399 = vxor.u32 %v1348, 2147483648
    %v1400 = vmul.f32 %v1399, 1.442695
    %v1401 = vpow.pop %v1400
    %v1402 = vadd.f32 %v1401, 1.0
    %v1403 = vrcp.pop %v1402
    %v1404 = vmul.f32 1.0, %v1403
    %v1405 = vtanh.pop %v1387
    %v1406 = vxor.u32 %v1389, 2147483648
    %v1407 = vmul.f32 %v1406, 1.442695
    %v1408 = vpow.pop %v1407
    %v1409 = vadd.f32 %v1408, 1.0
    %v1410 = vrcp.pop %v1409
    %v1411 = vmul.f32 1.0, %v1410
    %v1412 = vmul.f32 %v1404, %v1196
    %v1413 = vmul.f32 %v1398, %v1405
    %v1414 = vadd.f32 %v1412, %v1413
    %v1415 = vtanh.pop %v1414
    %v1416 = vmul.f32 %v1411, %v1415
    %v1417 = vpack.c.bf16 %v1309, %v1309
    %1418 = vmatprep.subr.bf16.mxu0 %v489
    %1419 = vmatpush1.bf16.msra.mxu0 %v488
    %1420 = vmatprep.subr.bf16.mxu0 %v493
    %1421 = vmatpush1.bf16.msra.mxu0 %v492
    %1422 = vmatprep.subr.bf16.mxu0 %v497
    %1423 = vmatpush1.bf16.msra.mxu0 %v496
    %1424 = vmatprep.subr.bf16.mxu0 %v501
    %1425 = vmatpush1.bf16.msra.mxu0 %v500
    %1426 = vmatprep.subr.bf16.mxu0 %v505
    %1427 = vmatpush1.bf16.msra.mxu0 %v504
    %1428 = vmatprep.subr.bf16.mxu0 %v509
    %1429 = vmatpush1.bf16.msra.mxu0 %v508
    %1430 = vmatprep.subr.bf16.mxu0 %v513
    %1431 = vmatpush1.bf16.msra.mxu0 %v512
    %1432 = vmatprep.subr.bf16.mxu0 %v517
    %1433 = vmatpush1.bf16.msra.mxu0 %v516
    %1434 = vmatprep.subr.bf16.mxu0 0
    %1435 = vmatpush1.bf16.msra.mxu0 0
    %1436 = vmatprep.subr.bf16.mxu0 0
    %1437 = vmatpush1.bf16.msra.mxu0 0
    %1438 = vmatprep.subr.bf16.mxu0 0
    %1439 = vmatpush1.bf16.msra.mxu0 0
    %1440 = vmatprep.subr.bf16.mxu0 0
    %1441 = vmatpush1.bf16.msra.mxu0 0
    %1442 = vmatprep.subr.bf16.mxu0 0
    %1443 = vmatpush1.bf16.msra.mxu0 0
    %1444 = vmatprep.subr.bf16.mxu0 0
    %1445 = vmatpush1.bf16.msra.mxu0 0
    %1446 = vmatprep.subr.bf16.mxu0 0
    %1447 = vmatpush1.bf16.msra.mxu0 0
    %1448 = vmatprep.subr.bf16.mxu0 0
    %1449 = vmatpush1.bf16.msra.mxu0 0
    %1450 = vmatprep.mubr.bf16.mxu0 0
    %1451 = vmatmul.mubr.bf16.gmra.mrb[0].mxu0 %v1417
    %v1452 = vpop.f32.mrb[0].mxu0
    %v1453 = vadd.f32 0.0, %v1452
    %v1454 = vpop.f32.mrb[0].mxu0
    %v1455 = vadd.f32 0.0, %v1454
    %v1456 = vpop.f32.mrb[0].mxu0
    %v1457 = vpop.f32.mrb[0].mxu0
    %1458 = vdwg.mxu0
    %1459 = vmatprep.subr.bf16.mxu0 %v491
    %1460 = vmatpush1.bf16.msra.mxu0 %v490
    %1461 = vmatprep.subr.bf16.mxu0 %v495
    %1462 = vmatpush1.bf16.msra.mxu0 %v494
    %1463 = vmatprep.subr.bf16.mxu0 %v499
    %1464 = vmatpush1.bf16.msra.mxu0 %v498
    %1465 = vmatprep.subr.bf16.mxu0 %v503
    %1466 = vmatpush1.bf16.msra.mxu0 %v502
    %1467 = vmatprep.subr.bf16.mxu0 %v507
    %1468 = vmatpush1.bf16.msra.mxu0 %v506
    %1469 = vmatprep.subr.bf16.mxu0 %v511
    %1470 = vmatpush1.bf16.msra.mxu0 %v510
    %1471 = vmatprep.subr.bf16.mxu0 %v515
    %1472 = vmatpush1.bf16.msra.mxu0 %v514
    %1473 = vmatprep.subr.bf16.mxu0 %v519
    %1474 = vmatpush1.bf16.msra.mxu0 %v518
    %1475 = vmatprep.subr.bf16.mxu0 0
    %1476 = vmatpush1.bf16.msra.mxu0 0
    %1477 = vmatprep.subr.bf16.mxu0 0
    %1478 = vmatpush1.bf16.msra.mxu0 0
    %1479 = vmatprep.subr.bf16.mxu0 0
    %1480 = vmatpush1.bf16.msra.mxu0 0
    %1481 = vmatprep.subr.bf16.mxu0 0
    %1482 = vmatpush1.bf16.msra.mxu0 0
    %1483 = vmatprep.subr.bf16.mxu0 0
    %1484 = vmatpush1.bf16.msra.mxu0 0
    %1485 = vmatprep.subr.bf16.mxu0 0
    %1486 = vmatpush1.bf16.msra.mxu0 0
    %1487 = vmatprep.subr.bf16.mxu0 0
    %1488 = vmatpush1.bf16.msra.mxu0 0
    %1489 = vmatprep.subr.bf16.mxu0 0
    %1490 = vmatpush1.bf16.msra.mxu0 0
    %1491 = vmatprep.mubr.bf16.mxu0 0
    %1492 = vmatmul.mubr.bf16.gmra.mrb[0].mxu0 %v1417
    %v1493 = vpop.f32.mrb[0].mxu0
    %v1494 = vadd.f32 0.0, %v1493
    %v1495 = vpop.f32.mrb[0].mxu0
    %v1496 = vadd.f32 0.0, %v1495
    %v1497 = vpop.f32.mrb[0].mxu0
    %v1498 = vpop.f32.mrb[0].mxu0
    %1499 = vdwg.mxu0
    %v1500 = vadd.f32 %v273, %v1453
    %v1501 = vadd.f32 %v275, %v1455
    %v1502 = vadd.f32 %v346, %v1494
    %v1503 = vadd.f32 %v348, %v1496
    %v1504 = vxor.u32 %v1500, 2147483648
    %v1505 = vmul.f32 %v1504, 1.442695
    %v1506 = vpow.pop %v1505
    %v1507 = vadd.f32 %v1506, 1.0
    %v1508 = vrcp.pop %v1507
    %v1509 = vmul.f32 1.0, %v1508
    %v1510 = vxor.u32 %v1501, 2147483648
    %v1511 = vmul.f32 %v1510, 1.442695
    %v1512 = vpow.pop %v1511
    %v1513 = vadd.f32 %v1512, 1.0
    %v1514 = vrcp.pop %v1513
    %v1515 = vmul.f32 1.0, %v1514
    %v1516 = vtanh.pop %v1502
    %v1517 = vxor.u32 %v1503, 2147483648
    %v1518 = vmul.f32 %v1517, 1.442695
    %v1519 = vpow.pop %v1518
    %v1520 = vadd.f32 %v1519, 1.0
    %v1521 = vrcp.pop %v1520
    %v1522 = vmul.f32 1.0, %v1521
    %v1523 = vmul.f32 %v1515, %v1307
    %v1524 = vmul.f32 %v1509, %v1516
    %v1525 = vadd.f32 %v1523, %v1524
    %v1526 = vtanh.pop %v1525
    %v1527 = vmul.f32 %v1522, %v1526
    %v1528 = vpack.c.bf16 %v1416, %v1416
    %1529 = vmatprep.subr.bf16.mxu0 %v966
    %1530 = vmatpush1.bf16.msra.mxu0 %v965
    %1531 = vmatprep.subr.bf16.mxu0 %v970
    %1532 = vmatpush1.bf16.msra.mxu0 %v969
    %1533 = vmatprep.subr.bf16.mxu0 %v974
    %1534 = vmatpush1.bf16.msra.mxu0 %v973
    %1535 = vmatprep.subr.bf16.mxu0 %v978
    %1536 = vmatpush1.bf16.msra.mxu0 %v977
    %1537 = vmatprep.subr.bf16.mxu0 %v982
    %1538 = vmatpush1.bf16.msra.mxu0 %v981
    %1539 = vmatprep.subr.bf16.mxu0 %v986
    %1540 = vmatpush1.bf16.msra.mxu0 %v985
    %1541 = vmatprep.subr.bf16.mxu0 %v990
    %1542 = vmatpush1.bf16.msra.mxu0 %v989
    %1543 = vmatprep.subr.bf16.mxu0 %v994
    %1544 = vmatpush1.bf16.msra.mxu0 %v993
    %1545 = vmatprep.subr.bf16.mxu0 %v998
    %1546 = vmatpush1.bf16.msra.mxu0 %v997
    %1547 = vmatprep.subr.bf16.mxu0 %v1002
    %1548 = vmatpush1.bf16.msra.mxu0 %v1001
    %1549 = vmatprep.subr.bf16.mxu0 %v1006
    %1550 = vmatpush1.bf16.msra.mxu0 %v1005
    %1551 = vmatprep.subr.bf16.mxu0 %v1010
    %1552 = vmatpush1.bf16.msra.mxu0 %v1009
    %1553 = vmatprep.subr.bf16.mxu0 %v1014
    %1554 = vmatpush1.bf16.msra.mxu0 %v1013
    %1555 = vmatprep.subr.bf16.mxu0 %v1018
    %1556 = vmatpush1.bf16.msra.mxu0 %v1017
    %1557 = vmatprep.subr.bf16.mxu0 %v1022
    %1558 = vmatpush1.bf16.msra.mxu0 %v1021
    %1559 = vmatprep.subr.bf16.mxu0 %v1026
    %1560 = vmatpush1.bf16.msra.mxu0 %v1025
    %1561 = vmatprep.mubr.bf16.mxu0 %v1528
    %1562 = vmatmul.mubr.bf16.gmra.mrb[0].mxu0 %v1417
    %v1563 = vpop.f32.mrb[0].mxu0
    %v1564 = vadd.f32 %v375, %v1563
    %v1565 = vpop.f32.mrb[0].mxu0
    %v1566 = vadd.f32 %v379, %v1565
    %v1567 = vpop.f32.mrb[0].mxu0
    %v1568 = vpop.f32.mrb[0].mxu0
    %1569 = vdwg.mxu0
    %1570 = vmatprep.subr.bf16.mxu0 %v968
    %1571 = vmatpush1.bf16.msra.mxu0 %v967
    %1572 = vmatprep.subr.bf16.mxu0 %v972
    %1573 = vmatpush1.bf16.msra.mxu0 %v971
    %1574 = vmatprep.subr.bf16.mxu0 %v976
    %1575 = vmatpush1.bf16.msra.mxu0 %v975
    %1576 = vmatprep.subr.bf16.mxu0 %v980
    %1577 = vmatpush1.bf16.msra.mxu0 %v979
    %1578 = vmatprep.subr.bf16.mxu0 %v984
    %1579 = vmatpush1.bf16.msra.mxu0 %v983
    %1580 = vmatprep.subr.bf16.mxu0 %v988
    %1581 = vmatpush1.bf16.msra.mxu0 %v987
    %1582 = vmatprep.subr.bf16.mxu0 %v992
    %1583 = vmatpush1.bf16.msra.mxu0 %v991
    %1584 = vmatprep.subr.bf16.mxu0 %v996
    %1585 = vmatpush1.bf16.msra.mxu0 %v995
    %1586 = vmatprep.subr.bf16.mxu0 %v1000
    %1587 = vmatpush1.bf16.msra.mxu0 %v999
    %1588 = vmatprep.subr.bf16.mxu0 %v1004
    %1589 = vmatpush1.bf16.msra.mxu0 %v1003
    %1590 = vmatprep.subr.bf16.mxu0 %v1008
    %1591 = vmatpush1.bf16.msra.mxu0 %v1007
    %1592 = vmatprep.subr.bf16.mxu0 %v1012
    %1593 = vmatpush1.bf16.msra.mxu0 %v1011
    %1594 = vmatprep.subr.bf16.mxu0 %v1016
    %1595 = vmatpush1.bf16.msra.mxu0 %v1015
    %1596 = vmatprep.subr.bf16.mxu0 %v1020
    %1597 = vmatpush1.bf16.msra.mxu0 %v1019
    %1598 = vmatprep.subr.bf16.mxu0 %v1024
    %1599 = vmatpush1.bf16.msra.mxu0 %v1023
    %1600 = vmatprep.subr.bf16.mxu0 %v1028
    %1601 = vmatpush1.bf16.msra.mxu0 %v1027
    %1602 = vmatprep.mubr.bf16.mxu0 %v1528
    %1603 = vmatmul.mubr.bf16.gmra.mrb[0].mxu0 %v1417
    %v1604 = vpop.f32.mrb[0].mxu0
    %v1605 = vadd.f32 %v383, %v1604
    %v1606 = vpop.f32.mrb[0].mxu0
    %v1607 = vadd.f32 %v387, %v1606
    %v1608 = vpop.f32.mrb[0].mxu0
    %v1609 = vpop.f32.mrb[0].mxu0
    %1610 = vdwg.mxu0
    %v1611 = vxor.u32 %v1564, 2147483648
    %v1612 = vmul.f32 %v1611, 1.442695
    %v1613 = vpow.pop %v1612
    %v1614 = vadd.f32 %v1613, 1.0
    %v1615 = vrcp.pop %v1614
    %v1616 = vmul.f32 1.0, %v1615
    %v1617 = vxor.u32 %v1566, 2147483648
    %v1618 = vmul.f32 %v1617, 1.442695
    %v1619 = vpow.pop %v1618
    %v1620 = vadd.f32 %v1619, 1.0
    %v1621 = vrcp.pop %v1620
    %v1622 = vmul.f32 1.0, %v1621
    %v1623 = vtanh.pop %v1605
    %v1624 = vxor.u32 %v1607, 2147483648
    %v1625 = vmul.f32 %v1624, 1.442695
    %v1626 = vpow.pop %v1625
    %v1627 = vadd.f32 %v1626, 1.0
    %v1628 = vrcp.pop %v1627
    %v1629 = vmul.f32 1.0, %v1628
    %v1630 = vmul.f32 %v1622, %v1414
    %v1631 = vmul.f32 %v1616, %v1623
    %v1632 = vadd.f32 %v1630, %v1631
    %v1633 = vtanh.pop %v1632
    %v1634 = vmul.f32 %v1629, %v1633
    %v1635 = vpack.c.bf16 %v1527, %v1527
    %1636 = vmatprep.subr.bf16.mxu0 %v489
    %1637 = vmatpush1.bf16.msra.mxu0 %v488
    %1638 = vmatprep.subr.bf16.mxu0 %v493
    %1639 = vmatpush1.bf16.msra.mxu0 %v492
    %1640 = vmatprep.subr.bf16.mxu0 %v497
    %1641 = vmatpush1.bf16.msra.mxu0 %v496
    %1642 = vmatprep.subr.bf16.mxu0 %v501
    %1643 = vmatpush1.bf16.msra.mxu0 %v500
    %1644 = vmatprep.subr.bf16.mxu0 %v505
    %1645 = vmatpush1.bf16.msra.mxu0 %v504
    %1646 = vmatprep.subr.bf16.mxu0 %v509
    %1647 = vmatpush1.bf16.msra.mxu0 %v508
    %1648 = vmatprep.subr.bf16.mxu0 %v513
    %1649 = vmatpush1.bf16.msra.mxu0 %v512
    %1650 = vmatprep.subr.bf16.mxu0 %v517
    %1651 = vmatpush1.bf16.msra.mxu0 %v516
    %1652 = vmatprep.subr.bf16.mxu0 0
    %1653 = vmatpush1.bf16.msra.mxu0 0
    %1654 = vmatprep.subr.bf16.mxu0 0
    %1655 = vmatpush1.bf16.msra.mxu0 0
    %1656 = vmatprep.subr.bf16.mxu0 0
    %1657 = vmatpush1.bf16.msra.mxu0 0
    %1658 = vmatprep.subr.bf16.mxu0 0
    %1659 = vmatpush1.bf16.msra.mxu0 0
    %1660 = vmatprep.subr.bf16.mxu0 0
    %1661 = vmatpush1.bf16.msra.mxu0 0
    %1662 = vmatprep.subr.bf16.mxu0 0
    %1663 = vmatpush1.bf16.msra.mxu0 0
    %1664 = vmatprep.subr.bf16.mxu0 0
    %1665 = vmatpush1.bf16.msra.mxu0 0
    %1666 = vmatprep.subr.bf16.mxu0 0
    %1667 = vmatpush1.bf16.msra.mxu0 0
    %1668 = vmatprep.mubr.bf16.mxu0 0
    %1669 = vmatmul.mubr.bf16.gmra.mrb[0].mxu0 %v1635
    %v1670 = vpop.f32.mrb[0].mxu0
    %v1671 = vadd.f32 0.0, %v1670
    %v1672 = vpop.f32.mrb[0].mxu0
    %v1673 = vadd.f32 0.0, %v1672
    %v1674 = vpop.f32.mrb[0].mxu0
    %v1675 = vpop.f32.mrb[0].mxu0
    %1676 = vdwg.mxu0
    %1677 = vmatprep.subr.bf16.mxu0 %v491
    %1678 = vmatpush1.bf16.msra.mxu0 %v490
    %1679 = vmatprep.subr.bf16.mxu0 %v495
    %1680 = vmatpush1.bf16.msra.mxu0 %v494
    %1681 = vmatprep.subr.bf16.mxu0 %v499
    %1682 = vmatpush1.bf16.msra.mxu0 %v498
    %1683 = vmatprep.subr.bf16.mxu0 %v503
    %1684 = vmatpush1.bf16.msra.mxu0 %v502
    %1685 = vmatprep.subr.bf16.mxu0 %v507
    %1686 = vmatpush1.bf16.msra.mxu0 %v506
    %1687 = vmatprep.subr.bf16.mxu0 %v511
    %1688 = vmatpush1.bf16.msra.mxu0 %v510
    %1689 = vmatprep.subr.bf16.mxu0 %v515
    %1690 = vmatpush1.bf16.msra.mxu0 %v514
    %1691 = vmatprep.subr.bf16.mxu0 %v519
    %1692 = vmatpush1.bf16.msra.mxu0 %v518
    %1693 = vmatprep.subr.bf16.mxu0 0
    %1694 = vmatpush1.bf16.msra.mxu0 0
    %1695 = vmatprep.subr.bf16.mxu0 0
    %1696 = vmatpush1.bf16.msra.mxu0 0
    %1697 = vmatprep.subr.bf16.mxu0 0
    %1698 = vmatpush1.bf16.msra.mxu0 0
    %1699 = vmatprep.subr.bf16.mxu0 0
    %1700 = vmatpush1.bf16.msra.mxu0 0
    %1701 = vmatprep.subr.bf16.mxu0 0
    %1702 = vmatpush1.bf16.msra.mxu0 0
    %1703 = vmatprep.subr.bf16.mxu0 0
    %1704 = vmatpush1.bf16.msra.mxu0 0
    %1705 = vmatprep.subr.bf16.mxu0 0
    %1706 = vmatpush1.bf16.msra.mxu0 0
    %1707 = vmatprep.subr.bf16.mxu0 0
    %1708 = vmatpush1.bf16.msra.mxu0 0
    %1709 = vmatprep.mubr.bf16.mxu0 0
    %1710 = vmatmul.mubr.bf16.gmra.mrb[0].mxu0 %v1635
    %v1711 = vpop.f32.mrb[0].mxu0
    %v1712 = vadd.f32 0.0, %v1711
    %v1713 = vpop.f32.mrb[0].mxu0
    %v1714 = vadd.f32 0.0, %v1713
    %v1715 = vpop.f32.mrb[0].mxu0
    %v1716 = vpop.f32.mrb[0].mxu0
    %1717 = vdwg.mxu0
    %v1718 = vadd.f32 %v279, %v1671
    %v1719 = vadd.f32 %v281, %v1673
    %v1720 = vadd.f32 %v352, %v1712
    %v1721 = vadd.f32 %v354, %v1714
    %v1722 = vxor.u32 %v1718, 2147483648
    %v1723 = vmul.f32 %v1722, 1.442695
    %v1724 = vpow.pop %v1723
    %v1725 = vadd.f32 %v1724, 1.0
    %v1726 = vrcp.pop %v1725
    %v1727 = vmul.f32 1.0, %v1726
    %v1728 = vxor.u32 %v1719, 2147483648
    %v1729 = vmul.f32 %v1728, 1.442695
    %v1730 = vpow.pop %v1729
    %v1731 = vadd.f32 %v1730, 1.0
    %v1732 = vrcp.pop %v1731
    %v1733 = vmul.f32 1.0, %v1732
    %v1734 = vtanh.pop %v1720
    %v1735 = vxor.u32 %v1721, 2147483648
    %v1736 = vmul.f32 %v1735, 1.442695
    %v1737 = vpow.pop %v1736
    %v1738 = vadd.f32 %v1737, 1.0
    %v1739 = vrcp.pop %v1738
    %v1740 = vmul.f32 1.0, %v1739
    %v1741 = vmul.f32 %v1733, %v1525
    %v1742 = vmul.f32 %v1727, %v1734
    %v1743 = vadd.f32 %v1741, %v1742
    %v1744 = vtanh.pop %v1743
    %v1745 = vmul.f32 %v1740, %v1744
    %v1746 = vpack.c.bf16 %v1634, %v1634
    %1747 = vmatprep.subr.bf16.mxu0 %v966
    %1748 = vmatpush1.bf16.msra.mxu0 %v965
    %1749 = vmatprep.subr.bf16.mxu0 %v970
    %1750 = vmatpush1.bf16.msra.mxu0 %v969
    %1751 = vmatprep.subr.bf16.mxu0 %v974
    %1752 = vmatpush1.bf16.msra.mxu0 %v973
    %1753 = vmatprep.subr.bf16.mxu0 %v978
    %1754 = vmatpush1.bf16.msra.mxu0 %v977
    %1755 = vmatprep.subr.bf16.mxu0 %v982
    %1756 = vmatpush1.bf16.msra.mxu0 %v981
    %1757 = vmatprep.subr.bf16.mxu0 %v986
    %1758 = vmatpush1.bf16.msra.mxu0 %v985
    %1759 = vmatprep.subr.bf16.mxu0 %v990
    %1760 = vmatpush1.bf16.msra.mxu0 %v989
    %1761 = vmatprep.subr.bf16.mxu0 %v994
    %1762 = vmatpush1.bf16.msra.mxu0 %v993
    %1763 = vmatprep.subr.bf16.mxu0 %v998
    %1764 = vmatpush1.bf16.msra.mxu0 %v997
    %1765 = vmatprep.subr.bf16.mxu0 %v1002
    %1766 = vmatpush1.bf16.msra.mxu0 %v1001
    %1767 = vmatprep.subr.bf16.mxu0 %v1006
    %1768 = vmatpush1.bf16.msra.mxu0 %v1005
    %1769 = vmatprep.subr.bf16.mxu0 %v1010
    %1770 = vmatpush1.bf16.msra.mxu0 %v1009
    %1771 = vmatprep.subr.bf16.mxu0 %v1014
    %1772 = vmatpush1.bf16.msra.mxu0 %v1013
    %1773 = vmatprep.subr.bf16.mxu0 %v1018
    %1774 = vmatpush1.bf16.msra.mxu0 %v1017
    %1775 = vmatprep.subr.bf16.mxu0 %v1022
    %1776 = vmatpush1.bf16.msra.mxu0 %v1021
    %1777 = vmatprep.subr.bf16.mxu0 %v1026
    %1778 = vmatpush1.bf16.msra.mxu0 %v1025
    %1779 = vmatprep.mubr.bf16.mxu0 %v1746
    %1780 = vmatmul.mubr.bf16.gmra.mrb[0].mxu0 %v1635
    %v1781 = vpop.f32.mrb[0].mxu0
    %v1782 = vadd.f32 %v375, %v1781
    %v1783 = vpop.f32.mrb[0].mxu0
    %v1784 = vadd.f32 %v379, %v1783
    %v1785 = vpop.f32.mrb[0].mxu0
    %v1786 = vpop.f32.mrb[0].mxu0
    %1787 = vdwg.mxu0
    %1788 = vmatprep.subr.bf16.mxu0 %v968
    %1789 = vmatpush1.bf16.msra.mxu0 %v967
    %1790 = vmatprep.subr.bf16.mxu0 %v972
    %1791 = vmatpush1.bf16.msra.mxu0 %v971
    %1792 = vmatprep.subr.bf16.mxu0 %v976
    %1793 = vmatpush1.bf16.msra.mxu0 %v975
    %1794 = vmatprep.subr.bf16.mxu0 %v980
    %1795 = vmatpush1.bf16.msra.mxu0 %v979
    %1796 = vmatprep.subr.bf16.mxu0 %v984
    %1797 = vmatpush1.bf16.msra.mxu0 %v983
    %1798 = vmatprep.subr.bf16.mxu0 %v988
    %1799 = vmatpush1.bf16.msra.mxu0 %v987
    %1800 = vmatprep.subr.bf16.mxu0 %v992
    %1801 = vmatpush1.bf16.msra.mxu0 %v991
    %1802 = vmatprep.subr.bf16.mxu0 %v996
    %1803 = vmatpush1.bf16.msra.mxu0 %v995
    %1804 = vmatprep.subr.bf16.mxu0 %v1000
    %1805 = vmatpush1.bf16.msra.mxu0 %v999
    %1806 = vmatprep.subr.bf16.mxu0 %v1004
    %1807 = vmatpush1.bf16.msra.mxu0 %v1003
    %1808 = vmatprep.subr.bf16.mxu0 %v1008
    %1809 = vmatpush1.bf16.msra.mxu0 %v1007
    %1810 = vmatprep.subr.bf16.mxu0 %v1012
    %1811 = vmatpush1.bf16.msra.mxu0 %v1011
    %1812 = vmatprep.subr.bf16.mxu0 %v1016
    %1813 = vmatpush1.bf16.msra.mxu0 %v1015
    %1814 = vmatprep.subr.bf16.mxu0 %v1020
    %1815 = vmatpush1.bf16.msra.mxu0 %v1019
    %1816 = vmatprep.subr.bf16.mxu0 %v1024
    %1817 = vmatpush1.bf16.msra.mxu0 %v1023
    %1818 = vmatprep.subr.bf16.mxu0 %v1028
    %1819 = vmatpush1.bf16.msra.mxu0 %v1027
    %1820 = vmatprep.mubr.bf16.mxu0 %v1746
    %1821 = vmatmul.mubr.bf16.gmra.mrb[0].mxu0 %v1635
    %v1822 = vpop.f32.mrb[0].mxu0
    %v1823 = vadd.f32 %v383, %v1822
    %v1824 = vpop.f32.mrb[0].mxu0
    %v1825 = vadd.f32 %v387, %v1824
    %v1826 = vpop.f32.mrb[0].mxu0
    %v1827 = vpop.f32.mrb[0].mxu0
    %1828 = vdwg.mxu0
    %v1829 = vxor.u32 %v1782, 2147483648
    %v1830 = vmul.f32 %v1829, 1.442695
    %v1831 = vpow.pop %v1830
    %v1832 = vadd.f32 %v1831, 1.0
    %v1833 = vrcp.pop %v1832
    %v1834 = vmul.f32 1.0, %v1833
    %v1835 = vxor.u32 %v1784, 2147483648
    %v1836 = vmul.f32 %v1835, 1.442695
    %v1837 = vpow.pop %v1836
    %v1838 = vadd.f32 %v1837, 1.0
    %v1839 = vrcp.pop %v1838
    %v1840 = vmul.f32 1.0, %v1839
    %v1841 = vtanh.pop %v1823
    %v1842 = vxor.u32 %v1825, 2147483648
    %v1843 = vmul.f32 %v1842, 1.442695
    %v1844 = vpow.pop %v1843
    %v1845 = vadd.f32 %v1844, 1.0
    %v1846 = vrcp.pop %v1845
    %v1847 = vmul.f32 1.0, %v1846
    %v1848 = vmul.f32 %v1840, %v1632
    %v1849 = vmul.f32 %v1834, %v1841
    %v1850 = vadd.f32 %v1848, %v1849
    %v1851 = vtanh.pop %v1850
    %v1852 = vmul.f32 %v1847, %v1851
    %v1853 = vpack.c.bf16 %v1745, %v1745
    %1854 = vmatprep.subr.bf16.mxu0 %v489
    %1855 = vmatpush1.bf16.msra.mxu0 %v488
    %1856 = vmatprep.subr.bf16.mxu0 %v493
    %1857 = vmatpush1.bf16.msra.mxu0 %v492
    %1858 = vmatprep.subr.bf16.mxu0 %v497
    %1859 = vmatpush1.bf16.msra.mxu0 %v496
    %1860 = vmatprep.subr.bf16.mxu0 %v501
    %1861 = vmatpush1.bf16.msra.mxu0 %v500
    %1862 = vmatprep.subr.bf16.mxu0 %v505
    %1863 = vmatpush1.bf16.msra.mxu0 %v504
    %1864 = vmatprep.subr.bf16.mxu0 %v509
    %1865 = vmatpush1.bf16.msra.mxu0 %v508
    %1866 = vmatprep.subr.bf16.mxu0 %v513
    %1867 = vmatpush1.bf16.msra.mxu0 %v512
    %1868 = vmatprep.subr.bf16.mxu0 %v517
    %1869 = vmatpush1.bf16.msra.mxu0 %v516
    %1870 = vmatprep.subr.bf16.mxu0 0
    %1871 = vmatpush1.bf16.msra.mxu0 0
    %1872 = vmatprep.subr.bf16.mxu0 0
    %1873 = vmatpush1.bf16.msra.mxu0 0
    %1874 = vmatprep.subr.bf16.mxu0 0
    %1875 = vmatpush1.bf16.msra.mxu0 0
    %1876 = vmatprep.subr.bf16.mxu0 0
    %1877 = vmatpush1.bf16.msra.mxu0 0
    %1878 = vmatprep.subr.bf16.mxu0 0
    %1879 = vmatpush1.bf16.msra.mxu0 0
    %1880 = vmatprep.subr.bf16.mxu0 0
    %1881 = vmatpush1.bf16.msra.mxu0 0
    %1882 = vmatprep.subr.bf16.mxu0 0
    %1883 = vmatpush1.bf16.msra.mxu0 0
    %1884 = vmatprep.subr.bf16.mxu0 0
    %1885 = vmatpush1.bf16.msra.mxu0 0
    %1886 = vmatprep.mubr.bf16.mxu0 0
    %1887 = vmatmul.mubr.bf16.gmra.mrb[0].mxu0 %v1853
    %v1888 = vpop.f32.mrb[0].mxu0
    %v1889 = vadd.f32 0.0, %v1888
    %v1890 = vpop.f32.mrb[0].mxu0
    %v1891 = vadd.f32 0.0, %v1890
    %v1892 = vpop.f32.mrb[0].mxu0
    %v1893 = vpop.f32.mrb[0].mxu0
    %1894 = vdwg.mxu0
    %1895 = vmatprep.subr.bf16.mxu0 %v491
    %1896 = vmatpush1.bf16.msra.mxu0 %v490
    %1897 = vmatprep.subr.bf16.mxu0 %v495
    %1898 = vmatpush1.bf16.msra.mxu0 %v494
    %1899 = vmatprep.subr.bf16.mxu0 %v499
    %1900 = vmatpush1.bf16.msra.mxu0 %v498
    %1901 = vmatprep.subr.bf16.mxu0 %v503
    %1902 = vmatpush1.bf16.msra.mxu0 %v502
    %1903 = vmatprep.subr.bf16.mxu0 %v507
    %1904 = vmatpush1.bf16.msra.mxu0 %v506
    %1905 = vmatprep.subr.bf16.mxu0 %v511
    %1906 = vmatpush1.bf16.msra.mxu0 %v510
    %1907 = vmatprep.subr.bf16.mxu0 %v515
    %1908 = vmatpush1.bf16.msra.mxu0 %v514
    %1909 = vmatprep.subr.bf16.mxu0 %v519
    %1910 = vmatpush1.bf16.msra.mxu0 %v518
    %1911 = vmatprep.subr.bf16.mxu0 0
    %1912 = vmatpush1.bf16.msra.mxu0 0
    %1913 = vmatprep.subr.bf16.mxu0 0
    %1914 = vmatpush1.bf16.msra.mxu0 0
    %1915 = vmatprep.subr.bf16.mxu0 0
    %1916 = vmatpush1.bf16.msra.mxu0 0
    %1917 = vmatprep.subr.bf16.mxu0 0
    %1918 = vmatpush1.bf16.msra.mxu0 0
    %1919 = vmatprep.subr.bf16.mxu0 0
    %1920 = vmatpush1.bf16.msra.mxu0 0
    %1921 = vmatprep.subr.bf16.mxu0 0
    %1922 = vmatpush1.bf16.msra.mxu0 0
    %1923 = vmatprep.subr.bf16.mxu0 0
    %1924 = vmatpush1.bf16.msra.mxu0 0
    %1925 = vmatprep.subr.bf16.mxu0 0
    %1926 = vmatpush1.bf16.msra.mxu0 0
    %1927 = vmatprep.mubr.bf16.mxu0 0
    %1928 = vmatmul.mubr.bf16.gmra.mrb[0].mxu0 %v1853
    %v1929 = vpop.f32.mrb[0].mxu0
    %v1930 = vadd.f32 0.0, %v1929
    %v1931 = vpop.f32.mrb[0].mxu0
    %v1932 = vadd.f32 0.0, %v1931
    %v1933 = vpop.f32.mrb[0].mxu0
    %v1934 = vpop.f32.mrb[0].mxu0
    %1935 = vdwg.mxu0
    %v1936 = vadd.f32 %v283, %v1889
    %v1937 = vadd.f32 %v285, %v1891
    %v1938 = vadd.f32 %v356, %v1930
    %v1939 = vadd.f32 %v358, %v1932
    %v1940 = vxor.u32 %v1936, 2147483648
    %v1941 = vmul.f32 %v1940, 1.442695
    %v1942 = vpow.pop %v1941
    %v1943 = vadd.f32 %v1942, 1.0
    %v1944 = vrcp.pop %v1943
    %v1945 = vmul.f32 1.0, %v1944
    %v1946 = vxor.u32 %v1937, 2147483648
    %v1947 = vmul.f32 %v1946, 1.442695
    %v1948 = vpow.pop %v1947
    %v1949 = vadd.f32 %v1948, 1.0
    %v1950 = vrcp.pop %v1949
    %v1951 = vmul.f32 1.0, %v1950
    %v1952 = vtanh.pop %v1938
    %v1953 = vxor.u32 %v1939, 2147483648
    %v1954 = vmul.f32 %v1953, 1.442695
    %v1955 = vpow.pop %v1954
    %v1956 = vadd.f32 %v1955, 1.0
    %v1957 = vrcp.pop %v1956
    %v1958 = vmul.f32 1.0, %v1957
    %v1959 = vmul.f32 %v1951, %v1743
    %v1960 = vmul.f32 %v1945, %v1952
    %v1961 = vadd.f32 %v1959, %v1960
    %v1962 = vtanh.pop %v1961
    %v1963 = vmul.f32 %v1958, %v1962
    %v1964 = vpack.c.bf16 %v1852, %v1852
    %1965 = vmatprep.subr.bf16.mxu0 %v966
    %1966 = vmatpush1.bf16.msra.mxu0 %v965
    %1967 = vmatprep.subr.bf16.mxu0 %v970
    %1968 = vmatpush1.bf16.msra.mxu0 %v969
    %1969 = vmatprep.subr.bf16.mxu0 %v974
    %1970 = vmatpush1.bf16.msra.mxu0 %v973
    %1971 = vmatprep.subr.bf16.mxu0 %v978
    %1972 = vmatpush1.bf16.msra.mxu0 %v977
    %1973 = vmatprep.subr.bf16.mxu0 %v982
    %1974 = vmatpush1.bf16.msra.mxu0 %v981
    %1975 = vmatprep.subr.bf16.mxu0 %v986
    %1976 = vmatpush1.bf16.msra.mxu0 %v985
    %1977 = vmatprep.subr.bf16.mxu0 %v990
    %1978 = vmatpush1.bf16.msra.mxu0 %v989
    %1979 = vmatprep.subr.bf16.mxu0 %v994
    %1980 = vmatpush1.bf16.msra.mxu0 %v993
    %1981 = vmatprep.subr.bf16.mxu0 %v998
    %1982 = vmatpush1.bf16.msra.mxu0 %v997
    %1983 = vmatprep.subr.bf16.mxu0 %v1002
    %1984 = vmatpush1.bf16.msra.mxu0 %v1001
    %1985 = vmatprep.subr.bf16.mxu0 %v1006
    %1986 = vmatpush1.bf16.msra.mxu0 %v1005
    %1987 = vmatprep.subr.bf16.mxu0 %v1010
    %1988 = vmatpush1.bf16.msra.mxu0 %v1009
    %1989 = vmatprep.subr.bf16.mxu0 %v1014
    %1990 = vmatpush1.bf16.msra.mxu0 %v1013
    %1991 = vmatprep.subr.bf16.mxu0 %v1018
    %1992 = vmatpush1.bf16.msra.mxu0 %v1017
    %1993 = vmatprep.subr.bf16.mxu0 %v1022
    %1994 = vmatpush1.bf16.msra.mxu0 %v1021
    %1995 = vmatprep.subr.bf16.mxu0 %v1026
    %1996 = vmatpush1.bf16.msra.mxu0 %v1025
    %1997 = vmatprep.mubr.bf16.mxu0 %v1964
    %1998 = vmatmul.mubr.bf16.gmra.mrb[0].mxu0 %v1853
    %v1999 = vpop.f32.mrb[0].mxu0
    %v2000 = vadd.f32 %v375, %v1999
    %v2001 = vpop.f32.mrb[0].mxu0
    %v2002 = vadd.f32 %v379, %v2001
    %v2003 = vpop.f32.mrb[0].mxu0
    %v2004 = vpop.f32.mrb[0].mxu0
    %2005 = vdwg.mxu0
    %2006 = vmatprep.subr.bf16.mxu0 %v968
    %2007 = vmatpush1.bf16.msra.mxu0 %v967
    %2008 = vmatprep.subr.bf16.mxu0 %v972
    %2009 = vmatpush1.bf16.msra.mxu0 %v971
    %2010 = vmatprep.subr.bf16.mxu0 %v976
    %2011 = vmatpush1.bf16.msra.mxu0 %v975
    %2012 = vmatprep.subr.bf16.mxu0 %v980
    %2013 = vmatpush1.bf16.msra.mxu0 %v979
    %2014 = vmatprep.subr.bf16.mxu0 %v984
    %2015 = vmatpush1.bf16.msra.mxu0 %v983
    %2016 = vmatprep.subr.bf16.mxu0 %v988
    %2017 = vmatpush1.bf16.msra.mxu0 %v987
    %2018 = vmatprep.subr.bf16.mxu0 %v992
    %2019 = vmatpush1.bf16.msra.mxu0 %v991
    %2020 = vmatprep.subr.bf16.mxu0 %v996
    %2021 = vmatpush1.bf16.msra.mxu0 %v995
    %2022 = vmatprep.subr.bf16.mxu0 %v1000
    %2023 = vmatpush1.bf16.msra.mxu0 %v999
    %2024 = vmatprep.subr.bf16.mxu0 %v1004
    %2025 = vmatpush1.bf16.msra.mxu0 %v1003
    %2026 = vmatprep.subr.bf16.mxu0 %v1008
    %2027 = vmatpush1.bf16.msra.mxu0 %v1007
    %2028 = vmatprep.subr.bf16.mxu0 %v1012
    %2029 = vmatpush1.bf16.msra.mxu0 %v1011
    %2030 = vmatprep.subr.bf16.mxu0 %v1016
    %2031 = vmatpush1.bf16.msra.mxu0 %v1015
    %2032 = vmatprep.subr.bf16.mxu0 %v1020
    %2033 = vmatpush1.bf16.msra.mxu0 %v1019
    %2034 = vmatprep.subr.bf16.mxu0 %v1024
    %2035 = vmatpush1.bf16.msra.mxu0 %v1023
    %2036 = vmatprep.subr.bf16.mxu0 %v1028
    %2037 = vmatpush1.bf16.msra.mxu0 %v1027
    %2038 = vmatprep.mubr.bf16.mxu0 %v1964
    %2039 = vmatmul.mubr.bf16.gmra.mrb[0].mxu0 %v1853
    %v2040 = vpop.f32.mrb[0].mxu0
    %v2041 = vadd.f32 %v383, %v2040
    %v2042 = vpop.f32.mrb[0].mxu0
    %v2043 = vadd.f32 %v387, %v2042
    %v2044 = vpop.f32.mrb[0].mxu0
    %v2045 = vpop.f32.mrb[0].mxu0
    %2046 = vdwg.mxu0
    %v2047 = vxor.u32 %v2000, 2147483648
    %v2048 = vmul.f32 %v2047, 1.442695
    %v2049 = vpow.pop %v2048
    %v2050 = vadd.f32 %v2049, 1.0
    %v2051 = vrcp.pop %v2050
    %v2052 = vmul.f32 1.0, %v2051
    %v2053 = vxor.u32 %v2002, 2147483648
    %v2054 = vmul.f32 %v2053, 1.442695
    %v2055 = vpow.pop %v2054
    %v2056 = vadd.f32 %v2055, 1.0
    %v2057 = vrcp.pop %v2056
    %v2058 = vmul.f32 1.0, %v2057
    %v2059 = vtanh.pop %v2041
    %v2060 = vxor.u32 %v2043, 2147483648
    %v2061 = vmul.f32 %v2060, 1.442695
    %v2062 = vpow.pop %v2061
    %v2063 = vadd.f32 %v2062, 1.0
    %v2064 = vrcp.pop %v2063
    %v2065 = vmul.f32 1.0, %v2064
    %v2066 = vmul.f32 %v2058, %v1850
    %v2067 = vmul.f32 %v2052, %v2059
    %v2068 = vadd.f32 %v2066, %v2067
    %v2069 = vtanh.pop %v2068
    %v2070 = vmul.f32 %v2065, %v2069
    %v2071 = vpack.c.bf16 %v1963, %v1963
    %2072 = vmatprep.subr.bf16.mxu0 %v489
    %2073 = vmatpush1.bf16.msra.mxu0 %v488
    %2074 = vmatprep.subr.bf16.mxu0 %v493
    %2075 = vmatpush1.bf16.msra.mxu0 %v492
    %2076 = vmatprep.subr.bf16.mxu0 %v497
    %2077 = vmatpush1.bf16.msra.mxu0 %v496
    %2078 = vmatprep.subr.bf16.mxu0 %v501
    %2079 = vmatpush1.bf16.msra.mxu0 %v500
    %2080 = vmatprep.subr.bf16.mxu0 %v505
    %2081 = vmatpush1.bf16.msra.mxu0 %v504
    %2082 = vmatprep.subr.bf16.mxu0 %v509
    %2083 = vmatpush1.bf16.msra.mxu0 %v508
    %2084 = vmatprep.subr.bf16.mxu0 %v513
    %2085 = vmatpush1.bf16.msra.mxu0 %v512
    %2086 = vmatprep.subr.bf16.mxu0 %v517
    %2087 = vmatpush1.bf16.msra.mxu0 %v516
    %2088 = vmatprep.subr.bf16.mxu0 0
    %2089 = vmatpush1.bf16.msra.mxu0 0
    %2090 = vmatprep.subr.bf16.mxu0 0
    %2091 = vmatpush1.bf16.msra.mxu0 0
    %2092 = vmatprep.subr.bf16.mxu0 0
    %2093 = vmatpush1.bf16.msra.mxu0 0
    %2094 = vmatprep.subr.bf16.mxu0 0
    %2095 = vmatpush1.bf16.msra.mxu0 0
    %2096 = vmatprep.subr.bf16.mxu0 0
    %2097 = vmatpush1.bf16.msra.mxu0 0
    %2098 = vmatprep.subr.bf16.mxu0 0
    %2099 = vmatpush1.bf16.msra.mxu0 0
    %2100 = vmatprep.subr.bf16.mxu0 0
    %2101 = vmatpush1.bf16.msra.mxu0 0
    %2102 = vmatprep.subr.bf16.mxu0 0
    %2103 = vmatpush1.bf16.msra.mxu0 0
    %2104 = vmatprep.mubr.bf16.mxu0 0
    %2105 = vmatmul.mubr.bf16.gmra.mrb[0].mxu0 %v2071
    %v2106 = vpop.f32.mrb[0].mxu0
    %v2107 = vadd.f32 0.0, %v2106
    %v2108 = vpop.f32.mrb[0].mxu0
    %v2109 = vadd.f32 0.0, %v2108
    %v2110 = vpop.f32.mrb[0].mxu0
    %v2111 = vpop.f32.mrb[0].mxu0
    %2112 = vdwg.mxu0
    %2113 = vmatprep.subr.bf16.mxu0 %v491
    %2114 = vmatpush1.bf16.msra.mxu0 %v490
    %2115 = vmatprep.subr.bf16.mxu0 %v495
    %2116 = vmatpush1.bf16.msra.mxu0 %v494
    %2117 = vmatprep.subr.bf16.mxu0 %v499
    %2118 = vmatpush1.bf16.msra.mxu0 %v498
    %2119 = vmatprep.subr.bf16.mxu0 %v503
    %2120 = vmatpush1.bf16.msra.mxu0 %v502
    %2121 = vmatprep.subr.bf16.mxu0 %v507
    %2122 = vmatpush1.bf16.msra.mxu0 %v506
    %2123 = vmatprep.subr.bf16.mxu0 %v511
    %2124 = vmatpush1.bf16.msra.mxu0 %v510
    %2125 = vmatprep.subr.bf16.mxu0 %v515
    %2126 = vmatpush1.bf16.msra.mxu0 %v514
    %2127 = vmatprep.subr.bf16.mxu0 %v519
    %2128 = vmatpush1.bf16.msra.mxu0 %v518
    %2129 = vmatprep.subr.bf16.mxu0 0
    %2130 = vmatpush1.bf16.msra.mxu0 0
    %2131 = vmatprep.subr.bf16.mxu0 0
    %2132 = vmatpush1.bf16.msra.mxu0 0
    %2133 = vmatprep.subr.bf16.mxu0 0
    %2134 = vmatpush1.bf16.msra.mxu0 0
    %2135 = vmatprep.subr.bf16.mxu0 0
    %2136 = vmatpush1.bf16.msra.mxu0 0
    %2137 = vmatprep.subr.bf16.mxu0 0
    %2138 = vmatpush1.bf16.msra.mxu0 0
    %2139 = vmatprep.subr.bf16.mxu0 0
    %2140 = vmatpush1.bf16.msra.mxu0 0
    %2141 = vmatprep.subr.bf16.mxu0 0
    %2142 = vmatpush1.bf16.msra.mxu0 0
    %2143 = vmatprep.subr.bf16.mxu0 0
    %2144 = vmatpush1.bf16.msra.mxu0 0
    %2145 = vmatprep.mubr.bf16.mxu0 0
    %2146 = vmatmul.mubr.bf16.gmra.mrb[0].mxu0 %v2071
    %v2147 = vpop.f32.mrb[0].mxu0
    %v2148 = vadd.f32 0.0, %v2147
    %v2149 = vpop.f32.mrb[0].mxu0
    %v2150 = vadd.f32 0.0, %v2149
    %v2151 = vpop.f32.mrb[0].mxu0
    %v2152 = vpop.f32.mrb[0].mxu0
    %2153 = vdwg.mxu0
    %v2154 = vadd.f32 %v289, %v2107
    %v2155 = vadd.f32 %v291, %v2109
    %v2156 = vadd.f32 %v362, %v2148
    %v2157 = vadd.f32 %v364, %v2150
    %v2158 = vxor.u32 %v2154, 2147483648
    %v2159 = vmul.f32 %v2158, 1.442695
    %v2160 = vpow.pop %v2159
    %v2161 = vadd.f32 %v2160, 1.0
    %v2162 = vrcp.pop %v2161
    %v2163 = vmul.f32 1.0, %v2162
    %v2164 = vxor.u32 %v2155, 2147483648
    %v2165 = vmul.f32 %v2164, 1.442695
    %v2166 = vpow.pop %v2165
    %v2167 = vadd.f32 %v2166, 1.0
    %v2168 = vrcp.pop %v2167
    %v2169 = vmul.f32 1.0, %v2168
    %v2170 = vtanh.pop %v2156
    %v2171 = vxor.u32 %v2157, 2147483648
    %v2172 = vmul.f32 %v2171, 1.442695
    %v2173 = vpow.pop %v2172
    %v2174 = vadd.f32 %v2173, 1.0
    %v2175 = vrcp.pop %v2174
    %v2176 = vmul.f32 1.0, %v2175
    %v2177 = vmul.f32 %v2169, %v1961
    %v2178 = vmul.f32 %v2163, %v2170
    %v2179 = vadd.f32 %v2177, %v2178
    %v2180 = vtanh.pop %v2179
    %v2181 = vmul.f32 %v2176, %v2180
    %v2182 = vpack.c.bf16 %v2070, %v2070
    %2183 = vmatprep.subr.bf16.mxu0 %v966
    %2184 = vmatpush1.bf16.msra.mxu0 %v965
    %2185 = vmatprep.subr.bf16.mxu0 %v970
    %2186 = vmatpush1.bf16.msra.mxu0 %v969
    %2187 = vmatprep.subr.bf16.mxu0 %v974
    %2188 = vmatpush1.bf16.msra.mxu0 %v973
    %2189 = vmatprep.subr.bf16.mxu0 %v978
    %2190 = vmatpush1.bf16.msra.mxu0 %v977
    %2191 = vmatprep.subr.bf16.mxu0 %v982
    %2192 = vmatpush1.bf16.msra.mxu0 %v981
    %2193 = vmatprep.subr.bf16.mxu0 %v986
    %2194 = vmatpush1.bf16.msra.mxu0 %v985
    %2195 = vmatprep.subr.bf16.mxu0 %v990
    %2196 = vmatpush1.bf16.msra.mxu0 %v989
    %2197 = vmatprep.subr.bf16.mxu0 %v994
    %2198 = vmatpush1.bf16.msra.mxu0 %v993
    %2199 = vmatprep.subr.bf16.mxu0 %v998
    %2200 = vmatpush1.bf16.msra.mxu0 %v997
    %2201 = vmatprep.subr.bf16.mxu0 %v1002
    %2202 = vmatpush1.bf16.msra.mxu0 %v1001
    %2203 = vmatprep.subr.bf16.mxu0 %v1006
    %2204 = vmatpush1.bf16.msra.mxu0 %v1005
    %2205 = vmatprep.subr.bf16.mxu0 %v1010
    %2206 = vmatpush1.bf16.msra.mxu0 %v1009
    %2207 = vmatprep.subr.bf16.mxu0 %v1014
    %2208 = vmatpush1.bf16.msra.mxu0 %v1013
    %2209 = vmatprep.subr.bf16.mxu0 %v1018
    %2210 = vmatpush1.bf16.msra.mxu0 %v1017
    %2211 = vmatprep.subr.bf16.mxu0 %v1022
    %2212 = vmatpush1.bf16.msra.mxu0 %v1021
    %2213 = vmatprep.subr.bf16.mxu0 %v1026
    %2214 = vmatpush1.bf16.msra.mxu0 %v1025
    %2215 = vmatprep.mubr.bf16.mxu0 %v2182
    %2216 = vmatmul.mubr.bf16.gmra.mrb[0].mxu0 %v2071
    %v2217 = vpop.f32.mrb[0].mxu0
    %v2218 = vadd.f32 %v375, %v2217
    %v2219 = vpop.f32.mrb[0].mxu0
    %v2220 = vadd.f32 %v379, %v2219
    %v2221 = vpop.f32.mrb[0].mxu0
    %v2222 = vpop.f32.mrb[0].mxu0
    %2223 = vdwg.mxu0
    %2224 = vmatprep.subr.bf16.mxu0 %v968
    %2225 = vmatpush1.bf16.msra.mxu0 %v967
    %2226 = vmatprep.subr.bf16.mxu0 %v972
    %2227 = vmatpush1.bf16.msra.mxu0 %v971
    %2228 = vmatprep.subr.bf16.mxu0 %v976
    %2229 = vmatpush1.bf16.msra.mxu0 %v975
    %2230 = vmatprep.subr.bf16.mxu0 %v980
    %2231 = vmatpush1.bf16.msra.mxu0 %v979
    %2232 = vmatprep.subr.bf16.mxu0 %v984
    %2233 = vmatpush1.bf16.msra.mxu0 %v983
    %2234 = vmatprep.subr.bf16.mxu0 %v988
    %2235 = vmatpush1.bf16.msra.mxu0 %v987
    %2236 = vmatprep.subr.bf16.mxu0 %v992
    %2237 = vmatpush1.bf16.msra.mxu0 %v991
    %2238 = vmatprep.subr.bf16.mxu0 %v996
    %2239 = vmatpush1.bf16.msra.mxu0 %v995
    %2240 = vmatprep.subr.bf16.mxu0 %v1000
    %2241 = vmatpush1.bf16.msra.mxu0 %v999
    %2242 = vmatprep.subr.bf16.mxu0 %v1004
    %2243 = vmatpush1.bf16.msra.mxu0 %v1003
    %2244 = vmatprep.subr.bf16.mxu0 %v1008
    %2245 = vmatpush1.bf16.msra.mxu0 %v1007
    %2246 = vmatprep.subr.bf16.mxu0 %v1012
    %2247 = vmatpush1.bf16.msra.mxu0 %v1011
    %2248 = vmatprep.subr.bf16.mxu0 %v1016
    %2249 = vmatpush1.bf16.msra.mxu0 %v1015
    %2250 = vmatprep.subr.bf16.mxu0 %v1020
    %2251 = vmatpush1.bf16.msra.mxu0 %v1019
    %2252 = vmatprep.subr.bf16.mxu0 %v1024
    %2253 = vmatpush1.bf16.msra.mxu0 %v1023
    %2254 = vmatprep.subr.bf16.mxu0 %v1028
    %2255 = vmatpush1.bf16.msra.mxu0 %v1027
    %2256 = vmatprep.mubr.bf16.mxu0 %v2182
    %2257 = vmatmul.mubr.bf16.gmra.mrb[0].mxu0 %v2071
    %v2258 = vpop.f32.mrb[0].mxu0
    %v2259 = vadd.f32 %v383, %v2258
    %v2260 = vpop.f32.mrb[0].mxu0
    %v2261 = vadd.f32 %v387, %v2260
    %v2262 = vpop.f32.mrb[0].mxu0
    %v2263 = vpop.f32.mrb[0].mxu0
    %2264 = vdwg.mxu0
    %v2265 = vxor.u32 %v2218, 2147483648
    %v2266 = vmul.f32 %v2265, 1.442695
    %v2267 = vpow.pop %v2266
    %v2268 = vadd.f32 %v2267, 1.0
    %v2269 = vrcp.pop %v2268
    %v2270 = vmul.f32 1.0, %v2269
    %v2271 = vxor.u32 %v2220, 2147483648
    %v2272 = vmul.f32 %v2271, 1.442695
    %v2273 = vpow.pop %v2272
    %v2274 = vadd.f32 %v2273, 1.0
    %v2275 = vrcp.pop %v2274
    %v2276 = vmul.f32 1.0, %v2275
    %v2277 = vtanh.pop %v2259
    %v2278 = vxor.u32 %v2261, 2147483648
    %v2279 = vmul.f32 %v2278, 1.442695
    %v2280 = vpow.pop %v2279
    %v2281 = vadd.f32 %v2280, 1.0
    %v2282 = vrcp.pop %v2281
    %v2283 = vmul.f32 1.0, %v2282
    %v2284 = vmul.f32 %v2276, %v2068
    %v2285 = vmul.f32 %v2270, %v2277
    %v2286 = vadd.f32 %v2284, %v2285
    %v2287 = vtanh.pop %v2286
    %v2288 = vmul.f32 %v2283, %v2287
    %v2289 = vpack.c.bf16 %v2181, %v2181
    %2290 = vmatprep.subr.bf16.mxu0 %v489
    %2291 = vmatpush1.bf16.msra.mxu0 %v488
    %2292 = vmatprep.subr.bf16.mxu0 %v493
    %2293 = vmatpush1.bf16.msra.mxu0 %v492
    %2294 = vmatprep.subr.bf16.mxu0 %v497
    %2295 = vmatpush1.bf16.msra.mxu0 %v496
    %2296 = vmatprep.subr.bf16.mxu0 %v501
    %2297 = vmatpush1.bf16.msra.mxu0 %v500
    %2298 = vmatprep.subr.bf16.mxu0 %v505
    %2299 = vmatpush1.bf16.msra.mxu0 %v504
    %2300 = vmatprep.subr.bf16.mxu0 %v509
    %2301 = vmatpush1.bf16.msra.mxu0 %v508
    %2302 = vmatprep.subr.bf16.mxu0 %v513
    %2303 = vmatpush1.bf16.msra.mxu0 %v512
    %2304 = vmatprep.subr.bf16.mxu0 %v517
    %2305 = vmatpush1.bf16.msra.mxu0 %v516
    %2306 = vmatprep.subr.bf16.mxu0 0
    %2307 = vmatpush1.bf16.msra.mxu0 0
    %2308 = vmatprep.subr.bf16.mxu0 0
    %2309 = vmatpush1.bf16.msra.mxu0 0
    %2310 = vmatprep.subr.bf16.mxu0 0
    %2311 = vmatpush1.bf16.msra.mxu0 0
    %2312 = vmatprep.subr.bf16.mxu0 0
    %2313 = vmatpush1.bf16.msra.mxu0 0
    %2314 = vmatprep.subr.bf16.mxu0 0
    %2315 = vmatpush1.bf16.msra.mxu0 0
    %2316 = vmatprep.subr.bf16.mxu0 0
    %2317 = vmatpush1.bf16.msra.mxu0 0
    %2318 = vmatprep.subr.bf16.mxu0 0
    %2319 = vmatpush1.bf16.msra.mxu0 0
    %2320 = vmatprep.subr.bf16.mxu0 0
    %2321 = vmatpush1.bf16.msra.mxu0 0
    %2322 = vmatprep.mubr.bf16.mxu0 0
    %2323 = vmatmul.mubr.bf16.gmra.mrb[0].mxu0 %v2289
    %v2324 = vpop.f32.mrb[0].mxu0
    %v2325 = vadd.f32 0.0, %v2324
    %v2326 = vpop.f32.mrb[0].mxu0
    %v2327 = vadd.f32 0.0, %v2326
    %v2328 = vpop.f32.mrb[0].mxu0
    %v2329 = vpop.f32.mrb[0].mxu0
    %2330 = vdwg.mxu0
    %2331 = vmatprep.subr.bf16.mxu0 %v491
    %2332 = vmatpush1.bf16.msra.mxu0 %v490
    %2333 = vmatprep.subr.bf16.mxu0 %v495
    %2334 = vmatpush1.bf16.msra.mxu0 %v494
    %2335 = vmatprep.subr.bf16.mxu0 %v499
    %2336 = vmatpush1.bf16.msra.mxu0 %v498
    %2337 = vmatprep.subr.bf16.mxu0 %v503
    %2338 = vmatpush1.bf16.msra.mxu0 %v502
    %2339 = vmatprep.subr.bf16.mxu0 %v507
    %2340 = vmatpush1.bf16.msra.mxu0 %v506
    %2341 = vmatprep.subr.bf16.mxu0 %v511
    %2342 = vmatpush1.bf16.msra.mxu0 %v510
    %2343 = vmatprep.subr.bf16.mxu0 %v515
    %2344 = vmatpush1.bf16.msra.mxu0 %v514
    %2345 = vmatprep.subr.bf16.mxu0 %v519
    %2346 = vmatpush1.bf16.msra.mxu0 %v518
    %2347 = vmatprep.subr.bf16.mxu0 0
    %2348 = vmatpush1.bf16.msra.mxu0 0
    %2349 = vmatprep.subr.bf16.mxu0 0
    %2350 = vmatpush1.bf16.msra.mxu0 0
    %2351 = vmatprep.subr.bf16.mxu0 0
    %2352 = vmatpush1.bf16.msra.mxu0 0
    %2353 = vmatprep.subr.bf16.mxu0 0
    %2354 = vmatpush1.bf16.msra.mxu0 0
    %2355 = vmatprep.subr.bf16.mxu0 0
    %2356 = vmatpush1.bf16.msra.mxu0 0
    %2357 = vmatprep.subr.bf16.mxu0 0
    %2358 = vmatpush1.bf16.msra.mxu0 0
    %2359 = vmatprep.subr.bf16.mxu0 0
    %2360 = vmatpush1.bf16.msra.mxu0 0
    %2361 = vmatprep.subr.bf16.mxu0 0
    %2362 = vmatpush1.bf16.msra.mxu0 0
    %2363 = vmatprep.mubr.bf16.mxu0 0
    %2364 = vmatmul.mubr.bf16.gmra.mrb[0].mxu0 %v2289
    %v2365 = vpop.f32.mrb[0].mxu0
    %v2366 = vadd.f32 0.0, %v2365
    %v2367 = vpop.f32.mrb[0].mxu0
    %v2368 = vadd.f32 0.0, %v2367
    %v2369 = vpop.f32.mrb[0].mxu0
    %v2370 = vpop.f32.mrb[0].mxu0
    %2371 = vdwg.mxu0
    %v2372 = vadd.f32 %v293, %v2325
    %v2373 = vadd.f32 %v295, %v2327
    %v2374 = vadd.f32 %v366, %v2366
    %v2375 = vadd.f32 %v368, %v2368
    %v2376 = vxor.u32 %v2372, 2147483648
    %v2377 = vmul.f32 %v2376, 1.442695
    %v2378 = vpow.pop %v2377
    %v2379 = vadd.f32 %v2378, 1.0
    %v2380 = vrcp.pop %v2379
    %v2381 = vmul.f32 1.0, %v2380
    %v2382 = vxor.u32 %v2373, 2147483648
    %v2383 = vmul.f32 %v2382, 1.442695
    %v2384 = vpow.pop %v2383
    %v2385 = vadd.f32 %v2384, 1.0
    %v2386 = vrcp.pop %v2385
    %v2387 = vmul.f32 1.0, %v2386
    %v2388 = vtanh.pop %v2374
    %v2389 = vxor.u32 %v2375, 2147483648
    %v2390 = vmul.f32 %v2389, 1.442695
    %v2391 = vpow.pop %v2390
    %v2392 = vadd.f32 %v2391, 1.0
    %v2393 = vrcp.pop %v2392
    %v2394 = vmul.f32 1.0, %v2393
    %v2395 = vmul.f32 %v2387, %v2179
    %v2396 = vmul.f32 %v2381, %v2388
    %v2397 = vadd.f32 %v2395, %v2396
    %v2398 = vtanh.pop %v2397
    %v2399 = vmul.f32 %v2394, %v2398
    %v2400 = vpack.c.bf16 %v2288, %v2288
    %2401 = vmatprep.subr.bf16.mxu0 %v966
    %2402 = vmatpush1.bf16.msra.mxu0 %v965
    %2403 = vmatprep.subr.bf16.mxu0 %v970
    %2404 = vmatpush1.bf16.msra.mxu0 %v969
    %2405 = vmatprep.subr.bf16.mxu0 %v974
    %2406 = vmatpush1.bf16.msra.mxu0 %v973
    %2407 = vmatprep.subr.bf16.mxu0 %v978
    %2408 = vmatpush1.bf16.msra.mxu0 %v977
    %2409 = vmatprep.subr.bf16.mxu0 %v982
    %2410 = vmatpush1.bf16.msra.mxu0 %v981
    %2411 = vmatprep.subr.bf16.mxu0 %v986
    %2412 = vmatpush1.bf16.msra.mxu0 %v985
    %2413 = vmatprep.subr.bf16.mxu0 %v990
    %2414 = vmatpush1.bf16.msra.mxu0 %v989
    %2415 = vmatprep.subr.bf16.mxu0 %v994
    %2416 = vmatpush1.bf16.msra.mxu0 %v993
    %2417 = vmatprep.subr.bf16.mxu0 %v998
    %2418 = vmatpush1.bf16.msra.mxu0 %v997
    %2419 = vmatprep.subr.bf16.mxu0 %v1002
    %2420 = vmatpush1.bf16.msra.mxu0 %v1001
    %2421 = vmatprep.subr.bf16.mxu0 %v1006
    %2422 = vmatpush1.bf16.msra.mxu0 %v1005
    %2423 = vmatprep.subr.bf16.mxu0 %v1010
    %2424 = vmatpush1.bf16.msra.mxu0 %v1009
    %2425 = vmatprep.subr.bf16.mxu0 %v1014
    %2426 = vmatpush1.bf16.msra.mxu0 %v1013
    %2427 = vmatprep.subr.bf16.mxu0 %v1018
    %2428 = vmatpush1.bf16.msra.mxu0 %v1017
    %2429 = vmatprep.subr.bf16.mxu0 %v1022
    %2430 = vmatpush1.bf16.msra.mxu0 %v1021
    %2431 = vmatprep.subr.bf16.mxu0 %v1026
    %2432 = vmatpush1.bf16.msra.mxu0 %v1025
    %2433 = vmatprep.mubr.bf16.mxu0 %v2400
    %2434 = vmatmul.mubr.bf16.gmra.mrb[0].mxu0 %v2289
    %v2435 = vpop.f32.mrb[0].mxu0
    %v2436 = vadd.f32 %v375, %v2435
    %v2437 = vpop.f32.mrb[0].mxu0
    %v2438 = vadd.f32 %v379, %v2437
    %v2439 = vpop.f32.mrb[0].mxu0
    %v2440 = vpop.f32.mrb[0].mxu0
    %2441 = vdwg.mxu0
    %2442 = vmatprep.subr.bf16.mxu0 %v968
    %2443 = vmatpush1.bf16.msra.mxu0 %v967
    %2444 = vmatprep.subr.bf16.mxu0 %v972
    %2445 = vmatpush1.bf16.msra.mxu0 %v971
    %2446 = vmatprep.subr.bf16.mxu0 %v976
    %2447 = vmatpush1.bf16.msra.mxu0 %v975
    %2448 = vmatprep.subr.bf16.mxu0 %v980
    %2449 = vmatpush1.bf16.msra.mxu0 %v979
    %2450 = vmatprep.subr.bf16.mxu0 %v984
    %2451 = vmatpush1.bf16.msra.mxu0 %v983
    %2452 = vmatprep.subr.bf16.mxu0 %v988
    %2453 = vmatpush1.bf16.msra.mxu0 %v987
    %2454 = vmatprep.subr.bf16.mxu0 %v992
    %2455 = vmatpush1.bf16.msra.mxu0 %v991
    %2456 = vmatprep.subr.bf16.mxu0 %v996
    %2457 = vmatpush1.bf16.msra.mxu0 %v995
    %2458 = vmatprep.subr.bf16.mxu0 %v1000
    %2459 = vmatpush1.bf16.msra.mxu0 %v999
    %2460 = vmatprep.subr.bf16.mxu0 %v1004
    %2461 = vmatpush1.bf16.msra.mxu0 %v1003
    %2462 = vmatprep.subr.bf16.mxu0 %v1008
    %2463 = vmatpush1.bf16.msra.mxu0 %v1007
    %2464 = vmatprep.subr.bf16.mxu0 %v1012
    %2465 = vmatpush1.bf16.msra.mxu0 %v1011
    %2466 = vmatprep.subr.bf16.mxu0 %v1016
    %2467 = vmatpush1.bf16.msra.mxu0 %v1015
    %2468 = vmatprep.subr.bf16.mxu0 %v1020
    %2469 = vmatpush1.bf16.msra.mxu0 %v1019
    %2470 = vmatprep.subr.bf16.mxu0 %v1024
    %2471 = vmatpush1.bf16.msra.mxu0 %v1023
    %2472 = vmatprep.subr.bf16.mxu0 %v1028
    %2473 = vmatpush1.bf16.msra.mxu0 %v1027
    %2474 = vmatprep.mubr.bf16.mxu0 %v2400
    %2475 = vmatmul.mubr.bf16.gmra.mrb[0].mxu0 %v2289
    %v2476 = vpop.f32.mrb[0].mxu0
    %v2477 = vadd.f32 %v383, %v2476
    %v2478 = vpop.f32.mrb[0].mxu0
    %v2479 = vadd.f32 %v387, %v2478
    %v2480 = vpop.f32.mrb[0].mxu0
    %v2481 = vpop.f32.mrb[0].mxu0
    %2482 = vdwg.mxu0
    %v2483 = vxor.u32 %v2436, 2147483648
    %v2484 = vmul.f32 %v2483, 1.442695
    %v2485 = vpow.pop %v2484
    %v2486 = vadd.f32 %v2485, 1.0
    %v2487 = vrcp.pop %v2486
    %v2488 = vmul.f32 1.0, %v2487
    %v2489 = vxor.u32 %v2438, 2147483648
    %v2490 = vmul.f32 %v2489, 1.442695
    %v2491 = vpow.pop %v2490
    %v2492 = vadd.f32 %v2491, 1.0
    %v2493 = vrcp.pop %v2492
    %v2494 = vmul.f32 1.0, %v2493
    %v2495 = vtanh.pop %v2477
    %v2496 = vxor.u32 %v2479, 2147483648
    %v2497 = vmul.f32 %v2496, 1.442695
    %v2498 = vpow.pop %v2497
    %v2499 = vadd.f32 %v2498, 1.0
    %v2500 = vrcp.pop %v2499
    %v2501 = vmul.f32 1.0, %v2500
    %v2502 = vmul.f32 %v2494, %v2286
    %v2503 = vmul.f32 %v2488, %v2495
    %v2504 = vadd.f32 %v2502, %v2503
    %v2505 = vtanh.pop %v2504
    %v2506 = vmul.f32 %v2501, %v2505
    %v2507 = vpack.c.bf16 %v2399, %v2399
    %v2508 = vpack.c.bf16 %v2506, %v2506
    %2509 = vmatprep.subr.bf16.mxu0 %v966
    %2510 = vmatpush1.bf16.msra.mxu0 %v965
    %2511 = vmatprep.subr.bf16.mxu0 %v970
    %2512 = vmatpush1.bf16.msra.mxu0 %v969
    %2513 = vmatprep.subr.bf16.mxu0 %v974
    %2514 = vmatpush1.bf16.msra.mxu0 %v973
    %2515 = vmatprep.subr.bf16.mxu0 %v978
    %2516 = vmatpush1.bf16.msra.mxu0 %v977
    %2517 = vmatprep.subr.bf16.mxu0 %v982
    %2518 = vmatpush1.bf16.msra.mxu0 %v981
    %2519 = vmatprep.subr.bf16.mxu0 %v986
    %2520 = vmatpush1.bf16.msra.mxu0 %v985
    %2521 = vmatprep.subr.bf16.mxu0 %v990
    %2522 = vmatpush1.bf16.msra.mxu0 %v989
    %2523 = vmatprep.subr.bf16.mxu0 %v994
    %2524 = vmatpush1.bf16.msra.mxu0 %v993
    %2525 = vmatprep.subr.bf16.mxu0 %v998
    %2526 = vmatpush1.bf16.msra.mxu0 %v997
    %2527 = vmatprep.subr.bf16.mxu0 %v1002
    %2528 = vmatpush1.bf16.msra.mxu0 %v1001
    %2529 = vmatprep.subr.bf16.mxu0 %v1006
    %2530 = vmatpush1.bf16.msra.mxu0 %v1005
    %2531 = vmatprep.subr.bf16.mxu0 %v1010
    %2532 = vmatpush1.bf16.msra.mxu0 %v1009
    %2533 = vmatprep.subr.bf16.mxu0 %v1014
    %2534 = vmatpush1.bf16.msra.mxu0 %v1013
    %2535 = vmatprep.subr.bf16.mxu0 %v1018
    %2536 = vmatpush1.bf16.msra.mxu0 %v1017
    %2537 = vmatprep.subr.bf16.mxu0 %v1022
    %2538 = vmatpush1.bf16.msra.mxu0 %v1021
    %2539 = vmatprep.subr.bf16.mxu0 %v1026
    %2540 = vmatpush1.bf16.msra.mxu0 %v1025
    %2541 = vmatprep.mubr.bf16.mxu0 %v2508
    %2542 = vmatmul.mubr.bf16.gmra.mrb[0].mxu0 %v2507
    %v2543 = vpop.f32.mrb[0].mxu0
    %v2544 = vadd.f32 %v375, %v2543
    %v2545 = vpop.f32.mrb[0].mxu0
    %v2546 = vadd.f32 %v379, %v2545
    %v2547 = vpop.f32.mrb[0].mxu0
    %v2548 = vpop.f32.mrb[0].mxu0
    %2549 = vdwg.mxu0
    %2550 = vmatprep.subr.bf16.mxu0 %v968
    %2551 = vmatpush1.bf16.msra.mxu0 %v967
    %2552 = vmatprep.subr.bf16.mxu0 %v972
    %2553 = vmatpush1.bf16.msra.mxu0 %v971
    %2554 = vmatprep.subr.bf16.mxu0 %v976
    %2555 = vmatpush1.bf16.msra.mxu0 %v975
    %2556 = vmatprep.subr.bf16.mxu0 %v980
    %2557 = vmatpush1.bf16.msra.mxu0 %v979
    %2558 = vmatprep.subr.bf16.mxu0 %v984
    %2559 = vmatpush1.bf16.msra.mxu0 %v983
    %2560 = vmatprep.subr.bf16.mxu0 %v988
    %2561 = vmatpush1.bf16.msra.mxu0 %v987
    %2562 = vmatprep.subr.bf16.mxu0 %v992
    %2563 = vmatpush1.bf16.msra.mxu0 %v991
    %2564 = vmatprep.subr.bf16.mxu0 %v996
    %2565 = vmatpush1.bf16.msra.mxu0 %v995
    %2566 = vmatprep.subr.bf16.mxu0 %v1000
    %2567 = vmatpush1.bf16.msra.mxu0 %v999
    %2568 = vmatprep.subr.bf16.mxu0 %v1004
    %2569 = vmatpush1.bf16.msra.mxu0 %v1003
    %2570 = vmatprep.subr.bf16.mxu0 %v1008
    %2571 = vmatpush1.bf16.msra.mxu0 %v1007
    %2572 = vmatprep.subr.bf16.mxu0 %v1012
    %2573 = vmatpush1.bf16.msra.mxu0 %v1011
    %2574 = vmatprep.subr.bf16.mxu0 %v1016
    %2575 = vmatpush1.bf16.msra.mxu0 %v1015
    %2576 = vmatprep.subr.bf16.mxu0 %v1020
    %2577 = vmatpush1.bf16.msra.mxu0 %v1019
    %2578 = vmatprep.subr.bf16.mxu0 %v1024
    %2579 = vmatpush1.bf16.msra.mxu0 %v1023
    %2580 = vmatprep.subr.bf16.mxu0 %v1028
    %2581 = vmatpush1.bf16.msra.mxu0 %v1027
    %2582 = vmatprep.mubr.bf16.mxu0 %v2508
    %2583 = vmatmul.mubr.bf16.gmra.mrb[0].mxu0 %v2507
    %v2584 = vpop.f32.mrb[0].mxu0
    %v2585 = vadd.f32 %v383, %v2584
    %v2586 = vpop.f32.mrb[0].mxu0
    %v2587 = vadd.f32 %v387, %v2586
    %v2588 = vpop.f32.mrb[0].mxu0
    %v2589 = vpop.f32.mrb[0].mxu0
    %2590 = vdwg.mxu0
    %v2591 = vxor.u32 %v2544, 2147483648
    %v2592 = vmul.f32 %v2591, 1.442695
    %v2593 = vpow.pop %v2592
    %v2594 = vadd.f32 %v2593, 1.0
    %v2595 = vrcp.pop %v2594
    %v2596 = vmul.f32 1.0, %v2595
    %v2597 = vxor.u32 %v2546, 2147483648
    %v2598 = vmul.f32 %v2597, 1.442695
    %v2599 = vpow.pop %v2598
    %v2600 = vadd.f32 %v2599, 1.0
    %v2601 = vrcp.pop %v2600
    %v2602 = vmul.f32 1.0, %v2601
    %v2603 = vtanh.pop %v2585
    %v2604 = vxor.u32 %v2587, 2147483648
    %v2605 = vmul.f32 %v2604, 1.442695
    %v2606 = vpow.pop %v2605
    %v2607 = vadd.f32 %v2606, 1.0
    %v2608 = vrcp.pop %v2607
    %v2609 = vmul.f32 1.0, %v2608
    %v2610 = vmul.f32 %v2602, %v2504
    %v2611 = vmul.f32 %v2596, %v2603
    %v2612 = vadd.f32 %v2610, %v2611
    %v2613 = vtanh.pop %v2612
    %v2614 = vmul.f32 %v2609, %v2613
    %v2615 = vpack.c.bf16 %v2614, %v2614
    %v2616 = vld [vmem:[%s6] sm:$0xf]
    %v2617 = vld [vmem:[%s6 + $0x4] sm:$0xf]
    %v2618 = vld [vmem:[%s6 + $0x8] sm:$0xf]
    %v2619 = vld [vmem:[%s6 + $0xc] sm:$0xf]
    %v2620 = vld [vmem:[%s6 + $0x10] sm:$0xf]
    %v2621 = vld [vmem:[%s6 + $0x14] sm:$0xf]
    %v2622 = vld [vmem:[%s6 + $0x18] sm:$0xf]
    %v2623 = vld [vmem:[%s6 + $0x1c] sm:$0xf]
    %v2624 = vld [vmem:[%s6 + $0x20] sm:$0xf]
    %v2625 = vld [vmem:[%s6 + $0x24] sm:$0xf]
    %v2626 = vld [vmem:[%s6 + $0x28] sm:$0xf]
    %v2627 = vld [vmem:[%s6 + $0x2c] sm:$0xf]
    %v2628 = vld [vmem:[%s6 + $0x30] sm:$0xf]
    %v2629 = vld [vmem:[%s6 + $0x34] sm:$0xf]
    %v2630 = vld [vmem:[%s6 + $0x38] sm:$0xf]
    %v2631 = vld [vmem:[%s6 + $0x3c] sm:$0xf]
    %v2632 = vld [vmem:[%s7] sm:$0x1]
    %v2634 = vlaneseq
    %v2635 = vshrl.u32 %v2634, 7
    %v2636 = vsub.s32 0, %v2635
    %v2637 = vrot.slane %v2632, %v2636
    %v2655 = vunpack.c.l.b16 %v2616
    %v2656 = vunpack.c.l.b16 %v2617
    %v2657 = vunpack.c.l.b16 %v2618
    %v2658 = vunpack.c.l.b16 %v2619
    %v2659 = vunpack.c.l.b16 %v2620
    %v2660 = vunpack.c.l.b16 %v2621
    %v2661 = vunpack.c.l.b16 %v2622
    %v2662 = vunpack.c.l.b16 %v2623
    %v2663 = vunpack.c.l.b16 %v2624
    %v2664 = vunpack.c.l.b16 %v2625
    %v2665 = vunpack.c.l.b16 %v2626
    %v2666 = vunpack.c.l.b16 %v2627
    %v2667 = vunpack.c.l.b16 %v2628
    %v2668 = vunpack.c.l.b16 %v2629
    %v2669 = vunpack.c.l.b16 %v2630
    %v2670 = vunpack.c.l.b16 %v2631
    %v2671 = vpack.c.b16 %v2656, %v2655
    %v2672 = vpack.c.b16 %v2658, %v2657
    %v2673 = vpack.c.b16 %v2660, %v2659
    %v2674 = vpack.c.b16 %v2662, %v2661
    %v2675 = vpack.c.b16 %v2664, %v2663
    %v2676 = vpack.c.b16 %v2666, %v2665
    %v2677 = vpack.c.b16 %v2668, %v2667
    %v2678 = vpack.c.b16 %v2670, %v2669
    %2687 = vmatprep.subr.bf16.mxu0 0
    %2688 = vmatpush1.bf16.msra.mxu0 %v2671
    %2689 = vmatprep.subr.bf16.mxu0 0
    %2690 = vmatpush1.bf16.msra.mxu0 %v2672
    %2691 = vmatprep.subr.bf16.mxu0 0
    %2692 = vmatpush1.bf16.msra.mxu0 %v2673
    %2693 = vmatprep.subr.bf16.mxu0 0
    %2694 = vmatpush1.bf16.msra.mxu0 %v2674
    %2695 = vmatprep.subr.bf16.mxu0 0
    %2696 = vmatpush1.bf16.msra.mxu0 %v2675
    %2697 = vmatprep.subr.bf16.mxu0 0
    %2698 = vmatpush1.bf16.msra.mxu0 %v2676
    %2699 = vmatprep.subr.bf16.mxu0 0
    %2700 = vmatpush1.bf16.msra.mxu0 %v2677
    %2701 = vmatprep.subr.bf16.mxu0 0
    %2702 = vmatpush1.bf16.msra.mxu0 %v2678
    %2703 = vmatprep.subr.bf16.mxu0 0
    %2704 = vmatpush1.bf16.msra.mxu0 0
    %2705 = vmatprep.subr.bf16.mxu0 0
    %2706 = vmatpush1.bf16.msra.mxu0 0
    %2707 = vmatprep.subr.bf16.mxu0 0
    %2708 = vmatpush1.bf16.msra.mxu0 0
    %2709 = vmatprep.subr.bf16.mxu0 0
    %2710 = vmatpush1.bf16.msra.mxu0 0
    %2711 = vmatprep.subr.bf16.mxu0 0
    %2712 = vmatpush1.bf16.msra.mxu0 0
    %2713 = vmatprep.subr.bf16.mxu0 0
    %2714 = vmatpush1.bf16.msra.mxu0 0
    %2715 = vmatprep.subr.bf16.mxu0 0
    %2716 = vmatpush1.bf16.msra.mxu0 0
    %2717 = vmatprep.subr.bf16.mxu0 0
    %2718 = vmatpush1.bf16.msra.mxu0 0
    %2719 = vmatprep.mubr.bf16.mxu0 0
    %2720 = vmatmul.mubr.bf16.gmra.mrb[0].mxu0 %v2615
    %v2721 = vpop.f32.mrb[0].mxu0
    %v2722 = vadd.f32 %v2637, %v2721
    %v2723 = vpop.f32.mrb[0].mxu0
    %v2724 = vpop.f32.mrb[0].mxu0
    %v2725 = vpop.f32.mrb[0].mxu0
    %2726 = vdwg.mxu0
    %vm2727 = vcmask 39936
    %2728 = vst.msk [vmem:[%s8] sm:$0xff] %vm2727, %v2722
    // Predicated region
    $region42: #{lstm_model_forward.1} parent=1 // pred_check
      _
    $region43: #{lstm_model_forward.1} parent=1 // pred_check_branch
      %2730 = sbr.rel (0) target = $region45
    $region44: #{lstm_model_forward.1} parent=1 // pred_region
      _
    $region45: #{lstm_model_forward.1} parent=1 // pred_fallthru
      _
    // Predicated region
    $region46: #{lstm_model_forward.1} parent=1 // pred_check
      _
    $region47: #{lstm_model_forward.1} parent=1 // pred_check_branch
      %2732 = sbr.rel (0) target = $region49
    $region48: #{lstm_model_forward.1} parent=1 // pred_region
      _
    $region49: #{lstm_model_forward.1} parent=1 // pred_fallthru
      _
    %2733 = vsyncpa [#allocation3], 1
    %2734 = vsyncpa [#allocation5], 1

</llo_original>
